<compile_context>
chip_gen: v5e
topology: v5e:2x2
jax: 0.10.0
libtpu: 0.0.40
codegen_flags: <defaults>
</compile_context>

<pallas_src>
import functools

import jax
import jax.numpy as jnp
from jax.experimental import pallas as pl
from jax.experimental.pallas import tpu as pltpu

NC = 3       # input channels (PyTorch: nc = 3)
NDF = 16     # small ndf for the demo (module uses 64; shapes scale identically)
BATCH = 2
IMG = 64     # spatial size must be 64 so the 4-stage stride-2 stack ends at 4x4

_HEADS_LANES = 128   # lane-padded width of the merged-heads output row


# ----------------------------------------------------------------------------
# Small in-kernel helpers
# ----------------------------------------------------------------------------
def _leaky(x):
    return jnp.where(x >= 0, x, 0.2 * x)


def _stable_sigmoid(x):
    # exp(-|x|) <= 1 so this never overflows; result stays strictly in [0, 1].
    z = jnp.exp(-jnp.abs(x))
    return jnp.where(x >= 0, 1.0 / (1.0 + z), z / (1.0 + z))


# ----------------------------------------------------------------------------
# Pallas kernels
# ----------------------------------------------------------------------------
def _conv_lrelu_kernel(x_ref, w_ref, o_ref):
    """Layer 1: 4x4 s2 p1 conv (single fat-K dot per image) + LeakyReLU(0.2).

    x_ref: (1, K, M) bf16   transposed im2col of one image (K = 16*Cin, M = OH*OW)
    w_ref: (Cout, K) bf16
    o_ref: (1, Cout, M) f32 (lane-dense along the spatial axis)
    """
    y = jnp.dot(w_ref[...], x_ref[0], preferred_element_type=jnp.float32)
    o_ref[0] = _leaky(y)


def _conv_bn_lrelu_kernel(x_ref, w_ref, g_ref, bta_ref, o_ref,
                          z_ref, sum_ref, var_ref, *, nb, inv_m):
    """Fused conv (one dot) + training-mode BatchNorm + LeakyReLU(0.2).

    Grid = (2, B), iterated pass-major:
      pass 0: per-image matmul -> VMEM-resident z cache + per-channel sum
      pass 1: centered (two-pass) variance at b==0, then normalize + store.
    NOTE: the output-block index (b*p) relies on the pass-major, last-axis-
    fastest 'arbitrary' iteration order: block 0 is only written back after
    pass 1 step 0 has filled it.
    """
    p = pl.program_id(0)
    b = pl.program_id(1)

    @pl.when(p == 0)
    def _pass0():
        @pl.when(b == 0)
        def _init():
            sum_ref[...] = jnp.zeros_like(sum_ref)

        z = jnp.dot(w_ref[...], x_ref[0], preferred_element_type=jnp.float32)
        z_ref[b] = z                                            # (Cout, M)
        sum_ref[...] += jnp.sum(z, axis=1, keepdims=True)       # (Cout, 1)

    @pl.when(p == 1)
    def _pass1():
        mean = sum_ref[...] * inv_m                             # (Cout, 1)

        @pl.when(b == 0)
        def _variance():
            # Two-pass (centered) variance: avoids E[x^2]-mean^2 cancellation.
            acc = jnp.zeros_like(var_ref)
            for i in range(nb):                                  # static unroll
                d = z_ref[i] - mean
                acc = acc + jnp.sum(d * d, axis=1, keepdims=True)
            var_ref[...] = acc * inv_m                           # biased var

        scale = g_ref[...] * jax.lax.rsqrt(var_ref[...] + 1e-5)
        shift = bta_ref[...] - mean * scale
        o_ref[0] = _leaky(z_ref[b] * scale + shift)


def _conv_bn_lrelu_heads_kernel(x_ref, w_ref, g_ref, bta_ref, wh_ref, o_ref,
                                z_ref, sum_ref, var_ref, *, nb, inv_m):
    """Layer 4: fused conv + BN + LeakyReLU + merged output/classifier heads.

    Same two-pass structure as _conv_bn_lrelu_kernel; pass 1 additionally
    contracts the VMEM-resident normalized hidden (Cout, 16) against the two
    head filters (multiply + sublane/lane reductions) and writes the two
    sigmoid scalars into lanes 0/1 of a lane-padded output row -- the hidden
    activation never leaves VMEM.
    """
    p = pl.program_id(0)
    b = pl.program_id(1)

    @pl.when(p == 0)
    def _pass0():
        @pl.when(b == 0)
        def _init():
            sum_ref[...] = jnp.zeros_like(sum_ref)

        z = jnp.dot(w_ref[...], x_ref[0], preferred_element_type=jnp.float32)
        z_ref[b] = z
        sum_ref[...] += jnp.sum(z, axis=1, keepdims=True)

    @pl.when(p == 1)
    def _pass1():
        mean = sum_ref[...] * inv_m

        @pl.when(b == 0)
        def _variance():
            acc = jnp.zeros_like(var_ref)
            for i in range(nb):
                d = z_ref[i] - mean
                acc = acc + jnp.sum(d * d, axis=1, keepdims=True)
            var_ref[...] = acc * inv_m

        scale = g_ref[...] * jax.lax.rsqrt(var_ref[...] + 1e-5)
        shift = bta_ref[...] - mean * scale
        h = _leaky(z_ref[b] * scale + shift)                    # (Cout, M)

        s_out = jnp.sum(jnp.sum(wh_ref[0] * h, axis=0, keepdims=True),
                        axis=1, keepdims=True)                  # (1, 1)
        s_cls = jnp.sum(jnp.sum(wh_ref[1] * h, axis=0, keepdims=True),
                        axis=1, keepdims=True)                  # (1, 1)
        lane = jax.lax.broadcasted_iota(jnp.int32, (1, _HEADS_LANES), 1)
        row = jnp.where(lane == 0, _stable_sigmoid(s_out),
                        jnp.where(lane == 1, _stable_sigmoid(s_cls), 0.0))
        o_ref[0] = row                                          # (1, 128)


# ----------------------------------------------------------------------------
# Cheap XLA glue (bf16 staging, no in-kernel relayouts)
# ----------------------------------------------------------------------------
def _im2col_T(x_nchw):
    """(B, C, H, W) -> (B, 16*C, OH*OW) bf16 transposed im2col for 4x4 s2 p1.

    K order is (kh, kw, ci); M order is (oh, ow).  Output is lane-dense along
    the spatial axis, matching the kernels' channels-as-sublanes layout.
    """
    x = x_nchw.astype(jnp.bfloat16)
    B, C, H, W = x.shape
    OH, OW = H // 2, W // 2
    xp = jnp.pad(x, ((0, 0), (0, 0), (1, 1), (1, 1)))
    taps = [xp[:, :, kh:kh + 2 * OH:2, kw:kw + 2 * OW:2]
            for kh in range(4) for kw in range(4)]
    pat = jnp.stack(taps, axis=1)                   # (B, 16, C, OH, OW)
    return pat.reshape(B, 16 * C, OH * OW)


def _weight_T(w_oihw):
    """(Cout, Cin, 4, 4) -> (Cout, 16*Cin) bf16 with K order (kh, kw, ci)."""
    Cout, Cin = w_oihw.shape[:2]
    wt = jnp.transpose(w_oihw, (0, 2, 3, 1))        # (co, kh, kw, ci)
    return wt.reshape(Cout, 16 * Cin).astype(jnp.bfloat16)


# ----------------------------------------------------------------------------
# pallas_call wrappers
# ----------------------------------------------------------------------------
def conv1_lrelu(x_nchw, w_oihw):
    """First layer: conv(4,2,1,no bias) + LeakyReLU(0.2). Grid over batch."""
    B, C, H, W = x_nchw.shape
    Cout = w_oihw.shape[0]
    OH, OW = H // 2, W // 2
    M, K = OH * OW, 16 * C
    xt = _im2col_T(x_nchw)
    wt = _weight_T(w_oihw)
    y = pl.pallas_call(
        _conv_lrelu_kernel,
        out_shape=jax.ShapeDtypeStruct((B, Cout, M), jnp.float32),
        grid=(B,),
        in_specs=[
            pl.BlockSpec((1, K, M), lambda b: (b, 0, 0)),
            pl.BlockSpec((Cout, K), lambda b: (0, 0)),
        ],
        out_specs=pl.BlockSpec((1, Cout, M), lambda b: (b, 0, 0)),
        compiler_params=pltpu.CompilerParams(dimension_semantics=("parallel",)),
    )(xt, wt)
    return y.reshape(B, Cout, OH, OW)


def conv_bn_lrelu(x_nchw, w_oihw, gamma, beta):
    """conv(4,2,1,no bias) + BatchNorm2d(train, eps=1e-5) + LeakyReLU(0.2)."""
    B, C, H, W = x_nchw.shape
    Cout = w_oihw.shape[0]
    OH, OW = H // 2, W // 2
    M, K = OH * OW, 16 * C
    xt = _im2col_T(x_nchw)
    wt = _weight_T(w_oihw)
    g = gamma.reshape(Cout, 1).astype(jnp.float32)
    bt = beta.reshape(Cout, 1).astype(jnp.float32)
    kernel = functools.partial(_conv_bn_lrelu_kernel, nb=B,
                               inv_m=1.0 / float(B * M))
    last = B - 1
    y = pl.pallas_call(
        kernel,
        out_shape=jax.ShapeDtypeStruct((B, Cout, M), jnp.float32),
        grid=(2, B),   # axis 0 = pass (stats, then normalize), axis 1 = batch
        in_specs=[
            # pass 0 walks the batch; pass 1 stays pinned on the last-fetched
            # block so flipping the pass issues no redundant input DMA.
            pl.BlockSpec((1, K, M),
                         lambda p, b: (b * (1 - p) + last * p, 0, 0)),
            pl.BlockSpec((Cout, K), lambda p, b: (0, 0)),
            pl.BlockSpec((Cout, 1), lambda p, b: (0, 0)),
            pl.BlockSpec((Cout, 1), lambda p, b: (0, 0)),
        ],
        # output blocks are only written (hence only written back) in pass 1
        out_specs=pl.BlockSpec((1, Cout, M), lambda p, b: (b * p, 0, 0)),
        scratch_shapes=[
            pltpu.VMEM((B, Cout, M), jnp.float32),   # resident pre-BN conv out
            pltpu.VMEM((Cout, 1), jnp.float32),      # per-channel sum
            pltpu.VMEM((Cout, 1), jnp.float32),      # per-channel variance
        ],
        compiler_params=pltpu.CompilerParams(
            dimension_semantics=("arbitrary", "arbitrary")),
    )(xt, wt, g, bt)
    return y.reshape(B, Cout, OH, OW)


def conv_bn_lrelu_heads(x_nchw, w_oihw, gamma, beta, w_out, w_cls):
    """Layer 4 + fused heads: conv+BN+LeakyReLU, then the two 4x4 valid convs
    (output / classifier) + Sigmoid computed on the VMEM-resident hidden."""
    B, C, H, W = x_nchw.shape
    Cout = w_oihw.shape[0]
    OH, OW = H // 2, W // 2
    M, K = OH * OW, 16 * C
    xt = _im2col_T(x_nchw)
    wt = _weight_T(w_oihw)
    g = gamma.reshape(Cout, 1).astype(jnp.float32)
    bt = beta.reshape(Cout, 1).astype(jnp.float32)
    # head filters in the kernel's (c, kh*OW + kw) layout, stacked (2, Cout, M)
    wh = jnp.stack([w_out[0].reshape(Cout, M),
                    w_cls[0].reshape(Cout, M)], axis=0).astype(jnp.float32)
    kernel = functools.partial(_conv_bn_lrelu_heads_kernel, nb=B,
                               inv_m=1.0 / float(B * M))
    last = B - 1
    y = pl.pallas_call(
        kernel,
        out_shape=jax.ShapeDtypeStruct((B, 1, _HEADS_LANES), jnp.float32),
        grid=(2, B),
        in_specs=[
            pl.BlockSpec((1, K, M),
                         lambda p, b: (b * (1 - p) + last * p, 0, 0)),
            pl.BlockSpec((Cout, K), lambda p, b: (0, 0)),
            pl.BlockSpec((Cout, 1), lambda p, b: (0, 0)),
            pl.BlockSpec((Cout, 1), lambda p, b: (0, 0)),
            pl.BlockSpec((2, Cout, M), lambda p, b: (0, 0, 0)),
        ],
        out_specs=pl.BlockSpec((1, 1, _HEADS_LANES), lambda p, b: (b * p, 0, 0)),
        scratch_shapes=[
            pltpu.VMEM((B, Cout, M), jnp.float32),
            pltpu.VMEM((Cout, 1), jnp.float32),
            pltpu.VMEM((Cout, 1), jnp.float32),
        ],
        compiler_params=pltpu.CompilerParams(
            dimension_semantics=("arbitrary", "arbitrary")),
    )(xt, wt, g, bt, wh)
    out = y[:, 0, 0].reshape(B, 1, 1, 1)
    cls = y[:, 0, 1].reshape(B, 1, 1, 1)
    return out, cls


# ----------------------------------------------------------------------------
# Parameters (deterministic DCGAN-style N(0, 0.02) init; BN gamma=1, beta=0)
# ----------------------------------------------------------------------------
def init_params(key, nc=NC, ndf=NDF):
    ks = jax.random.split(key, 6)

    def w(k, shape):
        return 0.02 * jax.random.normal(k, shape, dtype=jnp.float32)

    return {
        "w1": w(ks[0], (ndf, nc, 4, 4)),
        "w2": w(ks[1], (ndf * 2, ndf, 4, 4)),
        "g2": jnp.ones((ndf * 2,), jnp.float32),
        "b2": jnp.zeros((ndf * 2,), jnp.float32),
        "w3": w(ks[2], (ndf * 4, ndf * 2, 4, 4)),
        "g3": jnp.ones((ndf * 4,), jnp.float32),
        "b3": jnp.zeros((ndf * 4,), jnp.float32),
        "w4": w(ks[3], (ndf * 8, ndf * 4, 4, 4)),
        "g4": jnp.ones((ndf * 8,), jnp.float32),
        "b4": jnp.zeros((ndf * 8,), jnp.float32),
        "w_out": w(ks[4], (1, ndf * 8, 4, 4)),
        "w_cls": w(ks[5], (1, ndf * 8, 4, 4)),
    }


# ----------------------------------------------------------------------------
# Forward pass (matches Discriminator.forward: returns (output, classes))
# ----------------------------------------------------------------------------
@jax.jit
def discriminator_forward(img_nchw, params):
    # conv1 (nc -> ndf, 4x4 s2 p1) + LeakyReLU(0.2), no BN
    x = conv1_lrelu(img_nchw, params["w1"])

    # conv2..conv3: fused conv + BatchNorm(train) + LeakyReLU(0.2)
    x = conv_bn_lrelu(x, params["w2"], params["g2"], params["b2"])
    x = conv_bn_lrelu(x, params["w3"], params["g3"], params["b3"])

    # conv4 + BN + LeakyReLU + merged output/classifier heads (Sigmoid), fused
    out, cls = conv_bn_lrelu_heads(x, params["w4"], params["g4"], params["b4"],
                                   params["w_out"], params["w_cls"])
    return out, cls      # both (B, 1, 1, 1)


if __name__ == "__main__":
    key = jax.random.PRNGKey(0)
    k_img, k_par = jax.random.split(key)
    img = jax.random.normal(k_img, (BATCH, NC, IMG, IMG), dtype=jnp.float32)
    params = init_params(k_par)

    output, classes = discriminator_forward(img, params)
    jax.block_until_ready((output, classes))

    assert output.shape == (BATCH, 1, 1, 1) and classes.shape == (BATCH, 1, 1, 1)
    assert bool(jnp.all((output >= 0) & (output <= 1)))
    assert bool(jnp.all((classes >= 0) & (classes <= 1)))
    assert bool(jnp.all(jnp.isfinite(output))) and bool(jnp.all(jnp.isfinite(classes)))
    print("KERNEL_OK")
</pallas_src>

<mosaic_0001>
module attributes {stable_mosaic.version = 11 : i64} {
  func.func @_conv_lrelu_kernel(%arg0: i32, %arg1: memref<1x48x1024xbf16, #tpu.memory_space<vmem>>, %arg2: memref<16x48xbf16, #tpu.memory_space<vmem>>, %arg3: memref<1x16x1024xf32, #tpu.memory_space<vmem>>) attributes {dimension_semantics = [#tpu.dimension_semantics<parallel>], iteration_bounds = array<i64: 2>, scalar_prefetch = 0 : i64, scratch_operands = 0 : i64, tpu.core_type = #tpu.core_type<tc>, window_params = [{transform_indices = @transform_0, window_bounds = array<i64: 1, 48, 1024>}, {pipeline_mode = #tpu.pipeline_mode<synchronous>, transform_indices = @transform_1, window_bounds = array<i64: 16, 48>}, {transform_indices = @transform_2, window_bounds = array<i64: 1, 16, 1024>}]} {
    %c0 = arith.constant 0 : index
    %c0_0 = arith.constant 0 : index
    %0 = vector.load %arg2[%c0, %c0_0] : memref<16x48xbf16, #tpu.memory_space<vmem>>, vector<16x48xbf16>
    %c0_1 = arith.constant 0 : index
    %c0_2 = arith.constant 0 : index
    %c0_3 = arith.constant 0 : index
    %1 = vector.load %arg1[%c0_1, %c0_2, %c0_3] : memref<1x48x1024xbf16, #tpu.memory_space<vmem>>, vector<1x48x1024xbf16>
    %2 = vector.shape_cast %1 : vector<1x48x1024xbf16> to vector<48x1024xbf16>
    %cst = arith.constant dense<0.000000e+00> : vector<16x1024xf32>
    %3 = tpu.matmul %0, %2, %cst {dimension_numbers = #tpu.dot_dimension_numbers<[1], [0], [0], [1], [0, 0, 1, 1], [], []>} : vector<16x48xbf16>, vector<48x1024xbf16>, vector<16x1024xf32> -> vector<16x1024xf32>
    %cst_4 = arith.constant 0.000000e+00 : f32
    %4 = vector.broadcast %cst_4 : f32 to vector<16x1024xf32>
    %5 = arith.cmpf oge, %3, %4 : vector<16x1024xf32>
    %cst_5 = arith.constant 2.000000e-01 : f32
    %6 = vector.broadcast %cst_5 : f32 to vector<16x1024xf32>
    %7 = arith.mulf %6, %3 : vector<16x1024xf32>
    %8 = arith.select %5, %3, %7 : vector<16x1024xi1>, vector<16x1024xf32>
    %c0_6 = arith.constant 0 : index
    %c0_7 = arith.constant 0 : index
    %c0_8 = arith.constant 0 : index
    %9 = vector.load %arg3[%c0_6, %c0_7, %c0_8] : memref<1x16x1024xf32, #tpu.memory_space<vmem>>, vector<1x16x1024xf32>
    %10 = vector.shape_cast %9 : vector<1x16x1024xf32> to vector<16x1024xf32>
    %11 = vector.shape_cast %8 : vector<16x1024xf32> to vector<1x16x1024xf32>
    tpu.vector_store %arg3[%c0_6, %c0_7, %c0_8], %11 {strides = array<i32>} : memref<1x16x1024xf32, #tpu.memory_space<vmem>>, vector<1x16x1024xf32>,
    return
  }
  func.func @transform_0(%arg0: i32) -> (i32, i32, i32) {
    %c0_i32 = arith.constant 0 : i32
    %c0_i32_0 = arith.constant 0 : i32
    %c0_i32_1 = arith.constant 0 : i32
    return %arg0, %c0_i32, %c0_i32_0 : i32, i32, i32
  }
  func.func @transform_1(%arg0: i32) -> (i32, i32) {
    %c0_i32 = arith.constant 0 : i32
    %c0_i32_0 = arith.constant 0 : i32
    %c0_i32_1 = arith.constant 0 : i32
    return %c0_i32, %c0_i32_0 : i32, i32
  }
  func.func @transform_2(%arg0: i32) -> (i32, i32, i32) {
    %c0_i32 = arith.constant 0 : i32
    %c0_i32_0 = arith.constant 0 : i32
    %c0_i32_1 = arith.constant 0 : i32
    return %arg0, %c0_i32, %c0_i32_0 : i32, i32, i32
  }
}

module attributes {stable_mosaic.version = 11 : i64} {
  func.func @_conv_bn_lrelu_kernel(%arg0: i32, %arg1: i32, %arg2: memref<1x256x256xbf16, #tpu.memory_space<vmem>>, %arg3: memref<32x256xbf16, #tpu.memory_space<vmem>>, %arg4: memref<32x1xf32, #tpu.memory_space<vmem>>, %arg5: memref<32x1xf32, #tpu.memory_space<vmem>>, %arg6: memref<1x32x256xf32, #tpu.memory_space<vmem>>, %arg7: memref<2x32x256xf32, #tpu.memory_space<vmem>>, %arg8: memref<32x1xf32, #tpu.memory_space<vmem>>, %arg9: memref<32x1xf32, #tpu.memory_space<vmem>>) attributes {dimension_semantics = [#tpu.dimension_semantics<arbitrary>, #tpu.dimension_semantics<arbitrary>], iteration_bounds = array<i64: 2, 2>, scalar_prefetch = 0 : i64, scratch_operands = 3 : i64, tpu.core_type = #tpu.core_type<tc>, window_params = [{transform_indices = @transform_0, window_bounds = array<i64: 1, 256, 256>}, {pipeline_mode = #tpu.pipeline_mode<synchronous>, transform_indices = @transform_1, window_bounds = array<i64: 32, 256>}, {pipeline_mode = #tpu.pipeline_mode<synchronous>, transform_indices = @transform_2, window_bounds = array<i64: 32, 1>}, {pipeline_mode = #tpu.pipeline_mode<synchronous>, transform_indices = @transform_3, window_bounds = array<i64: 32, 1>}, {transform_indices = @transform_4, window_bounds = array<i64: 1, 32, 256>}]} {
    %c0_i32 = arith.constant 0 : i32
    %0 = arith.cmpi eq, %arg0, %c0_i32 : i32
    %1 = arith.extui %0 : i1 to i32
    %c0_i32_0 = arith.constant 0 : i32
    %2 = arith.cmpi ne, %1, %c0_i32_0 : i32
    scf.if %2 {
      %c0_i32_2 = arith.constant 0 : i32
      %6 = arith.cmpi eq, %arg1, %c0_i32_2 : i32
      %7 = arith.extui %6 : i1 to i32
      %c0_i32_3 = arith.constant 0 : i32
      %8 = arith.cmpi ne, %7, %c0_i32_3 : i32
      scf.if %8 {
        %cst_15 = arith.constant 0.000000e+00 : f32
        %22 = vector.broadcast %cst_15 : f32 to vector<32x1xf32>
        %c0_16 = arith.constant 0 : index
        %c0_17 = arith.constant 0 : index
        %23 = vector.load %arg8[%c0_16, %c0_17] : memref<32x1xf32, #tpu.memory_space<vmem>>, vector<32x1xf32>
        tpu.vector_store %arg8[%c0_16, %c0_17], %22 {strides = array<i32>} : memref<32x1xf32, #tpu.memory_space<vmem>>, vector<32x1xf32>,
      } else {
      }
      %c0 = arith.constant 0 : index
      %c0_4 = arith.constant 0 : index
      %9 = vector.load %arg3[%c0, %c0_4] : memref<32x256xbf16, #tpu.memory_space<vmem>>, vector<32x256xbf16>
      %c0_5 = arith.constant 0 : index
      %c0_6 = arith.constant 0 : index
      %c0_7 = arith.constant 0 : index
      %10 = vector.load %arg2[%c0_5, %c0_6, %c0_7] : memref<1x256x256xbf16, #tpu.memory_space<vmem>>, vector<1x256x256xbf16>
      %11 = vector.shape_cast %10 : vector<1x256x256xbf16> to vector<256x256xbf16>
      %cst = arith.constant dense<0.000000e+00> : vector<32x256xf32>
      %12 = tpu.matmul %9, %11, %cst {dimension_numbers = #tpu.dot_dimension_numbers<[1], [0], [0], [1], [0, 0, 1, 1], [], []>} : vector<32x256xbf16>, vector<256x256xbf16>, vector<32x256xf32> -> vector<32x256xf32>
      %13 = arith.index_cast %arg1 : i32 to index
      %c0_8 = arith.constant 0 : index
      %c0_9 = arith.constant 0 : index
      %14 = vector.load %arg7[%13, %c0_8, %c0_9] : memref<2x32x256xf32, #tpu.memory_space<vmem>>, vector<1x32x256xf32>
      %15 = vector.shape_cast %14 : vector<1x32x256xf32> to vector<32x256xf32>
      %16 = vector.shape_cast %12 : vector<32x256xf32> to vector<1x32x256xf32>
      tpu.vector_store %arg7[%13, %c0_8, %c0_9], %16 {strides = array<i32>} : memref<2x32x256xf32, #tpu.memory_space<vmem>>, vector<1x32x256xf32>,
      %c0_10 = arith.constant 0 : index
      %c0_11 = arith.constant 0 : index
      %17 = vector.load %arg8[%c0_10, %c0_11] : memref<32x1xf32, #tpu.memory_space<vmem>>, vector<32x1xf32>
      %cst_12 = arith.constant dense<0.000000e+00> : vector<32xf32>
      %18 = vector.multi_reduction <add>, %12, %cst_12 [1] : vector<32x256xf32> to vector<32xf32>
      %19 = vector.shape_cast %18 : vector<32xf32> to vector<32x1xf32>
      %20 = arith.addf %17, %19 : vector<32x1xf32>
      %c0_13 = arith.constant 0 : index
      %c0_14 = arith.constant 0 : index
      %21 = vector.load %arg8[%c0_13, %c0_14] : memref<32x1xf32, #tpu.memory_space<vmem>>, vector<32x1xf32>
      tpu.vector_store %arg8[%c0_13, %c0_14], %20 {strides = array<i32>} : memref<32x1xf32, #tpu.memory_space<vmem>>, vector<32x1xf32>,
    } else {
    }
    %c1_i32 = arith.constant 1 : i32
    %3 = arith.cmpi eq, %arg0, %c1_i32 : i32
    %4 = arith.extui %3 : i1 to i32
    %c0_i32_1 = arith.constant 0 : i32
    %5 = arith.cmpi ne, %4, %c0_i32_1 : i32
    scf.if %5 {
      %c0 = arith.constant 0 : index
      %c0_2 = arith.constant 0 : index
      %6 = vector.load %arg8[%c0, %c0_2] : memref<32x1xf32, #tpu.memory_space<vmem>>, vector<32x1xf32>
      %cst = arith.constant 0.001953125 : f32
      %7 = vector.broadcast %cst : f32 to vector<32x1xf32>
      %8 = arith.mulf %6, %7 : vector<32x1xf32>
      %c0_i32_3 = arith.constant 0 : i32
      %9 = arith.cmpi eq, %arg1, %c0_i32_3 : i32
      %10 = arith.extui %9 : i1 to i32
      %c0_i32_4 = arith.constant 0 : i32
      %11 = arith.cmpi ne, %10, %c0_i32_4 : i32
      scf.if %11 {
        %cst_19 = arith.constant 0.000000e+00 : f32
        %36 = vector.broadcast %cst_19 : f32 to vector<32x1xf32>
        %c0_20 = arith.constant 0 : index
        %c0_21 = arith.constant 0 : index
        %c0_22 = arith.constant 0 : index
        %37 = vector.load %arg7[%c0_20, %c0_21, %c0_22] : memref<2x32x256xf32, #tpu.memory_space<vmem>>, vector<1x32x256xf32>
        %38 = vector.shape_cast %37 : vector<1x32x256xf32> to vector<32x256xf32>
        %39 = vector.broadcast %8 : vector<32x1xf32> to vector<32x256xf32>
        %40 = arith.subf %38, %39 : vector<32x256xf32>
        %41 = arith.mulf %40, %40 : vector<32x256xf32>
        %cst_23 = arith.constant dense<0.000000e+00> : vector<32xf32>
        %42 = vector.multi_reduction <add>, %41, %cst_23 [1] : vector<32x256xf32> to vector<32xf32>
        %43 = vector.shape_cast %42 : vector<32xf32> to vector<32x1xf32>
        %44 = arith.addf %36, %43 : vector<32x1xf32>
        %c1 = arith.constant 1 : index
        %c0_24 = arith.constant 0 : index
        %c0_25 = arith.constant 0 : index
        %45 = vector.load %arg7[%c1, %c0_24, %c0_25] : memref<2x32x256xf32, #tpu.memory_space<vmem>>, vector<1x32x256xf32>
        %46 = vector.shape_cast %45 : vector<1x32x256xf32> to vector<32x256xf32>
        %47 = vector.broadcast %8 : vector<32x1xf32> to vector<32x256xf32>
        %48 = arith.subf %46, %47 : vector<32x256xf32>
        %49 = arith.mulf %48, %48 : vector<32x256xf32>
        %cst_26 = arith.constant dense<0.000000e+00> : vector<32xf32>
        %50 = vector.multi_reduction <add>, %49, %cst_26 [1] : vector<32x256xf32> to vector<32xf32>
        %51 = vector.shape_cast %50 : vector<32xf32> to vector<32x1xf32>
        %52 = arith.addf %44, %51 : vector<32x1xf32>
        %cst_27 = arith.constant 0.001953125 : f32
        %53 = vector.broadcast %cst_27 : f32 to vector<32x1xf32>
        %54 = arith.mulf %52, %53 : vector<32x1xf32>
        %c0_28 = arith.constant 0 : index
        %c0_29 = arith.constant 0 : index
        %55 = vector.load %arg9[%c0_28, %c0_29] : memref<32x1xf32, #tpu.memory_space<vmem>>, vector<32x1xf32>
        tpu.vector_store %arg9[%c0_28, %c0_29], %54 {strides = array<i32>} : memref<32x1xf32, #tpu.memory_space<vmem>>, vector<32x1xf32>,
      } else {
      }
      %c0_5 = arith.constant 0 : index
      %c0_6 = arith.constant 0 : index
      %12 = vector.load %arg4[%c0_5, %c0_6] : memref<32x1xf32, #tpu.memory_space<vmem>>, vector<32x1xf32>
      %c0_7 = arith.constant 0 : index
      %c0_8 = arith.constant 0 : index
      %13 = vector.load %arg9[%c0_7, %c0_8] : memref<32x1xf32, #tpu.memory_space<vmem>>, vector<32x1xf32>
      %cst_9 = arith.constant 9.99999974E-6 : f32
      %14 = vector.broadcast %cst_9 : f32 to vector<32x1xf32>
      %15 = arith.addf %13, %14 : vector<32x1xf32>
      %16 = math.rsqrt %15 : vector<32x1xf32>
      %17 = arith.mulf %12, %16 : vector<32x1xf32>
      %c0_10 = arith.constant 0 : index
      %c0_11 = arith.constant 0 : index
      %18 = vector.load %arg5[%c0_10, %c0_11] : memref<32x1xf32, #tpu.memory_space<vmem>>, vector<32x1xf32>
      %19 = arith.mulf %8, %17 : vector<32x1xf32>
      %20 = arith.subf %18, %19 : vector<32x1xf32>
      %21 = arith.index_cast %arg1 : i32 to index
      %c0_12 = arith.constant 0 : index
      %c0_13 = arith.constant 0 : index
      %22 = vector.load %arg7[%21, %c0_12, %c0_13] : memref<2x32x256xf32, #tpu.memory_space<vmem>>, vector<1x32x256xf32>
      %23 = vector.shape_cast %22 : vector<1x32x256xf32> to vector<32x256xf32>
      %24 = vector.broadcast %17 : vector<32x1xf32> to vector<32x256xf32>
      %25 = arith.mulf %23, %24 : vector<32x256xf32>
      %26 = vector.broadcast %20 : vector<32x1xf32> to vector<32x256xf32>
      %27 = arith.addf %25, %26 : vector<32x256xf32>
      %cst_14 = arith.constant 0.000000e+00 : f32
      %28 = vector.broadcast %cst_14 : f32 to vector<32x256xf32>
      %29 = arith.cmpf oge, %27, %28 : vector<32x256xf32>
      %cst_15 = arith.constant 2.000000e-01 : f32
      %30 = vector.broadcast %cst_15 : f32 to vector<32x256xf32>
      %31 = arith.mulf %30, %27 : vector<32x256xf32>
      %32 = arith.select %29, %27, %31 : vector<32x256xi1>, vector<32x256xf32>
      %c0_16 = arith.constant 0 : index
      %c0_17 = arith.constant 0 : index
      %c0_18 = arith.constant 0 : index
      %33 = vector.load %arg6[%c0_16, %c0_17, %c0_18] : memref<1x32x256xf32, #tpu.memory_space<vmem>>, vector<1x32x256xf32>
      %34 = vector.shape_cast %33 : vector<1x32x256xf32> to vector<32x256xf32>
      %35 = vector.shape_cast %32 : vector<32x256xf32> to vector<1x32x256xf32>
      tpu.vector_store %arg6[%c0_16, %c0_17, %c0_18], %35 {strides = array<i32>} : memref<1x32x256xf32, #tpu.memory_space<vmem>>, vector<1x32x256xf32>,
    } else {
    }
    return
  }
  func.func @transform_0(%arg0: i32, %arg1: i32) -> (i32, i32, i32) {
    %c1_i32 = arith.constant 1 : i32
    %0 = arith.subi %c1_i32, %arg0 : i32
    %1 = arith.muli %arg1, %0 : i32
    %c1_i32_0 = arith.constant 1 : i32
    %2 = arith.muli %c1_i32_0, %arg0 : i32
    %3 = arith.addi %1, %2 : i32
    %c0_i32 = arith.constant 0 : i32
    %c0_i32_1 = arith.constant 0 : i32
    %c0_i32_2 = arith.constant 0 : i32
    return %3, %c0_i32, %c0_i32_1 : i32, i32, i32
  }
  func.func @transform_1(%arg0: i32, %arg1: i32) -> (i32, i32) {
    %c0_i32 = arith.constant 0 : i32
    %c0_i32_0 = arith.constant 0 : i32
    %c0_i32_1 = arith.constant 0 : i32
    return %c0_i32, %c0_i32_0 : i32, i32
  }
  func.func @transform_2(%arg0: i32, %arg1: i32) -> (i32, i32) {
    %c0_i32 = arith.constant 0 : i32
    %c0_i32_0 = arith.constant 0 : i32
    %c0_i32_1 = arith.constant 0 : i32
    return %c0_i32, %c0_i32_0 : i32, i32
  }
  func.func @transform_3(%arg0: i32, %arg1: i32) -> (i32, i32) {
    %c0_i32 = arith.constant 0 : i32
    %c0_i32_0 = arith.constant 0 : i32
    %c0_i32_1 = arith.constant 0 : i32
    return %c0_i32, %c0_i32_0 : i32, i32
  }
  func.func @transform_4(%arg0: i32, %arg1: i32) -> (i32, i32, i32) {
    %0 = arith.muli %arg1, %arg0 : i32
    %c0_i32 = arith.constant 0 : i32
    %c0_i32_0 = arith.constant 0 : i32
    %c0_i32_1 = arith.constant 0 : i32
    return %0, %c0_i32, %c0_i32_0 : i32, i32, i32
  }
}

module attributes {stable_mosaic.version = 11 : i64} {
  func.func @_conv_bn_lrelu_kernel(%arg0: i32, %arg1: i32, %arg2: memref<1x512x64xbf16, #tpu.memory_space<vmem>>, %arg3: memref<64x512xbf16, #tpu.memory_space<vmem>>, %arg4: memref<64x1xf32, #tpu.memory_space<vmem>>, %arg5: memref<64x1xf32, #tpu.memory_space<vmem>>, %arg6: memref<1x64x64xf32, #tpu.memory_space<vmem>>, %arg7: memref<2x64x64xf32, #tpu.memory_space<vmem>>, %arg8: memref<64x1xf32, #tpu.memory_space<vmem>>, %arg9: memref<64x1xf32, #tpu.memory_space<vmem>>) attributes {dimension_semantics = [#tpu.dimension_semantics<arbitrary>, #tpu.dimension_semantics<arbitrary>], iteration_bounds = array<i64: 2, 2>, scalar_prefetch = 0 : i64, scratch_operands = 3 : i64, tpu.core_type = #tpu.core_type<tc>, window_params = [{transform_indices = @transform_0, window_bounds = array<i64: 1, 512, 64>}, {pipeline_mode = #tpu.pipeline_mode<synchronous>, transform_indices = @transform_1, window_bounds = array<i64: 64, 512>}, {pipeline_mode = #tpu.pipeline_mode<synchronous>, transform_indices = @transform_2, window_bounds = array<i64: 64, 1>}, {pipeline_mode = #tpu.pipeline_mode<synchronous>, transform_indices = @transform_3, window_bounds = array<i64: 64, 1>}, {transform_indices = @transform_4, window_bounds = array<i64: 1, 64, 64>}]} {
    %c0_i32 = arith.constant 0 : i32
    %0 = arith.cmpi eq, %arg0, %c0_i32 : i32
    %1 = arith.extui %0 : i1 to i32
    %c0_i32_0 = arith.constant 0 : i32
    %2 = arith.cmpi ne, %1, %c0_i32_0 : i32
    scf.if %2 {
      %c0_i32_2 = arith.constant 0 : i32
      %6 = arith.cmpi eq, %arg1, %c0_i32_2 : i32
      %7 = arith.extui %6 : i1 to i32
      %c0_i32_3 = arith.constant 0 : i32
      %8 = arith.cmpi ne, %7, %c0_i32_3 : i32
      scf.if %8 {
        %cst_15 = arith.constant 0.000000e+00 : f32
        %22 = vector.broadcast %cst_15 : f32 to vector<64x1xf32>
        %c0_16 = arith.constant 0 : index
        %c0_17 = arith.constant 0 : index
        %23 = vector.load %arg8[%c0_16, %c0_17] : memref<64x1xf32, #tpu.memory_space<vmem>>, vector<64x1xf32>
        tpu.vector_store %arg8[%c0_16, %c0_17], %22 {strides = array<i32>} : memref<64x1xf32, #tpu.memory_space<vmem>>, vector<64x1xf32>,
      } else {
      }
      %c0 = arith.constant 0 : index
      %c0_4 = arith.constant 0 : index
      %9 = vector.load %arg3[%c0, %c0_4] : memref<64x512xbf16, #tpu.memory_space<vmem>>, vector<64x512xbf16>
      %c0_5 = arith.constant 0 : index
      %c0_6 = arith.constant 0 : index
      %c0_7 = arith.constant 0 : index
      %10 = vector.load %arg2[%c0_5, %c0_6, %c0_7] : memref<1x512x64xbf16, #tpu.memory_space<vmem>>, vector<1x512x64xbf16>
      %11 = vector.shape_cast %10 : vector<1x512x64xbf16> to vector<512x64xbf16>
      %cst = arith.constant dense<0.000000e+00> : vector<64x64xf32>
      %12 = tpu.matmul %9, %11, %cst {dimension_numbers = #tpu.dot_dimension_numbers<[1], [0], [0], [1], [0, 0, 1, 1], [], []>} : vector<64x512xbf16>, vector<512x64xbf16>, vector<64x64xf32> -> vector<64x64xf32>
      %13 = arith.index_cast %arg1 : i32 to index
      %c0_8 = arith.constant 0 : index
      %c0_9 = arith.constant 0 : index
      %14 = vector.load %arg7[%13, %c0_8, %c0_9] : memref<2x64x64xf32, #tpu.memory_space<vmem>>, vector<1x64x64xf32>
      %15 = vector.shape_cast %14 : vector<1x64x64xf32> to vector<64x64xf32>
      %16 = vector.shape_cast %12 : vector<64x64xf32> to vector<1x64x64xf32>
      tpu.vector_store %arg7[%13, %c0_8, %c0_9], %16 {strides = array<i32>} : memref<2x64x64xf32, #tpu.memory_space<vmem>>, vector<1x64x64xf32>,
      %c0_10 = arith.constant 0 : index
      %c0_11 = arith.constant 0 : index
      %17 = vector.load %arg8[%c0_10, %c0_11] : memref<64x1xf32, #tpu.memory_space<vmem>>, vector<64x1xf32>
      %cst_12 = arith.constant dense<0.000000e+00> : vector<64xf32>
      %18 = vector.multi_reduction <add>, %12, %cst_12 [1] : vector<64x64xf32> to vector<64xf32>
      %19 = vector.shape_cast %18 : vector<64xf32> to vector<64x1xf32>
      %20 = arith.addf %17, %19 : vector<64x1xf32>
      %c0_13 = arith.constant 0 : index
      %c0_14 = arith.constant 0 : index
      %21 = vector.load %arg8[%c0_13, %c0_14] : memref<64x1xf32, #tpu.memory_space<vmem>>, vector<64x1xf32>
      tpu.vector_store %arg8[%c0_13, %c0_14], %20 {strides = array<i32>} : memref<64x1xf32, #tpu.memory_space<vmem>>, vector<64x1xf32>,
    } else {
    }
    %c1_i32 = arith.constant 1 : i32
    %3 = arith.cmpi eq, %arg0, %c1_i32 : i32
    %4 = arith.extui %3 : i1 to i32
    %c0_i32_1 = arith.constant 0 : i32
    %5 = arith.cmpi ne, %4, %c0_i32_1 : i32
    scf.if %5 {
      %c0 = arith.constant 0 : index
      %c0_2 = arith.constant 0 : index
      %6 = vector.load %arg8[%c0, %c0_2] : memref<64x1xf32, #tpu.memory_space<vmem>>, vector<64x1xf32>
      %cst = arith.constant 7.812500e-03 : f32
      %7 = vector.broadcast %cst : f32 to vector<64x1xf32>
      %8 = arith.mulf %6, %7 : vector<64x1xf32>
      %c0_i32_3 = arith.constant 0 : i32
      %9 = arith.cmpi eq, %arg1, %c0_i32_3 : i32
      %10 = arith.extui %9 : i1 to i32
      %c0_i32_4 = arith.constant 0 : i32
      %11 = arith.cmpi ne, %10, %c0_i32_4 : i32
      scf.if %11 {
        %cst_19 = arith.constant 0.000000e+00 : f32
        %36 = vector.broadcast %cst_19 : f32 to vector<64x1xf32>
        %c0_20 = arith.constant 0 : index
        %c0_21 = arith.constant 0 : index
        %c0_22 = arith.constant 0 : index
        %37 = vector.load %arg7[%c0_20, %c0_21, %c0_22] : memref<2x64x64xf32, #tpu.memory_space<vmem>>, vector<1x64x64xf32>
        %38 = vector.shape_cast %37 : vector<1x64x64xf32> to vector<64x64xf32>
        %39 = vector.broadcast %8 : vector<64x1xf32> to vector<64x64xf32>
        %40 = arith.subf %38, %39 : vector<64x64xf32>
        %41 = arith.mulf %40, %40 : vector<64x64xf32>
        %cst_23 = arith.constant dense<0.000000e+00> : vector<64xf32>
        %42 = vector.multi_reduction <add>, %41, %cst_23 [1] : vector<64x64xf32> to vector<64xf32>
        %43 = vector.shape_cast %42 : vector<64xf32> to vector<64x1xf32>
        %44 = arith.addf %36, %43 : vector<64x1xf32>
        %c1 = arith.constant 1 : index
        %c0_24 = arith.constant 0 : index
        %c0_25 = arith.constant 0 : index
        %45 = vector.load %arg7[%c1, %c0_24, %c0_25] : memref<2x64x64xf32, #tpu.memory_space<vmem>>, vector<1x64x64xf32>
        %46 = vector.shape_cast %45 : vector<1x64x64xf32> to vector<64x64xf32>
        %47 = vector.broadcast %8 : vector<64x1xf32> to vector<64x64xf32>
        %48 = arith.subf %46, %47 : vector<64x64xf32>
        %49 = arith.mulf %48, %48 : vector<64x64xf32>
        %cst_26 = arith.constant dense<0.000000e+00> : vector<64xf32>
        %50 = vector.multi_reduction <add>, %49, %cst_26 [1] : vector<64x64xf32> to vector<64xf32>
        %51 = vector.shape_cast %50 : vector<64xf32> to vector<64x1xf32>
        %52 = arith.addf %44, %51 : vector<64x1xf32>
        %cst_27 = arith.constant 7.812500e-03 : f32
        %53 = vector.broadcast %cst_27 : f32 to vector<64x1xf32>
        %54 = arith.mulf %52, %53 : vector<64x1xf32>
        %c0_28 = arith.constant 0 : index
        %c0_29 = arith.constant 0 : index
        %55 = vector.load %arg9[%c0_28, %c0_29] : memref<64x1xf32, #tpu.memory_space<vmem>>, vector<64x1xf32>
        tpu.vector_store %arg9[%c0_28, %c0_29], %54 {strides = array<i32>} : memref<64x1xf32, #tpu.memory_space<vmem>>, vector<64x1xf32>,
      } else {
      }
      %c0_5 = arith.constant 0 : index
      %c0_6 = arith.constant 0 : index
      %12 = vector.load %arg4[%c0_5, %c0_6] : memref<64x1xf32, #tpu.memory_space<vmem>>, vector<64x1xf32>
      %c0_7 = arith.constant 0 : index
      %c0_8 = arith.constant 0 : index
      %13 = vector.load %arg9[%c0_7, %c0_8] : memref<64x1xf32, #tpu.memory_space<vmem>>, vector<64x1xf32>
      %cst_9 = arith.constant 9.99999974E-6 : f32
      %14 = vector.broadcast %cst_9 : f32 to vector<64x1xf32>
      %15 = arith.addf %13, %14 : vector<64x1xf32>
      %16 = math.rsqrt %15 : vector<64x1xf32>
      %17 = arith.mulf %12, %16 : vector<64x1xf32>
      %c0_10 = arith.constant 0 : index
      %c0_11 = arith.constant 0 : index
      %18 = vector.load %arg5[%c0_10, %c0_11] : memref<64x1xf32, #tpu.memory_space<vmem>>, vector<64x1xf32>
      %19 = arith.mulf %8, %17 : vector<64x1xf32>
      %20 = arith.subf %18, %19 : vector<64x1xf32>
      %21 = arith.index_cast %arg1 : i32 to index
      %c0_12 = arith.constant 0 : index
      %c0_13 = arith.constant 0 : index
      %22 = vector.load %arg7[%21, %c0_12, %c0_13] : memref<2x64x64xf32, #tpu.memory_space<vmem>>, vector<1x64x64xf32>
      %23 = vector.shape_cast %22 : vector<1x64x64xf32> to vector<64x64xf32>
      %24 = vector.broadcast %17 : vector<64x1xf32> to vector<64x64xf32>
      %25 = arith.mulf %23, %24 : vector<64x64xf32>
      %26 = vector.broadcast %20 : vector<64x1xf32> to vector<64x64xf32>
      %27 = arith.addf %25, %26 : vector<64x64xf32>
      %cst_14 = arith.constant 0.000000e+00 : f32
      %28 = vector.broadcast %cst_14 : f32 to vector<64x64xf32>
      %29 = arith.cmpf oge, %27, %28 : vector<64x64xf32>
      %cst_15 = arith.constant 2.000000e-01 : f32
      %30 = vector.broadcast %cst_15 : f32 to vector<64x64xf32>
      %31 = arith.mulf %30, %27 : vector<64x64xf32>
      %32 = arith.select %29, %27, %31 : vector<64x64xi1>, vector<64x64xf32>
      %c0_16 = arith.constant 0 : index
      %c0_17 = arith.constant 0 : index
      %c0_18 = arith.constant 0 : index
      %33 = vector.load %arg6[%c0_16, %c0_17, %c0_18] : memref<1x64x64xf32, #tpu.memory_space<vmem>>, vector<1x64x64xf32>
      %34 = vector.shape_cast %33 : vector<1x64x64xf32> to vector<64x64xf32>
      %35 = vector.shape_cast %32 : vector<64x64xf32> to vector<1x64x64xf32>
      tpu.vector_store %arg6[%c0_16, %c0_17, %c0_18], %35 {strides = array<i32>} : memref<1x64x64xf32, #tpu.memory_space<vmem>>, vector<1x64x64xf32>,
    } else {
    }
    return
  }
  func.func @transform_0(%arg0: i32, %arg1: i32) -> (i32, i32, i32) {
    %c1_i32 = arith.constant 1 : i32
    %0 = arith.subi %c1_i32, %arg0 : i32
    %1 = arith.muli %arg1, %0 : i32
    %c1_i32_0 = arith.constant 1 : i32
    %2 = arith.muli %c1_i32_0, %arg0 : i32
    %3 = arith.addi %1, %2 : i32
    %c0_i32 = arith.constant 0 : i32
    %c0_i32_1 = arith.constant 0 : i32
    %c0_i32_2 = arith.constant 0 : i32
    return %3, %c0_i32, %c0_i32_1 : i32, i32, i32
  }
  func.func @transform_1(%arg0: i32, %arg1: i32) -> (i32, i32) {
    %c0_i32 = arith.constant 0 : i32
    %c0_i32_0 = arith.constant 0 : i32
    %c0_i32_1 = arith.constant 0 : i32
    return %c0_i32, %c0_i32_0 : i32, i32
  }
  func.func @transform_2(%arg0: i32, %arg1: i32) -> (i32, i32) {
    %c0_i32 = arith.constant 0 : i32
    %c0_i32_0 = arith.constant 0 : i32
    %c0_i32_1 = arith.constant 0 : i32
    return %c0_i32, %c0_i32_0 : i32, i32
  }
  func.func @transform_3(%arg0: i32, %arg1: i32) -> (i32, i32) {
    %c0_i32 = arith.constant 0 : i32
    %c0_i32_0 = arith.constant 0 : i32
    %c0_i32_1 = arith.constant 0 : i32
    return %c0_i32, %c0_i32_0 : i32, i32
  }
  func.func @transform_4(%arg0: i32, %arg1: i32) -> (i32, i32, i32) {
    %0 = arith.muli %arg1, %arg0 : i32
    %c0_i32 = arith.constant 0 : i32
    %c0_i32_0 = arith.constant 0 : i32
    %c0_i32_1 = arith.constant 0 : i32
    return %0, %c0_i32, %c0_i32_0 : i32, i32, i32
  }
}

module attributes {stable_mosaic.version = 11 : i64} {
  func.func @_conv_bn_lrelu_heads_kernel(%arg0: i32, %arg1: i32, %arg2: memref<1x1024x16xbf16, #tpu.memory_space<vmem>>, %arg3: memref<128x1024xbf16, #tpu.memory_space<vmem>>, %arg4: memref<128x1xf32, #tpu.memory_space<vmem>>, %arg5: memref<128x1xf32, #tpu.memory_space<vmem>>, %arg6: memref<2x128x16xf32, #tpu.memory_space<vmem>>, %arg7: memref<1x1x128xf32, #tpu.memory_space<vmem>>, %arg8: memref<2x128x16xf32, #tpu.memory_space<vmem>>, %arg9: memref<128x1xf32, #tpu.memory_space<vmem>>, %arg10: memref<128x1xf32, #tpu.memory_space<vmem>>) attributes {dimension_semantics = [#tpu.dimension_semantics<arbitrary>, #tpu.dimension_semantics<arbitrary>], iteration_bounds = array<i64: 2, 2>, scalar_prefetch = 0 : i64, scratch_operands = 3 : i64, tpu.core_type = #tpu.core_type<tc>, window_params = [{transform_indices = @transform_0, window_bounds = array<i64: 1, 1024, 16>}, {pipeline_mode = #tpu.pipeline_mode<synchronous>, transform_indices = @transform_1, window_bounds = array<i64: 128, 1024>}, {pipeline_mode = #tpu.pipeline_mode<synchronous>, transform_indices = @transform_2, window_bounds = array<i64: 128, 1>}, {pipeline_mode = #tpu.pipeline_mode<synchronous>, transform_indices = @transform_3, window_bounds = array<i64: 128, 1>}, {pipeline_mode = #tpu.pipeline_mode<synchronous>, transform_indices = @transform_4, window_bounds = array<i64: 2, 128, 16>}, {transform_indices = @transform_5, window_bounds = array<i64: 1, 1, 128>}]} {
    %c0_i32 = arith.constant 0 : i32
    %0 = arith.cmpi eq, %arg0, %c0_i32 : i32
    %1 = arith.extui %0 : i1 to i32
    %c0_i32_0 = arith.constant 0 : i32
    %2 = arith.cmpi ne, %1, %c0_i32_0 : i32
    scf.if %2 {
      %c0_i32_2 = arith.constant 0 : i32
      %6 = arith.cmpi eq, %arg1, %c0_i32_2 : i32
      %7 = arith.extui %6 : i1 to i32
      %c0_i32_3 = arith.constant 0 : i32
      %8 = arith.cmpi ne, %7, %c0_i32_3 : i32
      scf.if %8 {
        %cst_15 = arith.constant 0.000000e+00 : f32
        %22 = vector.broadcast %cst_15 : f32 to vector<128x1xf32>
        %c0_16 = arith.constant 0 : index
        %c0_17 = arith.constant 0 : index
        %23 = vector.load %arg9[%c0_16, %c0_17] : memref<128x1xf32, #tpu.memory_space<vmem>>, vector<128x1xf32>
        tpu.vector_store %arg9[%c0_16, %c0_17], %22 {strides = array<i32>} : memref<128x1xf32, #tpu.memory_space<vmem>>, vector<128x1xf32>,
      } else {
      }
      %c0 = arith.constant 0 : index
      %c0_4 = arith.constant 0 : index
      %9 = vector.load %arg3[%c0, %c0_4] : memref<128x1024xbf16, #tpu.memory_space<vmem>>, vector<128x1024xbf16>
      %c0_5 = arith.constant 0 : index
      %c0_6 = arith.constant 0 : index
      %c0_7 = arith.constant 0 : index
      %10 = vector.load %arg2[%c0_5, %c0_6, %c0_7] : memref<1x1024x16xbf16, #tpu.memory_space<vmem>>, vector<1x1024x16xbf16>
      %11 = vector.shape_cast %10 : vector<1x1024x16xbf16> to vector<1024x16xbf16>
      %cst = arith.constant dense<0.000000e+00> : vector<128x16xf32>
      %12 = tpu.matmul %9, %11, %cst {dimension_numbers = #tpu.dot_dimension_numbers<[1], [0], [0], [1], [0, 0, 1, 1], [], []>} : vector<128x1024xbf16>, vector<1024x16xbf16>, vector<128x16xf32> -> vector<128x16xf32>
      %13 = arith.index_cast %arg1 : i32 to index
      %c0_8 = arith.constant 0 : index
      %c0_9 = arith.constant 0 : index
      %14 = vector.load %arg8[%13, %c0_8, %c0_9] : memref<2x128x16xf32, #tpu.memory_space<vmem>>, vector<1x128x16xf32>
      %15 = vector.shape_cast %14 : vector<1x128x16xf32> to vector<128x16xf32>
      %16 = vector.shape_cast %12 : vector<128x16xf32> to vector<1x128x16xf32>
      tpu.vector_store %arg8[%13, %c0_8, %c0_9], %16 {strides = array<i32>} : memref<2x128x16xf32, #tpu.memory_space<vmem>>, vector<1x128x16xf32>,
      %c0_10 = arith.constant 0 : index
      %c0_11 = arith.constant 0 : index
      %17 = vector.load %arg9[%c0_10, %c0_11] : memref<128x1xf32, #tpu.memory_space<vmem>>, vector<128x1xf32>
      %cst_12 = arith.constant dense<0.000000e+00> : vector<128xf32>
      %18 = vector.multi_reduction <add>, %12, %cst_12 [1] : vector<128x16xf32> to vector<128xf32>
      %19 = vector.shape_cast %18 : vector<128xf32> to vector<128x1xf32>
      %20 = arith.addf %17, %19 : vector<128x1xf32>
      %c0_13 = arith.constant 0 : index
      %c0_14 = arith.constant 0 : index
      %21 = vector.load %arg9[%c0_13, %c0_14] : memref<128x1xf32, #tpu.memory_space<vmem>>, vector<128x1xf32>
      tpu.vector_store %arg9[%c0_13, %c0_14], %20 {strides = array<i32>} : memref<128x1xf32, #tpu.memory_space<vmem>>, vector<128x1xf32>,
    } else {
    }
    %c1_i32 = arith.constant 1 : i32
    %3 = arith.cmpi eq, %arg0, %c1_i32 : i32
    %4 = arith.extui %3 : i1 to i32
    %c0_i32_1 = arith.constant 0 : i32
    %5 = arith.cmpi ne, %4, %c0_i32_1 : i32
    scf.if %5 {
      %c0 = arith.constant 0 : index
      %c0_2 = arith.constant 0 : index
      %6 = vector.load %arg9[%c0, %c0_2] : memref<128x1xf32, #tpu.memory_space<vmem>>, vector<128x1xf32>
      %cst = arith.constant 3.125000e-02 : f32
      %7 = vector.broadcast %cst : f32 to vector<128x1xf32>
      %8 = arith.mulf %6, %7 : vector<128x1xf32>
      %c0_i32_3 = arith.constant 0 : i32
      %9 = arith.cmpi eq, %arg1, %c0_i32_3 : i32
      %10 = arith.extui %9 : i1 to i32
      %c0_i32_4 = arith.constant 0 : i32
      %11 = arith.cmpi ne, %10, %c0_i32_4 : i32
      scf.if %11 {
        %cst_41 = arith.constant 0.000000e+00 : f32
        %90 = vector.broadcast %cst_41 : f32 to vector<128x1xf32>
        %c0_42 = arith.constant 0 : index
        %c0_43 = arith.constant 0 : index
        %c0_44 = arith.constant 0 : index
        %91 = vector.load %arg8[%c0_42, %c0_43, %c0_44] : memref<2x128x16xf32, #tpu.memory_space<vmem>>, vector<1x128x16xf32>
        %92 = vector.shape_cast %91 : vector<1x128x16xf32> to vector<128x16xf32>
        %93 = vector.broadcast %8 : vector<128x1xf32> to vector<128x16xf32>
        %94 = arith.subf %92, %93 : vector<128x16xf32>
        %95 = arith.mulf %94, %94 : vector<128x16xf32>
        %cst_45 = arith.constant dense<0.000000e+00> : vector<128xf32>
        %96 = vector.multi_reduction <add>, %95, %cst_45 [1] : vector<128x16xf32> to vector<128xf32>
        %97 = vector.shape_cast %96 : vector<128xf32> to vector<128x1xf32>
        %98 = arith.addf %90, %97 : vector<128x1xf32>
        %c1_46 = arith.constant 1 : index
        %c0_47 = arith.constant 0 : index
        %c0_48 = arith.constant 0 : index
        %99 = vector.load %arg8[%c1_46, %c0_47, %c0_48] : memref<2x128x16xf32, #tpu.memory_space<vmem>>, vector<1x128x16xf32>
        %100 = vector.shape_cast %99 : vector<1x128x16xf32> to vector<128x16xf32>
        %101 = vector.broadcast %8 : vector<128x1xf32> to vector<128x16xf32>
        %102 = arith.subf %100, %101 : vector<128x16xf32>
        %103 = arith.mulf %102, %102 : vector<128x16xf32>
        %cst_49 = arith.constant dense<0.000000e+00> : vector<128xf32>
        %104 = vector.multi_reduction <add>, %103, %cst_49 [1] : vector<128x16xf32> to vector<128xf32>
        %105 = vector.shape_cast %104 : vector<128xf32> to vector<128x1xf32>
        %106 = arith.addf %98, %105 : vector<128x1xf32>
        %cst_50 = arith.constant 3.125000e-02 : f32
        %107 = vector.broadcast %cst_50 : f32 to vector<128x1xf32>
        %108 = arith.mulf %106, %107 : vector<128x1xf32>
        %c0_51 = arith.constant 0 : index
        %c0_52 = arith.constant 0 : index
        %109 = vector.load %arg10[%c0_51, %c0_52] : memref<128x1xf32, #tpu.memory_space<vmem>>, vector<128x1xf32>
        tpu.vector_store %arg10[%c0_51, %c0_52], %108 {strides = array<i32>} : memref<128x1xf32, #tpu.memory_space<vmem>>, vector<128x1xf32>,
      } else {
      }
      %c0_5 = arith.constant 0 : index
      %c0_6 = arith.constant 0 : index
      %12 = vector.load %arg4[%c0_5, %c0_6] : memref<128x1xf32, #tpu.memory_space<vmem>>, vector<128x1xf32>
      %c0_7 = arith.constant 0 : index
      %c0_8 = arith.constant 0 : index
      %13 = vector.load %arg10[%c0_7, %c0_8] : memref<128x1xf32, #tpu.memory_space<vmem>>, vector<128x1xf32>
      %cst_9 = arith.constant 9.99999974E-6 : f32
      %14 = vector.broadcast %cst_9 : f32 to vector<128x1xf32>
      %15 = arith.addf %13, %14 : vector<128x1xf32>
      %16 = math.rsqrt %15 : vector<128x1xf32>
      %17 = arith.mulf %12, %16 : vector<128x1xf32>
      %c0_10 = arith.constant 0 : index
      %c0_11 = arith.constant 0 : index
      %18 = vector.load %arg5[%c0_10, %c0_11] : memref<128x1xf32, #tpu.memory_space<vmem>>, vector<128x1xf32>
      %19 = arith.mulf %8, %17 : vector<128x1xf32>
      %20 = arith.subf %18, %19 : vector<128x1xf32>
      %21 = arith.index_cast %arg1 : i32 to index
      %c0_12 = arith.constant 0 : index
      %c0_13 = arith.constant 0 : index
      %22 = vector.load %arg8[%21, %c0_12, %c0_13] : memref<2x128x16xf32, #tpu.memory_space<vmem>>, vector<1x128x16xf32>
      %23 = vector.shape_cast %22 : vector<1x128x16xf32> to vector<128x16xf32>
      %24 = vector.broadcast %17 : vector<128x1xf32> to vector<128x16xf32>
      %25 = arith.mulf %23, %24 : vector<128x16xf32>
      %26 = vector.broadcast %20 : vector<128x1xf32> to vector<128x16xf32>
      %27 = arith.addf %25, %26 : vector<128x16xf32>
      %cst_14 = arith.constant 0.000000e+00 : f32
      %28 = vector.broadcast %cst_14 : f32 to vector<128x16xf32>
      %29 = arith.cmpf oge, %27, %28 : vector<128x16xf32>
      %cst_15 = arith.constant 2.000000e-01 : f32
      %30 = vector.broadcast %cst_15 : f32 to vector<128x16xf32>
      %31 = arith.mulf %30, %27 : vector<128x16xf32>
      %32 = arith.select %29, %27, %31 : vector<128x16xi1>, vector<128x16xf32>
      %c0_16 = arith.constant 0 : index
      %c0_17 = arith.constant 0 : index
      %c0_18 = arith.constant 0 : index
      %33 = vector.load %arg6[%c0_16, %c0_17, %c0_18] : memref<2x128x16xf32, #tpu.memory_space<vmem>>, vector<1x128x16xf32>
      %34 = vector.shape_cast %33 : vector<1x128x16xf32> to vector<128x16xf32>
      %35 = arith.mulf %34, %32 : vector<128x16xf32>
      %cst_19 = arith.constant dense<0.000000e+00> : vector<16xf32>
      %36 = vector.multi_reduction <add>, %35, %cst_19 [0] : vector<128x16xf32> to vector<16xf32>
      %37 = vector.shape_cast %36 : vector<16xf32> to vector<1x16xf32>
      %cst_20 = arith.constant dense<0.000000e+00> : vector<1xf32>
      %38 = vector.multi_reduction <add>, %37, %cst_20 [1] : vector<1x16xf32> to vector<1xf32>
      %39 = vector.shape_cast %38 : vector<1xf32> to vector<1x1xf32>
      %c1 = arith.constant 1 : index
      %c0_21 = arith.constant 0 : index
      %c0_22 = arith.constant 0 : index
      %40 = vector.load %arg6[%c1, %c0_21, %c0_22] : memref<2x128x16xf32, #tpu.memory_space<vmem>>, vector<1x128x16xf32>
      %41 = vector.shape_cast %40 : vector<1x128x16xf32> to vector<128x16xf32>
      %42 = arith.mulf %41, %32 : vector<128x16xf32>
      %cst_23 = arith.constant dense<0.000000e+00> : vector<16xf32>
      %43 = vector.multi_reduction <add>, %42, %cst_23 [0] : vector<128x16xf32> to vector<16xf32>
      %44 = vector.shape_cast %43 : vector<16xf32> to vector<1x16xf32>
      %cst_24 = arith.constant dense<0.000000e+00> : vector<1xf32>
      %45 = vector.multi_reduction <add>, %44, %cst_24 [1] : vector<1x16xf32> to vector<1xf32>
      %46 = vector.shape_cast %45 : vector<1xf32> to vector<1x1xf32>
      %47 = tpu.iota {dimensions = array<i32: 1>} : vector<1x128xi32>
      %c0_i32_25 = arith.constant 0 : i32
      %48 = vector.broadcast %c0_i32_25 : i32 to vector<1x128xi32>
      %49 = arith.cmpi eq, %47, %48 : vector<1x128xi32>
      %50 = math.absf %39 : vector<1x1xf32>
      %cst_26 = arith.constant 0.000000e+00 : f32
      %51 = vector.broadcast %cst_26 : f32 to vector<1x1xf32>
      %52 = arith.subf %51, %50 : vector<1x1xf32>
      %53 = math.exp %52 : vector<1x1xf32>
      %cst_27 = arith.constant 0.000000e+00 : f32
      %54 = vector.broadcast %cst_27 : f32 to vector<1x1xf32>
      %55 = arith.cmpf oge, %39, %54 : vector<1x1xf32>
      %cst_28 = arith.constant 1.000000e+00 : f32
      %56 = vector.broadcast %cst_28 : f32 to vector<1x1xf32>
      %57 = arith.addf %56, %53 : vector<1x1xf32>
      %cst_29 = arith.constant 1.000000e+00 : f32
      %58 = vector.broadcast %cst_29 : f32 to vector<1x1xf32>
      %59 = arith.divf %58, %57 : vector<1x1xf32>
      %cst_30 = arith.constant 1.000000e+00 : f32
      %60 = vector.broadcast %cst_30 : f32 to vector<1x1xf32>
      %61 = arith.addf %60, %53 : vector<1x1xf32>
      %62 = arith.divf %53, %61 : vector<1x1xf32>
      %63 = arith.select %55, %59, %62 : vector<1x1xi1>, vector<1x1xf32>
      %c1_i32_31 = arith.constant 1 : i32
      %64 = vector.broadcast %c1_i32_31 : i32 to vector<1x128xi32>
      %65 = arith.cmpi eq, %47, %64 : vector<1x128xi32>
      %66 = math.absf %46 : vector<1x1xf32>
      %cst_32 = arith.constant 0.000000e+00 : f32
      %67 = vector.broadcast %cst_32 : f32 to vector<1x1xf32>
      %68 = arith.subf %67, %66 : vector<1x1xf32>
      %69 = math.exp %68 : vector<1x1xf32>
      %cst_33 = arith.constant 0.000000e+00 : f32
      %70 = vector.broadcast %cst_33 : f32 to vector<1x1xf32>
      %71 = arith.cmpf oge, %46, %70 : vector<1x1xf32>
      %cst_34 = arith.constant 1.000000e+00 : f32
      %72 = vector.broadcast %cst_34 : f32 to vector<1x1xf32>
      %73 = arith.addf %72, %69 : vector<1x1xf32>
      %cst_35 = arith.constant 1.000000e+00 : f32
      %74 = vector.broadcast %cst_35 : f32 to vector<1x1xf32>
      %75 = arith.divf %74, %73 : vector<1x1xf32>
      %cst_36 = arith.constant 1.000000e+00 : f32
      %76 = vector.broadcast %cst_36 : f32 to vector<1x1xf32>
      %77 = arith.addf %76, %69 : vector<1x1xf32>
      %78 = arith.divf %69, %77 : vector<1x1xf32>
      %79 = arith.select %71, %75, %78 : vector<1x1xi1>, vector<1x1xf32>
      %cst_37 = arith.constant 0.000000e+00 : f32
      %80 = vector.shape_cast %79 : vector<1x1xf32> to vector<1x1xf32>
      %81 = vector.broadcast %80 : vector<1x1xf32> to vector<1x128xf32>
      %82 = vector.broadcast %cst_37 : f32 to vector<1x128xf32>
      %83 = arith.select %65, %81, %82 : vector<1x128xi1>, vector<1x128xf32>
      %84 = vector.shape_cast %63 : vector<1x1xf32> to vector<1x1xf32>
      %85 = vector.broadcast %84 : vector<1x1xf32> to vector<1x128xf32>
      %86 = arith.select %49, %85, %83 : vector<1x128xi1>, vector<1x128xf32>
      %c0_38 = arith.constant 0 : index
      %c0_39 = arith.constant 0 : index
      %c0_40 = arith.constant 0 : index
      %87 = vector.load %arg7[%c0_38, %c0_39, %c0_40] : memref<1x1x128xf32, #tpu.memory_space<vmem>>, vector<1x1x128xf32>
      %88 = vector.shape_cast %87 : vector<1x1x128xf32> to vector<1x128xf32>
      %89 = vector.shape_cast %86 : vector<1x128xf32> to vector<1x1x128xf32>
      tpu.vector_store %arg7[%c0_38, %c0_39, %c0_40], %89 {strides = array<i32>} : memref<1x1x128xf32, #tpu.memory_space<vmem>>, vector<1x1x128xf32>,
    } else {
    }
    return
  }
  func.func @transform_0(%arg0: i32, %arg1: i32) -> (i32, i32, i32) {
    %c1_i32 = arith.constant 1 : i32
    %0 = arith.subi %c1_i32, %arg0 : i32
    %1 = arith.muli %arg1, %0 : i32
    %c1_i32_0 = arith.constant 1 : i32
    %2 = arith.muli %c1_i32_0, %arg0 : i32
    %3 = arith.addi %1, %2 : i32
    %c0_i32 = arith.constant 0 : i32
    %c0_i32_1 = arith.constant 0 : i32
    %c0_i32_2 = arith.constant 0 : i32
    return %3, %c0_i32, %c0_i32_1 : i32, i32, i32
  }
  func.func @transform_1(%arg0: i32, %arg1: i32) -> (i32, i32) {
    %c0_i32 = arith.constant 0 : i32
    %c0_i32_0 = arith.constant 0 : i32
    %c0_i32_1 = arith.constant 0 : i32
    return %c0_i32, %c0_i32_0 : i32, i32
  }
  func.func @transform_2(%arg0: i32, %arg1: i32) -> (i32, i32) {
    %c0_i32 = arith.constant 0 : i32
    %c0_i32_0 = arith.constant 0 : i32
    %c0_i32_1 = arith.constant 0 : i32
    return %c0_i32, %c0_i32_0 : i32, i32
  }
  func.func @transform_3(%arg0: i32, %arg1: i32) -> (i32, i32) {
    %c0_i32 = arith.constant 0 : i32
    %c0_i32_0 = arith.constant 0 : i32
    %c0_i32_1 = arith.constant 0 : i32
    return %c0_i32, %c0_i32_0 : i32, i32
  }
  func.func @transform_4(%arg0: i32, %arg1: i32) -> (i32, i32, i32) {
    %c0_i32 = arith.constant 0 : i32
    %c0_i32_0 = arith.constant 0 : i32
    %c0_i32_1 = arith.constant 0 : i32
    %c0_i32_2 = arith.constant 0 : i32
    return %c0_i32, %c0_i32_0, %c0_i32_1 : i32, i32, i32
  }
  func.func @transform_5(%arg0: i32, %arg1: i32) -> (i32, i32, i32) {
    %0 = arith.muli %arg1, %arg0 : i32
    %c0_i32 = arith.constant 0 : i32
    %c0_i32_0 = arith.constant 0 : i32
    %c0_i32_1 = arith.constant 0 : i32
    return %0, %c0_i32, %c0_i32_0 : i32, i32, i32
  }
}

</mosaic_0001>

<llo_original>
// kernel: discriminator_forward.4
$region0: #{discriminator_forward.4}
  #allocation0 [shape = 'u32[]', space=smem, size = 0x4, offset = 0x4, fixed_abs, tag = 'smem constant byte address 0x4 - core index']
  #allocation1 [shape = 'u32[72,128]{1,0:T(1,128)}', space=vmem, size = 0x9000, scoped, tag = 'internal scratch']
  %s0 = inlined_call_operand.vmem [shape: bf16[2,48,1024], index: 0, kind: input, shape index: {}]
  %s1 = inlined_call_operand.vmem [shape: bf16[16,48], index: 1, kind: input, shape index: {}]
  %s2 = inlined_call_operand.vmem [shape: f32[2,16,1024], index: 2, kind: output, shape index: {}]
  %s3 = sld [smem:[#allocation0]]
  $region41: #{discriminator_forward.4} parent=0
    _
  %s5 = ssub.s32 1, %s3
  %s6 = scalar_select 0, %s5, %s3
  loop: start=0, step=1, limit=4
  $region2: #{discriminator_forward.4} parent=0 // loop_pre_header
    _
  $region3: #{discriminator_forward.4} parent=0 // loop_header
    %s8 = sphi 0, %s12
    %p9 = scmp.ge.s32.totalorder %s8, 4
    %s18 = sphi 0, %s20
    %s21 = sphi 0, %s18
    %s22 = sphi 0, %s21
    %s38 = sphi 0, %s22
    %s42 = sphi 0, %s42
    %s44 = sphi 0, %s42
    %s45 = sphi 0, %s44
    %s59 = sphi 0, %s45
    %s65 = sphi 0, %s67
    %s68 = sphi 0, %s65
    %s69 = sphi 0, %s68
    %s85 = sphi 0, %s69
  $region4: #{discriminator_forward.4} parent=0 // loop_header_branch
    %11 = sbr.rel (%p9) target = $region8
  $region5: #{discriminator_forward.4} parent=0 // loop_body
    %s13 = ssub.s32 %s8, 1
    %s14 = ssub.s32 %s8, 2
    %s15 = sadd.s32 %s8, 1
    %s16 = ssub.s32 %s8, %s15
    %p17 = scmp.eq.s32.totalorder %s16, 0
    %s19 = sadd.s32 %s18, 1
    %s20 = scalar_select %p17, %s18, %s19
    %p23 = pneg %p17
    %p24 = scmp.eq.s32.totalorder %s8, 1
    %p25 = por %p23, %p24
    %p26 = scmp.ne.s32.totalorder %s18, %s21
    %p27 = scmp.eq.s32.totalorder %s8, 0
    %p28 = por %p26, %p27
    %p29 = scmp.ne.s32.totalorder %s18, %s21
    %p30 = scmp.eq.s32.totalorder %s13, 1
    %p31 = por %p29, %p30
    %p32 = scmp.ne.s32.totalorder %s21, %s22
    %p33 = scmp.eq.s32.totalorder %s13, 0
    %p34 = por %p32, %p33
    %p35 = scmp.ne.s32.totalorder %s21, %s22
    %p36 = scmp.eq.s32.totalorder %s14, 1
    %p37 = por %p35, %p36
    %p39 = scmp.ne.s32.totalorder %s22, %s38
    %p40 = scmp.eq.s32.totalorder %s14, 0
    %p41 = por %p39, %p40
    %s43 = sadd.s32 %s42, 1
    %p46 = scmp.eq.s32.totalorder %s8, 1
    %p47 = scmp.ne.s32.totalorder %s42, %s44
    %p48 = scmp.eq.s32.totalorder %s8, 0
    %p49 = por %p47, %p48
    %p50 = scmp.ne.s32.totalorder %s42, %s44
    %p51 = scmp.eq.s32.totalorder %s13, 1
    %p52 = por %p50, %p51
    %p53 = scmp.ne.s32.totalorder %s44, %s45
    %p54 = scmp.eq.s32.totalorder %s13, 0
    %p55 = por %p53, %p54
    %p56 = scmp.ne.s32.totalorder %s44, %s45
    %p57 = scmp.eq.s32.totalorder %s14, 1
    %p58 = por %p56, %p57
    %p60 = scmp.ne.s32.totalorder %s45, %s59
    %p61 = scmp.eq.s32.totalorder %s14, 0
    %p62 = por %p60, %p61
    %s63 = ssub.s32 %s8, %s15
    %p64 = scmp.eq.s32.totalorder %s63, 0
    %s66 = sadd.s32 %s65, 1
    %s67 = scalar_select %p64, %s65, %s66
    %p70 = pneg %p64
    %p71 = scmp.eq.s32.totalorder %s8, 1
    %p72 = por %p70, %p71
    %p73 = scmp.ne.s32.totalorder %s65, %s68
    %p74 = scmp.eq.s32.totalorder %s8, 0
    %p75 = por %p73, %p74
    %p76 = scmp.ne.s32.totalorder %s65, %s68
    %p77 = scmp.eq.s32.totalorder %s13, 1
    %p78 = por %p76, %p77
    %p79 = scmp.ne.s32.totalorder %s68, %s69
    %p80 = scmp.eq.s32.totalorder %s13, 0
    %p81 = por %p79, %p80
    %p82 = scmp.ne.s32.totalorder %s68, %s69
    %p83 = scmp.eq.s32.totalorder %s14, 1
    %p84 = por %p82, %p83
    %p86 = scmp.ne.s32.totalorder %s69, %s85
    %p87 = scmp.eq.s32.totalorder %s14, 0
    %p88 = por %p86, %p87
    %p89 = scmp.le.s32.totalorder 1, %s8
    %p90 = scmp.lt.s32.totalorder %s8, 3
    %p91 = pnand %p89, %p90
    %p92 = pneg %p91
    // Predicated region
    $region9: #{discriminator_forward.4} parent=5 // pred_check
      _
    $region10: #{discriminator_forward.4} parent=5 // pred_check_branch
      %94 = sbr.rel (%p91) target = $region12
    $region11: #{discriminator_forward.4} parent=5 // pred_region
      %s95 = ssub.s32 %s8, 1
      // Predicated region
      $region13: #{discriminator_forward.4} parent=11 // pred_check
        %p96 = pneg %p55
      $region14: #{discriminator_forward.4} parent=11 // pred_check_branch
        %98 = sbr.rel (%p96) target = $region16
      $region15: #{discriminator_forward.4} parent=11 // pred_region
        _
      $region16: #{discriminator_forward.4} parent=11 // pred_fallthru
        _
    $region12: #{discriminator_forward.4} parent=5 // pred_fallthru
      _
    %p99 = scmp.lt.s32.totalorder %s8, 2
    // Predicated region
    $region17: #{discriminator_forward.4} parent=5 // pred_check
      %p100 = pneg %p99
    $region18: #{discriminator_forward.4} parent=5 // pred_check_branch
      %102 = sbr.rel (%p100) target = $region20
    $region19: #{discriminator_forward.4} parent=5 // pred_region
      // Predicated region
      $region21: #{discriminator_forward.4} parent=19 // pred_check
        %p103 = pneg %p28
      $region22: #{discriminator_forward.4} parent=19 // pred_check_branch
        %105 = sbr.rel (%p103) target = $region24
      $region23: #{discriminator_forward.4} parent=19 // pred_region
        %p106 = scmp.lt.s32.totalorder %s8, 1
        %s107 = scalar_select %p106, %s8, 1
        %s108 = smul.addr %s107, 48
        %s109 = smul.addr %s108, 4
        %s110 = scalar_lea.vmem %s0, %s109
      $region24: #{discriminator_forward.4} parent=19 // pred_fallthru
        _
    $region20: #{discriminator_forward.4} parent=5 // pred_fallthru
      _
    %p111 = scmp.le.s32.totalorder 1, %s8
    %p112 = scmp.lt.s32.totalorder %s8, 3
    %p113 = pnand %p111, %p112
    %p114 = pneg %p113
    // Predicated region
    $region25: #{discriminator_forward.4} parent=5 // pred_check
      _
    $region26: #{discriminator_forward.4} parent=5 // pred_check_branch
      %116 = sbr.rel (%p113) target = $region28
    $region27: #{discriminator_forward.4} parent=5 // pred_region
      %s117 = ssub.s32 %s8, 1
      %p118 = scmp.lt.s32.totalorder %s13, 1
      %s119 = scalar_select %p118, %s13, 1
      %s120 = smul.addr %s119, 48
      %s121 = smul.addr %s120, 4
      %s122 = scalar_lea.vmem %s0, %s121
      %p123 = pneg %p34
      %p124 = pneg %p31
      %p125 = pneg %p55
      %p126 = pneg %p52
      %p127 = pneg %p81
      %p128 = pneg %p78
      %p129 = scmp.lt.s32.totalorder %s13, 1
      %s130 = scalar_select %p129, %s13, 1
      %s131 = smul.addr %s130, 16
      %s132 = smul.addr %s131, 8
      %s133 = scalar_lea.vmem %s2, %s132
      %p134 = scmp.lt.s32.totalorder %s13, 1
      %s135 = scalar_select %p134, %s13, 1
      %s136 = smul.addr %s135, 48
      %s137 = smul.addr %s136, 4
      %s138 = scalar_lea.vmem %s0, %s137
      %p139 = scmp.lt.s32.totalorder %s13, 1
      %s140 = scalar_select %p139, %s13, 1
      %s141 = smul.addr %s140, 16
      %s142 = smul.addr %s141, 8
      %s143 = scalar_lea.vmem %s2, %s142
      %v145 = vld [vmem:[%s1] sm:$0xf]
      %v146 = vld [vmem:[%s1 + $0x4] sm:$0xf]
      %v147 = vld [vmem:[%s138] sm:$0xff]
      %v148 = vld [vmem:[%s138 + $0x8] sm:$0xff]
      %v149 = vld [vmem:[%s138 + $0x10] sm:$0xff]
      %v150 = vld [vmem:[%s138 + $0x18] sm:$0xff]
      %v151 = vld [vmem:[%s138 + $0x20] sm:$0xff]
      %v152 = vld [vmem:[%s138 + $0x28] sm:$0xff]
      %v153 = vld [vmem:[%s138 + $0x30] sm:$0xff]
      %v154 = vld [vmem:[%s138 + $0x38] sm:$0xff]
      %v155 = vld [vmem:[%s138 + $0x40] sm:$0xff]
      %v156 = vld [vmem:[%s138 + $0x48] sm:$0xff]
      %v157 = vld [vmem:[%s138 + $0x50] sm:$0xff]
      %v158 = vld [vmem:[%s138 + $0x58] sm:$0xff]
      %v159 = vld [vmem:[%s138 + $0x60] sm:$0xff]
      %v160 = vld [vmem:[%s138 + $0x68] sm:$0xff]
      %v161 = vld [vmem:[%s138 + $0x70] sm:$0xff]
      %v162 = vld [vmem:[%s138 + $0x78] sm:$0xff]
      %v163 = vld [vmem:[%s138 + $0x80] sm:$0xff]
      %v164 = vld [vmem:[%s138 + $0x88] sm:$0xff]
      %v165 = vld [vmem:[%s138 + $0x90] sm:$0xff]
      %v166 = vld [vmem:[%s138 + $0x98] sm:$0xff]
      %v167 = vld [vmem:[%s138 + $0xa0] sm:$0xff]
      %v168 = vld [vmem:[%s138 + $0xa8] sm:$0xff]
      %v169 = vld [vmem:[%s138 + $0xb0] sm:$0xff]
      %v170 = vld [vmem:[%s138 + $0xb8] sm:$0xff]
      %v173 = vunpack.c.l.b16 %v145
      %v174 = vunpack.c.l.b16 %v146
      %v175 = vpack.c.b16 %v174, %v173
      %v200 = vunpack.c.l.b16 %v147
      %v201 = vunpack.c.h.b16 %v147
      %v202 = vunpack.c.l.b16 %v148
      %v203 = vunpack.c.h.b16 %v148
      %v204 = vunpack.c.l.b16 %v149
      %v205 = vunpack.c.h.b16 %v149
      %v206 = vunpack.c.l.b16 %v150
      %v207 = vunpack.c.h.b16 %v150
      %v208 = vunpack.c.l.b16 %v151
      %v209 = vunpack.c.h.b16 %v151
      %v210 = vunpack.c.l.b16 %v152
      %v211 = vunpack.c.h.b16 %v152
      %v212 = vunpack.c.l.b16 %v153
      %v213 = vunpack.c.h.b16 %v153
      %v214 = vunpack.c.l.b16 %v154
      %v215 = vunpack.c.h.b16 %v154
      %v216 = vunpack.c.l.b16 %v155
      %v217 = vunpack.c.h.b16 %v155
      %v218 = vunpack.c.l.b16 %v156
      %v219 = vunpack.c.h.b16 %v156
      %v220 = vunpack.c.l.b16 %v157
      %v221 = vunpack.c.h.b16 %v157
      %v222 = vunpack.c.l.b16 %v158
      %v223 = vunpack.c.h.b16 %v158
      %v224 = vunpack.c.l.b16 %v159
      %v225 = vunpack.c.h.b16 %v159
      %v226 = vunpack.c.l.b16 %v160
      %v227 = vunpack.c.h.b16 %v160
      %v228 = vunpack.c.l.b16 %v161
      %v229 = vunpack.c.h.b16 %v161
      %v230 = vunpack.c.l.b16 %v162
      %v231 = vunpack.c.h.b16 %v162
      %v232 = vunpack.c.l.b16 %v163
      %v233 = vunpack.c.h.b16 %v163
      %v234 = vunpack.c.l.b16 %v164
      %v235 = vunpack.c.h.b16 %v164
      %v236 = vunpack.c.l.b16 %v165
      %v237 = vunpack.c.h.b16 %v165
      %v238 = vunpack.c.l.b16 %v166
      %v239 = vunpack.c.h.b16 %v166
      %v240 = vunpack.c.l.b16 %v167
      %v241 = vunpack.c.h.b16 %v167
      %v242 = vunpack.c.l.b16 %v168
      %v243 = vunpack.c.h.b16 %v168
      %v244 = vunpack.c.l.b16 %v169
      %v245 = vunpack.c.h.b16 %v169
      %v246 = vunpack.c.l.b16 %v170
      %v247 = vunpack.c.h.b16 %v170
      %v248 = vpack.c.b16 %v208, %v200
      %v249 = vpack.c.b16 %v209, %v201
      %v250 = vpack.c.b16 %v210, %v202
      %v251 = vpack.c.b16 %v211, %v203
      %v252 = vpack.c.b16 %v212, %v204
      %v253 = vpack.c.b16 %v213, %v205
      %v254 = vpack.c.b16 %v214, %v206
      %v255 = vpack.c.b16 %v215, %v207
      %v256 = vpack.c.b16 %v224, %v216
      %v257 = vpack.c.b16 %v225, %v217
      %v258 = vpack.c.b16 %v226, %v218
      %v259 = vpack.c.b16 %v227, %v219
      %v260 = vpack.c.b16 %v228, %v220
      %v261 = vpack.c.b16 %v229, %v221
      %v262 = vpack.c.b16 %v230, %v222
      %v263 = vpack.c.b16 %v231, %v223
      %v264 = vpack.c.b16 %v240, %v232
      %v265 = vpack.c.b16 %v241, %v233
      %v266 = vpack.c.b16 %v242, %v234
      %v267 = vpack.c.b16 %v243, %v235
      %v268 = vpack.c.b16 %v244, %v236
      %v269 = vpack.c.b16 %v245, %v237
      %v270 = vpack.c.b16 %v246, %v238
      %v271 = vpack.c.b16 %v247, %v239
      %vm296 = vcmask 392192
      %v298 = vsel %vm296, %v175, 0
      %300 = vmatpush.bf16.msra.mxu0 0
      %301 = vmatpush.bf16.msra.mxu0 0
      %302 = vmatpush.bf16.msra.mxu0 0
      %303 = vmatpush.bf16.msra.mxu0 0
      %304 = vmatpush.bf16.msra.mxu0 0
      %305 = vmatpush.bf16.msra.mxu0 %v264
      %306 = vmatpush.bf16.msra.mxu0 %v256
      %307 = vmatpush.bf16.msra.mxu0 %v248
      %308 = vmatmul.bf16.gmra.mxu0 %v298
      %v309 = vpop.f32.mrf.mxu0
      %v310 = vadd.f32 0.0, %v309
      %v311 = vpop.f32.mrf.mxu0
      %v312 = vadd.f32 0.0, %v311
      %313 = vdwg.mxu0
      %314 = vmatpush.bf16.msra.mxu0 0
      %315 = vmatpush.bf16.msra.mxu0 0
      %316 = vmatpush.bf16.msra.mxu0 0
      %317 = vmatpush.bf16.msra.mxu0 0
      %318 = vmatpush.bf16.msra.mxu0 0
      %319 = vmatpush.bf16.msra.mxu0 %v265
      %320 = vmatpush.bf16.msra.mxu0 %v257
      %321 = vmatpush.bf16.msra.mxu0 %v249
      %322 = vmatmul.bf16.gmra.mxu0 %v298
      %v323 = vpop.f32.mrf.mxu0
      %v324 = vadd.f32 0.0, %v323
      %v325 = vpop.f32.mrf.mxu0
      %v326 = vadd.f32 0.0, %v325
      %327 = vdwg.mxu0
      %328 = vmatpush.bf16.msra.mxu0 0
      %329 = vmatpush.bf16.msra.mxu0 0
      %330 = vmatpush.bf16.msra.mxu0 0
      %331 = vmatpush.bf16.msra.mxu0 0
      %332 = vmatpush.bf16.msra.mxu0 0
      %333 = vmatpush.bf16.msra.mxu0 %v266
      %334 = vmatpush.bf16.msra.mxu0 %v258
      %335 = vmatpush.bf16.msra.mxu0 %v250
      %336 = vmatmul.bf16.gmra.mxu0 %v298
      %v337 = vpop.f32.mrf.mxu0
      %v338 = vadd.f32 0.0, %v337
      %v339 = vpop.f32.mrf.mxu0
      %v340 = vadd.f32 0.0, %v339
      %341 = vdwg.mxu0
      %342 = vmatpush.bf16.msra.mxu0 0
      %343 = vmatpush.bf16.msra.mxu0 0
      %344 = vmatpush.bf16.msra.mxu0 0
      %345 = vmatpush.bf16.msra.mxu0 0
      %346 = vmatpush.bf16.msra.mxu0 0
      %347 = vmatpush.bf16.msra.mxu0 %v267
      %348 = vmatpush.bf16.msra.mxu0 %v259
      %349 = vmatpush.bf16.msra.mxu0 %v251
      %350 = vmatmul.bf16.gmra.mxu0 %v298
      %v351 = vpop.f32.mrf.mxu0
      %v352 = vadd.f32 0.0, %v351
      %v353 = vpop.f32.mrf.mxu0
      %v354 = vadd.f32 0.0, %v353
      %355 = vdwg.mxu0
      %356 = vmatpush.bf16.msra.mxu0 0
      %357 = vmatpush.bf16.msra.mxu0 0
      %358 = vmatpush.bf16.msra.mxu0 0
      %359 = vmatpush.bf16.msra.mxu0 0
      %360 = vmatpush.bf16.msra.mxu0 0
      %361 = vmatpush.bf16.msra.mxu0 %v268
      %362 = vmatpush.bf16.msra.mxu0 %v260
      %363 = vmatpush.bf16.msra.mxu0 %v252
      %364 = vmatmul.bf16.gmra.mxu0 %v298
      %v365 = vpop.f32.mrf.mxu0
      %v366 = vadd.f32 0.0, %v365
      %v367 = vpop.f32.mrf.mxu0
      %v368 = vadd.f32 0.0, %v367
      %369 = vdwg.mxu0
      %370 = vmatpush.bf16.msra.mxu0 0
      %371 = vmatpush.bf16.msra.mxu0 0
      %372 = vmatpush.bf16.msra.mxu0 0
      %373 = vmatpush.bf16.msra.mxu0 0
      %374 = vmatpush.bf16.msra.mxu0 0
      %375 = vmatpush.bf16.msra.mxu0 %v269
      %376 = vmatpush.bf16.msra.mxu0 %v261
      %377 = vmatpush.bf16.msra.mxu0 %v253
      %378 = vmatmul.bf16.gmra.mxu0 %v298
      %v379 = vpop.f32.mrf.mxu0
      %v380 = vadd.f32 0.0, %v379
      %v381 = vpop.f32.mrf.mxu0
      %v382 = vadd.f32 0.0, %v381
      %383 = vdwg.mxu0
      %384 = vmatpush.bf16.msra.mxu0 0
      %385 = vmatpush.bf16.msra.mxu0 0
      %386 = vmatpush.bf16.msra.mxu0 0
      %387 = vmatpush.bf16.msra.mxu0 0
      %388 = vmatpush.bf16.msra.mxu0 0
      %389 = vmatpush.bf16.msra.mxu0 %v270
      %390 = vmatpush.bf16.msra.mxu0 %v262
      %391 = vmatpush.bf16.msra.mxu0 %v254
      %392 = vmatmul.bf16.gmra.mxu0 %v298
      %v393 = vpop.f32.mrf.mxu0
      %v394 = vadd.f32 0.0, %v393
      %v395 = vpop.f32.mrf.mxu0
      %v396 = vadd.f32 0.0, %v395
      %397 = vdwg.mxu0
      %398 = vmatpush.bf16.msra.mxu0 0
      %399 = vmatpush.bf16.msra.mxu0 0
      %400 = vmatpush.bf16.msra.mxu0 0
      %401 = vmatpush.bf16.msra.mxu0 0
      %402 = vmatpush.bf16.msra.mxu0 0
      %403 = vmatpush.bf16.msra.mxu0 %v271
      %404 = vmatpush.bf16.msra.mxu0 %v263
      %405 = vmatpush.bf16.msra.mxu0 %v255
      %406 = vmatmul.bf16.gmra.mxu0 %v298
      %v407 = vpop.f32.mrf.mxu0
      %v408 = vadd.f32 0.0, %v407
      %v409 = vpop.f32.mrf.mxu0
      %v410 = vadd.f32 0.0, %v409
      %411 = vdwg.mxu0
      %vm412 = vcmp.ge.f32.partialorder %v310, 0.0
      %vm413 = vcmp.ge.f32.partialorder %v324, 0.0
      %vm414 = vcmp.ge.f32.partialorder %v338, 0.0
      %vm415 = vcmp.ge.f32.partialorder %v352, 0.0
      %vm416 = vcmp.ge.f32.partialorder %v366, 0.0
      %vm417 = vcmp.ge.f32.partialorder %v380, 0.0
      %vm418 = vcmp.ge.f32.partialorder %v394, 0.0
      %vm419 = vcmp.ge.f32.partialorder %v408, 0.0
      %vm420 = vcmp.ge.f32.partialorder %v312, 0.0
      %vm421 = vcmp.ge.f32.partialorder %v326, 0.0
      %vm422 = vcmp.ge.f32.partialorder %v340, 0.0
      %vm423 = vcmp.ge.f32.partialorder %v354, 0.0
      %vm424 = vcmp.ge.f32.partialorder %v368, 0.0
      %vm425 = vcmp.ge.f32.partialorder %v382, 0.0
      %vm426 = vcmp.ge.f32.partialorder %v396, 0.0
      %vm427 = vcmp.ge.f32.partialorder %v410, 0.0
      %v428 = vmul.f32 %v310, 0.2
      %v429 = vmul.f32 %v324, 0.2
      %v430 = vmul.f32 %v338, 0.2
      %v431 = vmul.f32 %v352, 0.2
      %v432 = vmul.f32 %v366, 0.2
      %v433 = vmul.f32 %v380, 0.2
      %v434 = vmul.f32 %v394, 0.2
      %v435 = vmul.f32 %v408, 0.2
      %v436 = vmul.f32 %v312, 0.2
      %v437 = vmul.f32 %v326, 0.2
      %v438 = vmul.f32 %v340, 0.2
      %v439 = vmul.f32 %v354, 0.2
      %v440 = vmul.f32 %v368, 0.2
      %v441 = vmul.f32 %v382, 0.2
      %v442 = vmul.f32 %v396, 0.2
      %v443 = vmul.f32 %v410, 0.2
      %v444 = vsel %vm412, %v310, %v428
      %v445 = vsel %vm413, %v324, %v429
      %v446 = vsel %vm414, %v338, %v430
      %v447 = vsel %vm415, %v352, %v431
      %v448 = vsel %vm416, %v366, %v432
      %v449 = vsel %vm417, %v380, %v433
      %v450 = vsel %vm418, %v394, %v434
      %v451 = vsel %vm419, %v408, %v435
      %v452 = vsel %vm420, %v312, %v436
      %v453 = vsel %vm421, %v326, %v437
      %v454 = vsel %vm422, %v340, %v438
      %v455 = vsel %vm423, %v354, %v439
      %v456 = vsel %vm424, %v368, %v440
      %v457 = vsel %vm425, %v382, %v441
      %v458 = vsel %vm426, %v396, %v442
      %v459 = vsel %vm427, %v410, %v443
      %460 = vst [vmem:[%s143] sm:$0xff] %v444
      %461 = vst [vmem:[%s143 + $0x8] sm:$0xff] %v445
      %462 = vst [vmem:[%s143 + $0x10] sm:$0xff] %v446
      %463 = vst [vmem:[%s143 + $0x18] sm:$0xff] %v447
      %464 = vst [vmem:[%s143 + $0x20] sm:$0xff] %v448
      %465 = vst [vmem:[%s143 + $0x28] sm:$0xff] %v449
      %466 = vst [vmem:[%s143 + $0x30] sm:$0xff] %v450
      %467 = vst [vmem:[%s143 + $0x38] sm:$0xff] %v451
      %468 = vst [vmem:[%s143 + $0x40] sm:$0xff] %v452
      %469 = vst [vmem:[%s143 + $0x48] sm:$0xff] %v453
      %470 = vst [vmem:[%s143 + $0x50] sm:$0xff] %v454
      %471 = vst [vmem:[%s143 + $0x58] sm:$0xff] %v455
      %472 = vst [vmem:[%s143 + $0x60] sm:$0xff] %v456
      %473 = vst [vmem:[%s143 + $0x68] sm:$0xff] %v457
      %474 = vst [vmem:[%s143 + $0x70] sm:$0xff] %v458
      %475 = vst [vmem:[%s143 + $0x78] sm:$0xff] %v459
      %p476 = scmp.lt.s32.totalorder %s13, 1
      %s477 = scalar_select %p476, %s13, 1
      %s478 = smul.addr %s477, 16
      %s479 = smul.addr %s478, 8
      %s480 = scalar_lea.vmem %s2, %s479
      // Predicated region
      $region29: #{discriminator_forward.4} parent=27 // pred_check
        %p481 = pneg %p78
      $region30: #{discriminator_forward.4} parent=27 // pred_check_branch
        %483 = sbr.rel (%p481) target = $region32
      $region31: #{discriminator_forward.4} parent=27 // pred_region
        _
      $region32: #{discriminator_forward.4} parent=27 // pred_fallthru
        _
    $region28: #{discriminator_forward.4} parent=5 // pred_fallthru
      _
    %p484 = scmp.le.s32.totalorder 2, %s8
    // Predicated region
    $region33: #{discriminator_forward.4} parent=5 // pred_check
      %p485 = pneg %p484
    $region34: #{discriminator_forward.4} parent=5 // pred_check_branch
      %487 = sbr.rel (%p485) target = $region36
    $region35: #{discriminator_forward.4} parent=5 // pred_region
      %s488 = ssub.s32 %s8, 2
      // Predicated region
      $region37: #{discriminator_forward.4} parent=35 // pred_check
        %p489 = pneg %p84
      $region38: #{discriminator_forward.4} parent=35 // pred_check_branch
        %491 = sbr.rel (%p489) target = $region40
      $region39: #{discriminator_forward.4} parent=35 // pred_region
        %p492 = scmp.lt.s32.totalorder %s14, 1
        %s493 = scalar_select %p492, %s14, 1
        %s494 = smul.addr %s493, 16
        %s495 = smul.addr %s494, 8
        %s496 = scalar_lea.vmem %s2, %s495
      $region40: #{discriminator_forward.4} parent=35 // pred_fallthru
        _
    $region36: #{discriminator_forward.4} parent=5 // pred_fallthru
      _
  $region6: #{discriminator_forward.4} parent=0 // loop_footer
    %s12 = sadd.s32 1, %s8
  $region7: #{discriminator_forward.4} parent=0 // loop_footer_branch
    %7 = sbr.rel target = $region3
  $region8: #{discriminator_forward.4} parent=0 // loop_exit
    _

// kernel: discriminator_forward.5
$region0: #{discriminator_forward.5}
  #allocation0 [shape = 'u32[]', space=smem, size = 0x4, offset = 0x4, fixed_abs, tag = 'smem constant byte address 0x4 - core index']
  #allocation1 [shape = 'u32[72,128]{1,0:T(1,128)}', space=vmem, size = 0x9000, scoped, tag = 'internal scratch']
  #allocation2 [shape = 'f32[2,32,256]{2,1,0:T(8,128)}', space=vmem, size = 0x10000, scoped, tag = 'scratch operand']
  #allocation3 [shape = 'f32[32,1]{1,0:T(8,128)}', space=vmem, size = 0x4000, scoped, tag = 'scratch operand']
  #allocation4 [shape = 'f32[32,1]{1,0:T(8,128)}', space=vmem, size = 0x4000, scoped, tag = 'scratch operand']
  %s0 = inlined_call_operand.vmem [shape: bf16[2,256,256], index: 0, kind: input, shape index: {}]
  %s1 = inlined_call_operand.vmem [shape: bf16[32,256], index: 1, kind: input, shape index: {}]
  %s2 = inlined_call_operand.vmem [shape: f32[32,1], index: 2, kind: input, shape index: {}]
  %s3 = inlined_call_operand.vmem [shape: f32[32,1], index: 3, kind: input, shape index: {}]
  %s4 = inlined_call_operand.vmem [shape: f32[2,32,256], index: 4, kind: output, shape index: {}]
  %s5 = sld [smem:[#allocation0]]
  $region65: #{discriminator_forward.5} parent=0
    _
  %s7 = ssub.s32 1, %s5
  %s8 = scalar_select 0, %s7, %s5
  loop: start=0, step=1, limit=6
  $region2: #{discriminator_forward.5} parent=0 // loop_pre_header
    _
  $region3: #{discriminator_forward.5} parent=0 // loop_header
    %s10 = sphi 0, %s14
    %p11 = scmp.ge.s32.totalorder %s10, 6
    %s17 = sphi 0, %s29
    %s18 = sphi 0, %s25
    %s19 = sphi 0, %s17
    %s20 = sphi 0, %s18
    %s21 = sphi 0, %s19
    %s22 = sphi 0, %s20
    %s38 = sphi 0, %s40
    %s41 = sphi 0, %s38
    %s42 = sphi 0, %s41
    %s58 = sphi 0, %s42
    %s62 = sphi 0, %s62
    %s64 = sphi 0, %s62
    %s65 = sphi 0, %s64
    %s79 = sphi 0, %s65
    %s83 = sphi 0, %s83
    %s85 = sphi 0, %s83
    %s86 = sphi 0, %s85
    %s100 = sphi 0, %s86
    %s104 = sphi 0, %s104
    %s106 = sphi 0, %s104
    %s107 = sphi 0, %s106
    %s121 = sphi 0, %s107
    %s129 = sphi 0, %s131
    %s132 = sphi 0, %s129
    %s133 = sphi 0, %s132
    %s149 = sphi 0, %s133
  $region4: #{discriminator_forward.5} parent=0 // loop_header_branch
    %13 = sbr.rel (%p11) target = $region8
  $region5: #{discriminator_forward.5} parent=0 // loop_body
    %s15 = ssub.s32 %s10, 1
    %s16 = ssub.s32 %s10, 2
    %s23 = sadd.s32 1, %s18
    %p24 = scmp.ge.s32.totalorder %s23, 2
    %s25 = scalar_select %p24, 0, %s23
    %s26 = sadd.s32 1, %s17
    %s27 = scalar_select %p24, %s26, %s17
    %p28 = scmp.ge.s32.totalorder %s27, 2
    %s29 = scalar_select %p28, 0, %s27
    %s30 = ssub.s32 1, %s17
    %s31 = smul.u32 %s18, %s30
    %s32 = sadd.s32 %s31, %s17
    %s33 = ssub.s32 1, %s29
    %s34 = smul.u32 %s25, %s33
    %s35 = sadd.s32 %s34, %s29
    %s36 = ssub.s32 %s32, %s35
    %p37 = scmp.eq.s32.totalorder %s36, 0
    %s39 = sadd.s32 %s38, 1
    %s40 = scalar_select %p37, %s38, %s39
    %p43 = pneg %p37
    %p44 = scmp.eq.s32.totalorder %s10, 3
    %p45 = por %p43, %p44
    %p46 = scmp.ne.s32.totalorder %s38, %s41
    %p47 = scmp.eq.s32.totalorder %s10, 0
    %p48 = por %p46, %p47
    %p49 = scmp.ne.s32.totalorder %s38, %s41
    %p50 = scmp.eq.s32.totalorder %s15, 3
    %p51 = por %p49, %p50
    %p52 = scmp.ne.s32.totalorder %s41, %s42
    %p53 = scmp.eq.s32.totalorder %s15, 0
    %p54 = por %p52, %p53
    %p55 = scmp.ne.s32.totalorder %s41, %s42
    %p56 = scmp.eq.s32.totalorder %s16, 3
    %p57 = por %p55, %p56
    %p59 = scmp.ne.s32.totalorder %s42, %s58
    %p60 = scmp.eq.s32.totalorder %s16, 0
    %p61 = por %p59, %p60
    %s63 = sadd.s32 %s62, 1
    %p66 = scmp.eq.s32.totalorder %s10, 3
    %p67 = scmp.ne.s32.totalorder %s62, %s64
    %p68 = scmp.eq.s32.totalorder %s10, 0
    %p69 = por %p67, %p68
    %p70 = scmp.ne.s32.totalorder %s62, %s64
    %p71 = scmp.eq.s32.totalorder %s15, 3
    %p72 = por %p70, %p71
    %p73 = scmp.ne.s32.totalorder %s64, %s65
    %p74 = scmp.eq.s32.totalorder %s15, 0
    %p75 = por %p73, %p74
    %p76 = scmp.ne.s32.totalorder %s64, %s65
    %p77 = scmp.eq.s32.totalorder %s16, 3
    %p78 = por %p76, %p77
    %p80 = scmp.ne.s32.totalorder %s65, %s79
    %p81 = scmp.eq.s32.totalorder %s16, 0
    %p82 = por %p80, %p81
    %s84 = sadd.s32 %s83, 1
    %p87 = scmp.eq.s32.totalorder %s10, 3
    %p88 = scmp.ne.s32.totalorder %s83, %s85
    %p89 = scmp.eq.s32.totalorder %s10, 0
    %p90 = por %p88, %p89
    %p91 = scmp.ne.s32.totalorder %s83, %s85
    %p92 = scmp.eq.s32.totalorder %s15, 3
    %p93 = por %p91, %p92
    %p94 = scmp.ne.s32.totalorder %s85, %s86
    %p95 = scmp.eq.s32.totalorder %s15, 0
    %p96 = por %p94, %p95
    %p97 = scmp.ne.s32.totalorder %s85, %s86
    %p98 = scmp.eq.s32.totalorder %s16, 3
    %p99 = por %p97, %p98
    %p101 = scmp.ne.s32.totalorder %s86, %s100
    %p102 = scmp.eq.s32.totalorder %s16, 0
    %p103 = por %p101, %p102
    %s105 = sadd.s32 %s104, 1
    %p108 = scmp.eq.s32.totalorder %s10, 3
    %p109 = scmp.ne.s32.totalorder %s104, %s106
    %p110 = scmp.eq.s32.totalorder %s10, 0
    %p111 = por %p109, %p110
    %p112 = scmp.ne.s32.totalorder %s104, %s106
    %p113 = scmp.eq.s32.totalorder %s15, 3
    %p114 = por %p112, %p113
    %p115 = scmp.ne.s32.totalorder %s106, %s107
    %p116 = scmp.eq.s32.totalorder %s15, 0
    %p117 = por %p115, %p116
    %p118 = scmp.ne.s32.totalorder %s106, %s107
    %p119 = scmp.eq.s32.totalorder %s16, 3
    %p120 = por %p118, %p119
    %p122 = scmp.ne.s32.totalorder %s107, %s121
    %p123 = scmp.eq.s32.totalorder %s16, 0
    %p124 = por %p122, %p123
    %s125 = smul.u32 %s18, %s17
    %s126 = smul.u32 %s25, %s29
    %s127 = ssub.s32 %s125, %s126
    %p128 = scmp.eq.s32.totalorder %s127, 0
    %s130 = sadd.s32 %s129, 1
    %s131 = scalar_select %p128, %s129, %s130
    %p134 = pneg %p128
    %p135 = scmp.eq.s32.totalorder %s10, 3
    %p136 = por %p134, %p135
    %p137 = scmp.ne.s32.totalorder %s129, %s132
    %p138 = scmp.eq.s32.totalorder %s10, 0
    %p139 = por %p137, %p138
    %p140 = scmp.ne.s32.totalorder %s129, %s132
    %p141 = scmp.eq.s32.totalorder %s15, 3
    %p142 = por %p140, %p141
    %p143 = scmp.ne.s32.totalorder %s132, %s133
    %p144 = scmp.eq.s32.totalorder %s15, 0
    %p145 = por %p143, %p144
    %p146 = scmp.ne.s32.totalorder %s132, %s133
    %p147 = scmp.eq.s32.totalorder %s16, 3
    %p148 = por %p146, %p147
    %p150 = scmp.ne.s32.totalorder %s133, %s149
    %p151 = scmp.eq.s32.totalorder %s16, 0
    %p152 = por %p150, %p151
    %p153 = scmp.le.s32.totalorder 1, %s10
    %p154 = scmp.lt.s32.totalorder %s10, 5
    %p155 = pnand %p153, %p154
    %p156 = pneg %p155
    // Predicated region
    $region9: #{discriminator_forward.5} parent=5 // pred_check
      _
    $region10: #{discriminator_forward.5} parent=5 // pred_check_branch
      %158 = sbr.rel (%p155) target = $region12
    $region11: #{discriminator_forward.5} parent=5 // pred_region
      %s159 = ssub.s32 %s10, 1
      // Predicated region
      $region13: #{discriminator_forward.5} parent=11 // pred_check
        %p160 = pneg %p75
      $region14: #{discriminator_forward.5} parent=11 // pred_check_branch
        %162 = sbr.rel (%p160) target = $region16
      $region15: #{discriminator_forward.5} parent=11 // pred_region
        _
      $region16: #{discriminator_forward.5} parent=11 // pred_fallthru
        _
      // Predicated region
      $region17: #{discriminator_forward.5} parent=11 // pred_check
        %p163 = pneg %p96
      $region18: #{discriminator_forward.5} parent=11 // pred_check_branch
        %165 = sbr.rel (%p163) target = $region20
      $region19: #{discriminator_forward.5} parent=11 // pred_region
        _
      $region20: #{discriminator_forward.5} parent=11 // pred_fallthru
        _
      // Predicated region
      $region21: #{discriminator_forward.5} parent=11 // pred_check
        %p166 = pneg %p117
      $region22: #{discriminator_forward.5} parent=11 // pred_check_branch
        %168 = sbr.rel (%p166) target = $region24
      $region23: #{discriminator_forward.5} parent=11 // pred_region
        _
      $region24: #{discriminator_forward.5} parent=11 // pred_fallthru
        _
    $region12: #{discriminator_forward.5} parent=5 // pred_fallthru
      _
    %p169 = scmp.lt.s32.totalorder %s10, 4
    // Predicated region
    $region25: #{discriminator_forward.5} parent=5 // pred_check
      %p170 = pneg %p169
    $region26: #{discriminator_forward.5} parent=5 // pred_check_branch
      %172 = sbr.rel (%p170) target = $region28
    $region27: #{discriminator_forward.5} parent=5 // pred_region
      // Predicated region
      $region29: #{discriminator_forward.5} parent=27 // pred_check
        %p173 = pneg %p48
      $region30: #{discriminator_forward.5} parent=27 // pred_check_branch
        %175 = sbr.rel (%p173) target = $region32
      $region31: #{discriminator_forward.5} parent=27 // pred_region
        %s176 = ssub.s32 1, %s17
        %s177 = smul.u32 %s18, %s176
        %s178 = sadd.s32 %s177, %s17
        %p179 = scmp.lt.s32.totalorder %s178, 1
        %s180 = scalar_select %p179, %s178, 1
        %s181 = smul.addr %s180, 64
        %s182 = smul.addr %s181, 4
        %s183 = scalar_lea.vmem %s0, %s182
        %s184 = ssub.s32 1, %s17
        %s185 = smul.u32 %s18, %s184
        %s186 = sadd.s32 %s185, %s17
      $region32: #{discriminator_forward.5} parent=27 // pred_fallthru
        _
    $region28: #{discriminator_forward.5} parent=5 // pred_fallthru
      _
    %p187 = scmp.le.s32.totalorder 1, %s10
    %p188 = scmp.lt.s32.totalorder %s10, 5
    %p189 = pnand %p187, %p188
    %p190 = pneg %p189
    // Predicated region
    $region33: #{discriminator_forward.5} parent=5 // pred_check
      _
    $region34: #{discriminator_forward.5} parent=5 // pred_check_branch
      %192 = sbr.rel (%p189) target = $region36
    $region35: #{discriminator_forward.5} parent=5 // pred_region
      %s193 = ssub.s32 %s10, 1
      %s194 = ssub.s32 1, %s19
      %s195 = smul.u32 %s20, %s194
      %s196 = sadd.s32 %s195, %s19
      %p197 = scmp.lt.s32.totalorder %s196, 1
      %s198 = scalar_select %p197, %s196, 1
      %s199 = smul.addr %s198, 64
      %s200 = smul.addr %s199, 4
      %s201 = scalar_lea.vmem %s0, %s200
      %p202 = pneg %p54
      %p203 = pneg %p51
      %p204 = pneg %p75
      %p205 = pneg %p72
      %p206 = pneg %p96
      %p207 = pneg %p93
      %p208 = pneg %p117
      %p209 = pneg %p114
      %p210 = pneg %p145
      %p211 = pneg %p142
      %s212 = smul.u32 %s20, %s19
      %p213 = scmp.lt.s32.totalorder %s212, 1
      %s214 = scalar_select %p213, %s212, 1
      %s215 = smul.addr %s214, 8
      %s216 = smul.addr %s215, 8
      %s217 = scalar_lea.vmem %s4, %s216
      %s218 = ssub.s32 1, %s19
      %s219 = smul.u32 %s20, %s218
      %s220 = sadd.s32 %s219, %s19
      %p221 = scmp.lt.s32.totalorder %s220, 1
      %s222 = scalar_select %p221, %s220, 1
      %s223 = smul.addr %s222, 64
      %s224 = smul.addr %s223, 4
      %s225 = scalar_lea.vmem %s0, %s224
      %s226 = ssub.s32 1, %s19
      %s227 = smul.u32 %s20, %s226
      %s228 = sadd.s32 %s227, %s19
      %s229 = smul.u32 %s20, %s19
      %p230 = scmp.lt.s32.totalorder %s229, 1
      %s231 = scalar_select %p230, %s229, 1
      %s232 = smul.addr %s231, 8
      %s233 = smul.addr %s232, 8
      %s234 = scalar_lea.vmem %s4, %s233
      %s235 = smul.u32 %s20, %s19
      %p236 = scmp.eq.s32.totalorder %s19, 0
      // Predicated region
      $region37: #{discriminator_forward.5} parent=35 // pred_check
        %p237 = pneg %p236
      $region38: #{discriminator_forward.5} parent=35 // pred_check_branch
        %239 = sbr.rel (%p237) target = $region40
      $region39: #{discriminator_forward.5} parent=35 // pred_region
        %p240 = scmp.eq.s32.totalorder %s20, 0
        // Predicated region
        $region41: #{discriminator_forward.5} parent=39 // pred_check
          %p241 = pneg %p240
        $region42: #{discriminator_forward.5} parent=39 // pred_check_branch
          %243 = sbr.rel (%p241) target = $region44
        $region43: #{discriminator_forward.5} parent=39 // pred_region
          %vm244 = vcmask 7168
          %245 = vst.msk [vmem:[#allocation3] sm:$0xff] %vm244, 0.0
          %246 = vst.msk [vmem:[#allocation3 + $0x8] sm:$0xff] %vm244, 0.0
          %247 = vst.msk [vmem:[#allocation3 + $0x10] sm:$0xff] %vm244, 0.0
          %248 = vst.msk [vmem:[#allocation3 + $0x18] sm:$0xff] %vm244, 0.0
        $region44: #{discriminator_forward.5} parent=39 // pred_fallthru
          _
        %v249 = vld [vmem:[%s1] sm:$0xff]
        %v250 = vld [vmem:[%s1 + $0x8] sm:$0xff]
        %v251 = vld [vmem:[%s1 + $0x10] sm:$0xff]
        %v252 = vld [vmem:[%s1 + $0x18] sm:$0xff]
        %v253 = vld [vmem:[%s225] sm:$0xff]
        %v254 = vld [vmem:[%s225 + $0x8] sm:$0xff]
        %v255 = vld [vmem:[%s225 + $0x10] sm:$0xff]
        %v256 = vld [vmem:[%s225 + $0x18] sm:$0xff]
        %v257 = vld [vmem:[%s225 + $0x20] sm:$0xff]
        %v258 = vld [vmem:[%s225 + $0x28] sm:$0xff]
        %v259 = vld [vmem:[%s225 + $0x30] sm:$0xff]
        %v260 = vld [vmem:[%s225 + $0x38] sm:$0xff]
        %v261 = vld [vmem:[%s225 + $0x40] sm:$0xff]
        %v262 = vld [vmem:[%s225 + $0x48] sm:$0xff]
        %v263 = vld [vmem:[%s225 + $0x50] sm:$0xff]
        %v264 = vld [vmem:[%s225 + $0x58] sm:$0xff]
        %v265 = vld [vmem:[%s225 + $0x60] sm:$0xff]
        %v266 = vld [vmem:[%s225 + $0x68] sm:$0xff]
        %v267 = vld [vmem:[%s225 + $0x70] sm:$0xff]
        %v268 = vld [vmem:[%s225 + $0x78] sm:$0xff]
        %v269 = vld [vmem:[%s225 + $0x80] sm:$0xff]
        %v270 = vld [vmem:[%s225 + $0x88] sm:$0xff]
        %v271 = vld [vmem:[%s225 + $0x90] sm:$0xff]
        %v272 = vld [vmem:[%s225 + $0x98] sm:$0xff]
        %v273 = vld [vmem:[%s225 + $0xa0] sm:$0xff]
        %v274 = vld [vmem:[%s225 + $0xa8] sm:$0xff]
        %v275 = vld [vmem:[%s225 + $0xb0] sm:$0xff]
        %v276 = vld [vmem:[%s225 + $0xb8] sm:$0xff]
        %v277 = vld [vmem:[%s225 + $0xc0] sm:$0xff]
        %v278 = vld [vmem:[%s225 + $0xc8] sm:$0xff]
        %v279 = vld [vmem:[%s225 + $0xd0] sm:$0xff]
        %v280 = vld [vmem:[%s225 + $0xd8] sm:$0xff]
        %v281 = vld [vmem:[%s225 + $0xe0] sm:$0xff]
        %v282 = vld [vmem:[%s225 + $0xe8] sm:$0xff]
        %v283 = vld [vmem:[%s225 + $0xf0] sm:$0xff]
        %v284 = vld [vmem:[%s225 + $0xf8] sm:$0xff]
        %v289 = vunpack.c.l.b16 %v249
        %v290 = vunpack.c.h.b16 %v249
        %v291 = vunpack.c.l.b16 %v250
        %v292 = vunpack.c.h.b16 %v250
        %v293 = vunpack.c.l.b16 %v251
        %v294 = vunpack.c.h.b16 %v251
        %v295 = vunpack.c.l.b16 %v252
        %v296 = vunpack.c.h.b16 %v252
        %v297 = vpack.c.b16 %v291, %v289
        %v298 = vpack.c.b16 %v292, %v290
        %v299 = vpack.c.b16 %v295, %v293
        %v300 = vpack.c.b16 %v296, %v294
        %v337 = vunpack.c.l.b16 %v253
        %v338 = vunpack.c.h.b16 %v253
        %v339 = vunpack.c.l.b16 %v254
        %v340 = vunpack.c.h.b16 %v254
        %v341 = vunpack.c.l.b16 %v255
        %v342 = vunpack.c.h.b16 %v255
        %v343 = vunpack.c.l.b16 %v256
        %v344 = vunpack.c.h.b16 %v256
        %v345 = vunpack.c.l.b16 %v257
        %v346 = vunpack.c.h.b16 %v257
        %v347 = vunpack.c.l.b16 %v258
        %v348 = vunpack.c.h.b16 %v258
        %v349 = vunpack.c.l.b16 %v259
        %v350 = vunpack.c.h.b16 %v259
        %v351 = vunpack.c.l.b16 %v260
        %v352 = vunpack.c.h.b16 %v260
        %v353 = vunpack.c.l.b16 %v261
        %v354 = vunpack.c.h.b16 %v261
        %v355 = vunpack.c.l.b16 %v262
        %v356 = vunpack.c.h.b16 %v262
        %v357 = vunpack.c.l.b16 %v263
        %v358 = vunpack.c.h.b16 %v263
        %v359 = vunpack.c.l.b16 %v264
        %v360 = vunpack.c.h.b16 %v264
        %v361 = vunpack.c.l.b16 %v265
        %v362 = vunpack.c.h.b16 %v265
        %v363 = vunpack.c.l.b16 %v266
        %v364 = vunpack.c.h.b16 %v266
        %v365 = vunpack.c.l.b16 %v267
        %v366 = vunpack.c.h.b16 %v267
        %v367 = vunpack.c.l.b16 %v268
        %v368 = vunpack.c.h.b16 %v268
        %v369 = vunpack.c.l.b16 %v269
        %v370 = vunpack.c.h.b16 %v269
        %v371 = vunpack.c.l.b16 %v270
        %v372 = vunpack.c.h.b16 %v270
        %v373 = vunpack.c.l.b16 %v271
        %v374 = vunpack.c.h.b16 %v271
        %v375 = vunpack.c.l.b16 %v272
        %v376 = vunpack.c.h.b16 %v272
        %v377 = vunpack.c.l.b16 %v273
        %v378 = vunpack.c.h.b16 %v273
        %v379 = vunpack.c.l.b16 %v274
        %v380 = vunpack.c.h.b16 %v274
        %v381 = vunpack.c.l.b16 %v275
        %v382 = vunpack.c.h.b16 %v275
        %v383 = vunpack.c.l.b16 %v276
        %v384 = vunpack.c.h.b16 %v276
        %v385 = vunpack.c.l.b16 %v277
        %v386 = vunpack.c.h.b16 %v277
        %v387 = vunpack.c.l.b16 %v278
        %v388 = vunpack.c.h.b16 %v278
        %v389 = vunpack.c.l.b16 %v279
        %v390 = vunpack.c.h.b16 %v279
        %v391 = vunpack.c.l.b16 %v280
        %v392 = vunpack.c.h.b16 %v280
        %v393 = vunpack.c.l.b16 %v281
        %v394 = vunpack.c.h.b16 %v281
        %v395 = vunpack.c.l.b16 %v282
        %v396 = vunpack.c.h.b16 %v282
        %v397 = vunpack.c.l.b16 %v283
        %v398 = vunpack.c.h.b16 %v283
        %v399 = vunpack.c.l.b16 %v284
        %v400 = vunpack.c.h.b16 %v284
        %v401 = vpack.c.b16 %v339, %v337
        %v402 = vpack.c.b16 %v340, %v338
        %v403 = vpack.c.b16 %v343, %v341
        %v404 = vpack.c.b16 %v344, %v342
        %v405 = vpack.c.b16 %v347, %v345
        %v406 = vpack.c.b16 %v348, %v346
        %v407 = vpack.c.b16 %v351, %v349
        %v408 = vpack.c.b16 %v352, %v350
        %v409 = vpack.c.b16 %v355, %v353
        %v410 = vpack.c.b16 %v356, %v354
        %v411 = vpack.c.b16 %v359, %v357
        %v412 = vpack.c.b16 %v360, %v358
        %v413 = vpack.c.b16 %v363, %v361
        %v414 = vpack.c.b16 %v364, %v362
        %v415 = vpack.c.b16 %v367, %v365
        %v416 = vpack.c.b16 %v368, %v366
        %v417 = vpack.c.b16 %v371, %v369
        %v418 = vpack.c.b16 %v372, %v370
        %v419 = vpack.c.b16 %v375, %v373
        %v420 = vpack.c.b16 %v376, %v374
        %v421 = vpack.c.b16 %v379, %v377
        %v422 = vpack.c.b16 %v380, %v378
        %v423 = vpack.c.b16 %v383, %v381
        %v424 = vpack.c.b16 %v384, %v382
        %v425 = vpack.c.b16 %v387, %v385
        %v426 = vpack.c.b16 %v388, %v386
        %v427 = vpack.c.b16 %v391, %v389
        %v428 = vpack.c.b16 %v392, %v390
        %v429 = vpack.c.b16 %v395, %v393
        %v430 = vpack.c.b16 %v396, %v394
        %v431 = vpack.c.b16 %v399, %v397
        %v432 = vpack.c.b16 %v400, %v398
        %465 = vmatpush.bf16.msra.mxu0 %v415
        %466 = vmatpush.bf16.msra.mxu0 %v413
        %467 = vmatpush.bf16.msra.mxu0 %v411
        %468 = vmatpush.bf16.msra.mxu0 %v409
        %469 = vmatpush.bf16.msra.mxu0 %v407
        %470 = vmatpush.bf16.msra.mxu0 %v405
        %471 = vmatpush.bf16.msra.mxu0 %v403
        %472 = vmatpush.bf16.msra.mxu0 %v401
        %473 = vmatmul.bf16.gmra.mxu0 %v297
        %v474 = vpop.f32.mrf.mxu0
        %v475 = vadd.f32 0.0, %v474
        %v476 = vpop.f32.mrf.mxu0
        %v477 = vadd.f32 0.0, %v476
        %478 = vmatmul.bf16.gmra.mxu0 %v299
        %v479 = vpop.f32.mrf.mxu0
        %v480 = vadd.f32 0.0, %v479
        %v481 = vpop.f32.mrf.mxu0
        %v482 = vadd.f32 0.0, %v481
        %483 = vdwg.mxu0
        %484 = vmatpush.bf16.msra.mxu0 %v431
        %485 = vmatpush.bf16.msra.mxu0 %v429
        %486 = vmatpush.bf16.msra.mxu0 %v427
        %487 = vmatpush.bf16.msra.mxu0 %v425
        %488 = vmatpush.bf16.msra.mxu0 %v423
        %489 = vmatpush.bf16.msra.mxu0 %v421
        %490 = vmatpush.bf16.msra.mxu0 %v419
        %491 = vmatpush.bf16.msra.mxu0 %v417
        %492 = vmatmul.bf16.gmra.mxu0 %v298
        %v493 = vpop.f32.mrf.mxu0
        %v494 = vadd.f32 %v475, %v493
        %v495 = vpop.f32.mrf.mxu0
        %v496 = vadd.f32 %v477, %v495
        %497 = vmatmul.bf16.gmra.mxu0 %v300
        %v498 = vpop.f32.mrf.mxu0
        %v499 = vadd.f32 %v480, %v498
        %v500 = vpop.f32.mrf.mxu0
        %v501 = vadd.f32 %v482, %v500
        %502 = vdwg.mxu0
        %503 = vmatpush.bf16.msra.mxu0 %v416
        %504 = vmatpush.bf16.msra.mxu0 %v414
        %505 = vmatpush.bf16.msra.mxu0 %v412
        %506 = vmatpush.bf16.msra.mxu0 %v410
        %507 = vmatpush.bf16.msra.mxu0 %v408
        %508 = vmatpush.bf16.msra.mxu0 %v406
        %509 = vmatpush.bf16.msra.mxu0 %v404
        %510 = vmatpush.bf16.msra.mxu0 %v402
        %511 = vmatmul.bf16.gmra.mxu0 %v297
        %v512 = vpop.f32.mrf.mxu0
        %v513 = vadd.f32 0.0, %v512
        %v514 = vpop.f32.mrf.mxu0
        %v515 = vadd.f32 0.0, %v514
        %516 = vmatmul.bf16.gmra.mxu0 %v299
        %v517 = vpop.f32.mrf.mxu0
        %v518 = vadd.f32 0.0, %v517
        %v519 = vpop.f32.mrf.mxu0
        %v520 = vadd.f32 0.0, %v519
        %521 = vdwg.mxu0
        %522 = vmatpush.bf16.msra.mxu0 %v432
        %523 = vmatpush.bf16.msra.mxu0 %v430
        %524 = vmatpush.bf16.msra.mxu0 %v428
        %525 = vmatpush.bf16.msra.mxu0 %v426
        %526 = vmatpush.bf16.msra.mxu0 %v424
        %527 = vmatpush.bf16.msra.mxu0 %v422
        %528 = vmatpush.bf16.msra.mxu0 %v420
        %529 = vmatpush.bf16.msra.mxu0 %v418
        %530 = vmatmul.bf16.gmra.mxu0 %v298
        %v531 = vpop.f32.mrf.mxu0
        %v532 = vadd.f32 %v513, %v531
        %v533 = vpop.f32.mrf.mxu0
        %v534 = vadd.f32 %v515, %v533
        %535 = vmatmul.bf16.gmra.mxu0 %v300
        %v536 = vpop.f32.mrf.mxu0
        %v537 = vadd.f32 %v518, %v536
        %v538 = vpop.f32.mrf.mxu0
        %v539 = vadd.f32 %v520, %v538
        %540 = vdwg.mxu0
        %s541 = smul.u32 %s20, 8
        %s542 = smul.addr %s541, 8
        %s543 = scalar_lea.vmem [#allocation2], %s542
        %544 = vst [vmem:[%s543] sm:$0xff] %v494
        %545 = vst [vmem:[%s543 + $0x8] sm:$0xff] %v532
        %546 = vst [vmem:[%s543 + $0x10] sm:$0xff] %v496
        %547 = vst [vmem:[%s543 + $0x18] sm:$0xff] %v534
        %548 = vst [vmem:[%s543 + $0x20] sm:$0xff] %v499
        %549 = vst [vmem:[%s543 + $0x28] sm:$0xff] %v537
        %550 = vst [vmem:[%s543 + $0x30] sm:$0xff] %v501
        %551 = vst [vmem:[%s543 + $0x38] sm:$0xff] %v539
        %v552 = vld [vmem:[#allocation3] sm:$0xff]
        %v553 = vld [vmem:[#allocation3 + $0x8] sm:$0xff]
        %v554 = vld [vmem:[#allocation3 + $0x10] sm:$0xff]
        %v555 = vld [vmem:[#allocation3 + $0x18] sm:$0xff]
        %v556 = vadd.f32 %v494, %v532
        %557 = vadd.xlane.f32.xlu0 %v556
        %v558 = vpop.xlane.xlu0 %557
        %v559 = vadd.f32 %v496, %v534
        %560 = vadd.xlane.f32.xlu0 %v559
        %v561 = vpop.xlane.xlu0 %560
        %v562 = vadd.f32 %v499, %v537
        %563 = vadd.xlane.f32.xlu0 %v562
        %v564 = vpop.xlane.xlu0 %563
        %v565 = vadd.f32 %v501, %v539
        %566 = vadd.xlane.f32.xlu0 %v565
        %v567 = vpop.xlane.xlu0 %566
        %v568 = vadd.f32 %v552, %v558
        %v569 = vadd.f32 %v553, %v561
        %v570 = vadd.f32 %v554, %v564
        %v571 = vadd.f32 %v555, %v567
        %vm572 = vcmask 7168
        %573 = vst.msk [vmem:[#allocation3] sm:$0xff] %vm572, %v568
        %574 = vst.msk [vmem:[#allocation3 + $0x8] sm:$0xff] %vm572, %v569
        %575 = vst.msk [vmem:[#allocation3 + $0x10] sm:$0xff] %vm572, %v570
        %576 = vst.msk [vmem:[#allocation3 + $0x18] sm:$0xff] %vm572, %v571
      $region40: #{discriminator_forward.5} parent=35 // pred_fallthru
        _
      %p577 = scmp.eq.s32.totalorder %s19, 1
      // Predicated region
      $region45: #{discriminator_forward.5} parent=35 // pred_check
        %p578 = pneg %p577
      $region46: #{discriminator_forward.5} parent=35 // pred_check_branch
        %580 = sbr.rel (%p578) target = $region48
      $region47: #{discriminator_forward.5} parent=35 // pred_region
        %v581 = vld [vmem:[#allocation3] sm:$0xff]
        %v582 = vld [vmem:[#allocation3 + $0x8] sm:$0xff]
        %v583 = vld [vmem:[#allocation3 + $0x10] sm:$0xff]
        %v584 = vld [vmem:[#allocation3 + $0x18] sm:$0xff]
        %v585 = vmul.f32 %v581, 0.001953125
        %v586 = vmul.f32 %v582, 0.001953125
        %v587 = vmul.f32 %v583, 0.001953125
        %v588 = vmul.f32 %v584, 0.001953125
        %p589 = scmp.eq.s32.totalorder %s20, 0
        // Predicated region
        $region49: #{discriminator_forward.5} parent=47 // pred_check
          %p590 = pneg %p589
        $region50: #{discriminator_forward.5} parent=47 // pred_check_branch
          %592 = sbr.rel (%p590) target = $region52
        $region51: #{discriminator_forward.5} parent=47 // pred_region
          %v593 = vld [vmem:[#allocation2] sm:$0xff]
          %v594 = vld [vmem:[#allocation2 + $0x8] sm:$0xff]
          %v595 = vld [vmem:[#allocation2 + $0x10] sm:$0xff]
          %v596 = vld [vmem:[#allocation2 + $0x18] sm:$0xff]
          %v597 = vld [vmem:[#allocation2 + $0x20] sm:$0xff]
          %v598 = vld [vmem:[#allocation2 + $0x28] sm:$0xff]
          %v599 = vld [vmem:[#allocation2 + $0x30] sm:$0xff]
          %v600 = vld [vmem:[#allocation2 + $0x38] sm:$0xff]
          %602 = vset.pattern.permute.xlu0 0
          %603 = vperm.xlu0 %602, %v585
          %v604 = vpop.permute.xlu0 %603
          %607 = vset.pattern.permute.xlu0 0
          %608 = vperm.xlu0 %607, %v586
          %v609 = vpop.permute.xlu0 %608
          %612 = vset.pattern.permute.xlu0 0
          %613 = vperm.xlu0 %612, %v587
          %v614 = vpop.permute.xlu0 %613
          %617 = vset.pattern.permute.xlu0 0
          %618 = vperm.xlu0 %617, %v588
          %v619 = vpop.permute.xlu0 %618
          %v621 = vsub.f32 %v593, %v604
          %v622 = vsub.f32 %v594, %v604
          %v623 = vsub.f32 %v595, %v609
          %v624 = vsub.f32 %v596, %v609
          %v625 = vsub.f32 %v597, %v614
          %v626 = vsub.f32 %v598, %v614
          %v627 = vsub.f32 %v599, %v619
          %v628 = vsub.f32 %v600, %v619
          %v629 = vmul.f32 %v621, %v621
          %v630 = vmul.f32 %v622, %v622
          %v631 = vmul.f32 %v623, %v623
          %v632 = vmul.f32 %v624, %v624
          %v633 = vmul.f32 %v625, %v625
          %v634 = vmul.f32 %v626, %v626
          %v635 = vmul.f32 %v627, %v627
          %v636 = vmul.f32 %v628, %v628
          %v637 = vadd.f32 %v629, %v630
          %638 = vadd.xlane.f32.xlu0 %v637
          %v639 = vpop.xlane.xlu0 %638
          %v640 = vadd.f32 %v631, %v632
          %641 = vadd.xlane.f32.xlu0 %v640
          %v642 = vpop.xlane.xlu0 %641
          %v643 = vadd.f32 %v633, %v634
          %644 = vadd.xlane.f32.xlu0 %v643
          %v645 = vpop.xlane.xlu0 %644
          %v646 = vadd.f32 %v635, %v636
          %647 = vadd.xlane.f32.xlu0 %v646
          %v648 = vpop.xlane.xlu0 %647
          %v649 = vadd.f32 %v639, 0.0
          %v650 = vadd.f32 %v642, 0.0
          %v651 = vadd.f32 %v645, 0.0
          %v652 = vadd.f32 %v648, 0.0
          %s653 = scalar_lea.vmem [#allocation2], 64
          %v654 = vld [vmem:[%s653] sm:$0xff]
          %v655 = vld [vmem:[%s653 + $0x8] sm:$0xff]
          %v656 = vld [vmem:[%s653 + $0x10] sm:$0xff]
          %v657 = vld [vmem:[%s653 + $0x18] sm:$0xff]
          %v658 = vld [vmem:[%s653 + $0x20] sm:$0xff]
          %v659 = vld [vmem:[%s653 + $0x28] sm:$0xff]
          %v660 = vld [vmem:[%s653 + $0x30] sm:$0xff]
          %v661 = vld [vmem:[%s653 + $0x38] sm:$0xff]
          %v662 = vsub.f32 %v654, %v604
          %v663 = vsub.f32 %v655, %v604
          %v664 = vsub.f32 %v656, %v609
          %v665 = vsub.f32 %v657, %v609
          %v666 = vsub.f32 %v658, %v614
          %v667 = vsub.f32 %v659, %v614
          %v668 = vsub.f32 %v660, %v619
          %v669 = vsub.f32 %v661, %v619
          %v670 = vmul.f32 %v662, %v662
          %v671 = vmul.f32 %v663, %v663
          %v672 = vmul.f32 %v664, %v664
          %v673 = vmul.f32 %v665, %v665
          %v674 = vmul.f32 %v666, %v666
          %v675 = vmul.f32 %v667, %v667
          %v676 = vmul.f32 %v668, %v668
          %v677 = vmul.f32 %v669, %v669
          %v678 = vadd.f32 %v670, %v671
          %679 = vadd.xlane.f32.xlu0 %v678
          %v680 = vpop.xlane.xlu0 %679
          %v681 = vadd.f32 %v672, %v673
          %682 = vadd.xlane.f32.xlu0 %v681
          %v683 = vpop.xlane.xlu0 %682
          %v684 = vadd.f32 %v674, %v675
          %685 = vadd.xlane.f32.xlu0 %v684
          %v686 = vpop.xlane.xlu0 %685
          %v687 = vadd.f32 %v676, %v677
          %688 = vadd.xlane.f32.xlu0 %v687
          %v689 = vpop.xlane.xlu0 %688
          %v690 = vadd.f32 %v649, %v680
          %v691 = vadd.f32 %v650, %v683
          %v692 = vadd.f32 %v651, %v686
          %v693 = vadd.f32 %v652, %v689
          %v694 = vmul.f32 %v690, 0.001953125
          %v695 = vmul.f32 %v691, 0.001953125
          %v696 = vmul.f32 %v692, 0.001953125
          %v697 = vmul.f32 %v693, 0.001953125
          %vm698 = vcmask 7168
          %699 = vst.msk [vmem:[#allocation4] sm:$0xff] %vm698, %v694
          %700 = vst.msk [vmem:[#allocation4 + $0x8] sm:$0xff] %vm698, %v695
          %701 = vst.msk [vmem:[#allocation4 + $0x10] sm:$0xff] %vm698, %v696
          %702 = vst.msk [vmem:[#allocation4 + $0x18] sm:$0xff] %vm698, %v697
        $region52: #{discriminator_forward.5} parent=47 // pred_fallthru
          _
        %v703 = vld [vmem:[%s2] sm:$0xff]
        %v704 = vld [vmem:[%s2 + $0x8] sm:$0xff]
        %v705 = vld [vmem:[%s2 + $0x10] sm:$0xff]
        %v706 = vld [vmem:[%s2 + $0x18] sm:$0xff]
        %v707 = vld [vmem:[#allocation4] sm:$0xff]
        %v708 = vld [vmem:[#allocation4 + $0x8] sm:$0xff]
        %v709 = vld [vmem:[#allocation4 + $0x10] sm:$0xff]
        %v710 = vld [vmem:[#allocation4 + $0x18] sm:$0xff]
        %v711 = vadd.f32 %v707, 1e-05
        %v712 = vadd.f32 %v708, 1e-05
        %v713 = vadd.f32 %v709, 1e-05
        %v714 = vadd.f32 %v710, 1e-05
        %v715 = vrsqrt.pop %v711
        %v716 = vmul.f32 %v715, %v711
        %v717 = vmul.f32 %v716, %v715
        %v718 = vmul.f32 0.5, %v717
        %v719 = vsub.f32 1.5, %v718
        %v720 = vmul.f32 %v715, %v719
        %vm721 = vweird.f32 %v711
        %vm722 = vweird.f32 %v715
        %vm723 = vmor %vm721, %vm722
        %v724 = vsel %vm723, %v715, %v720
        %v725 = vrsqrt.pop %v712
        %v726 = vmul.f32 %v725, %v712
        %v727 = vmul.f32 %v726, %v725
        %v728 = vmul.f32 0.5, %v727
        %v729 = vsub.f32 1.5, %v728
        %v730 = vmul.f32 %v725, %v729
        %vm731 = vweird.f32 %v712
        %vm732 = vweird.f32 %v725
        %vm733 = vmor %vm731, %vm732
        %v734 = vsel %vm733, %v725, %v730
        %v735 = vrsqrt.pop %v713
        %v736 = vmul.f32 %v735, %v713
        %v737 = vmul.f32 %v736, %v735
        %v738 = vmul.f32 0.5, %v737
        %v739 = vsub.f32 1.5, %v738
        %v740 = vmul.f32 %v735, %v739
        %vm741 = vweird.f32 %v713
        %vm742 = vweird.f32 %v735
        %vm743 = vmor %vm741, %vm742
        %v744 = vsel %vm743, %v735, %v740
        %v745 = vrsqrt.pop %v714
        %v746 = vmul.f32 %v745, %v714
        %v747 = vmul.f32 %v746, %v745
        %v748 = vmul.f32 0.5, %v747
        %v749 = vsub.f32 1.5, %v748
        %v750 = vmul.f32 %v745, %v749
        %vm751 = vweird.f32 %v714
        %vm752 = vweird.f32 %v745
        %vm753 = vmor %vm751, %vm752
        %v754 = vsel %vm753, %v745, %v750
        %v755 = vmul.f32 %v703, %v724
        %v756 = vmul.f32 %v704, %v734
        %v757 = vmul.f32 %v705, %v744
        %v758 = vmul.f32 %v706, %v754
        %v759 = vld [vmem:[%s3] sm:$0xff]
        %v760 = vld [vmem:[%s3 + $0x8] sm:$0xff]
        %v761 = vld [vmem:[%s3 + $0x10] sm:$0xff]
        %v762 = vld [vmem:[%s3 + $0x18] sm:$0xff]
        %v763 = vmul.f32 %v585, %v755
        %v764 = vmul.f32 %v586, %v756
        %v765 = vmul.f32 %v587, %v757
        %v766 = vmul.f32 %v588, %v758
        %v767 = vsub.f32 %v759, %v763
        %v768 = vsub.f32 %v760, %v764
        %v769 = vsub.f32 %v761, %v765
        %v770 = vsub.f32 %v762, %v766
        %s771 = smul.u32 %s20, 8
        %s772 = smul.addr %s771, 8
        %s773 = scalar_lea.vmem [#allocation2], %s772
        %v774 = vld [vmem:[%s773] sm:$0xff]
        %v775 = vld [vmem:[%s773 + $0x8] sm:$0xff]
        %v776 = vld [vmem:[%s773 + $0x10] sm:$0xff]
        %v777 = vld [vmem:[%s773 + $0x18] sm:$0xff]
        %v778 = vld [vmem:[%s773 + $0x20] sm:$0xff]
        %v779 = vld [vmem:[%s773 + $0x28] sm:$0xff]
        %v780 = vld [vmem:[%s773 + $0x30] sm:$0xff]
        %v781 = vld [vmem:[%s773 + $0x38] sm:$0xff]
        %783 = vset.pattern.permute.xlu0 0
        %784 = vperm.xlu0 %783, %v755
        %v785 = vpop.permute.xlu0 %784
        %788 = vset.pattern.permute.xlu0 0
        %789 = vperm.xlu0 %788, %v756
        %v790 = vpop.permute.xlu0 %789
        %793 = vset.pattern.permute.xlu0 0
        %794 = vperm.xlu0 %793, %v757
        %v795 = vpop.permute.xlu0 %794
        %798 = vset.pattern.permute.xlu0 0
        %799 = vperm.xlu0 %798, %v758
        %v800 = vpop.permute.xlu0 %799
        %v802 = vmul.f32 %v774, %v785
        %v803 = vmul.f32 %v775, %v785
        %v804 = vmul.f32 %v776, %v790
        %v805 = vmul.f32 %v777, %v790
        %v806 = vmul.f32 %v778, %v795
        %v807 = vmul.f32 %v779, %v795
        %v808 = vmul.f32 %v780, %v800
        %v809 = vmul.f32 %v781, %v800
        %811 = vset.pattern.permute.xlu0 0
        %812 = vperm.xlu0 %811, %v767
        %v813 = vpop.permute.xlu0 %812
        %816 = vset.pattern.permute.xlu0 0
        %817 = vperm.xlu0 %816, %v768
        %v818 = vpop.permute.xlu0 %817
        %821 = vset.pattern.permute.xlu0 0
        %822 = vperm.xlu0 %821, %v769
        %v823 = vpop.permute.xlu0 %822
        %826 = vset.pattern.permute.xlu0 0
        %827 = vperm.xlu0 %826, %v770
        %v828 = vpop.permute.xlu0 %827
        %v830 = vadd.f32 %v802, %v813
        %v831 = vadd.f32 %v803, %v813
        %v832 = vadd.f32 %v804, %v818
        %v833 = vadd.f32 %v805, %v818
        %v834 = vadd.f32 %v806, %v823
        %v835 = vadd.f32 %v807, %v823
        %v836 = vadd.f32 %v808, %v828
        %v837 = vadd.f32 %v809, %v828
        %vm838 = vcmp.ge.f32.partialorder %v830, 0.0
        %vm839 = vcmp.ge.f32.partialorder %v831, 0.0
        %vm840 = vcmp.ge.f32.partialorder %v832, 0.0
        %vm841 = vcmp.ge.f32.partialorder %v833, 0.0
        %vm842 = vcmp.ge.f32.partialorder %v834, 0.0
        %vm843 = vcmp.ge.f32.partialorder %v835, 0.0
        %vm844 = vcmp.ge.f32.partialorder %v836, 0.0
        %vm845 = vcmp.ge.f32.partialorder %v837, 0.0
        %v846 = vmul.f32 %v830, 0.2
        %v847 = vmul.f32 %v831, 0.2
        %v848 = vmul.f32 %v832, 0.2
        %v849 = vmul.f32 %v833, 0.2
        %v850 = vmul.f32 %v834, 0.2
        %v851 = vmul.f32 %v835, 0.2
        %v852 = vmul.f32 %v836, 0.2
        %v853 = vmul.f32 %v837, 0.2
        %v854 = vsel %vm838, %v830, %v846
        %v855 = vsel %vm839, %v831, %v847
        %v856 = vsel %vm840, %v832, %v848
        %v857 = vsel %vm841, %v833, %v849
        %v858 = vsel %vm842, %v834, %v850
        %v859 = vsel %vm843, %v835, %v851
        %v860 = vsel %vm844, %v836, %v852
        %v861 = vsel %vm845, %v837, %v853
        %862 = vst [vmem:[%s234] sm:$0xff] %v854
        %863 = vst [vmem:[%s234 + $0x8] sm:$0xff] %v855
        %864 = vst [vmem:[%s234 + $0x10] sm:$0xff] %v856
        %865 = vst [vmem:[%s234 + $0x18] sm:$0xff] %v857
        %866 = vst [vmem:[%s234 + $0x20] sm:$0xff] %v858
        %867 = vst [vmem:[%s234 + $0x28] sm:$0xff] %v859
        %868 = vst [vmem:[%s234 + $0x30] sm:$0xff] %v860
        %869 = vst [vmem:[%s234 + $0x38] sm:$0xff] %v861
      $region48: #{discriminator_forward.5} parent=35 // pred_fallthru
        _
      %s870 = smul.u32 %s20, %s19
      %p871 = scmp.lt.s32.totalorder %s870, 1
      %s872 = scalar_select %p871, %s870, 1
      %s873 = smul.addr %s872, 8
      %s874 = smul.addr %s873, 8
      %s875 = scalar_lea.vmem %s4, %s874
      // Predicated region
      $region53: #{discriminator_forward.5} parent=35 // pred_check
        %p876 = pneg %p142
      $region54: #{discriminator_forward.5} parent=35 // pred_check_branch
        %878 = sbr.rel (%p876) target = $region56
      $region55: #{discriminator_forward.5} parent=35 // pred_region
        %s879 = smul.u32 %s20, %s19
      $region56: #{discriminator_forward.5} parent=35 // pred_fallthru
        _
    $region36: #{discriminator_forward.5} parent=5 // pred_fallthru
      _
    %p880 = scmp.le.s32.totalorder 2, %s10
    // Predicated region
    $region57: #{discriminator_forward.5} parent=5 // pred_check
      %p881 = pneg %p880
    $region58: #{discriminator_forward.5} parent=5 // pred_check_branch
      %883 = sbr.rel (%p881) target = $region60
    $region59: #{discriminator_forward.5} parent=5 // pred_region
      %s884 = ssub.s32 %s10, 2
      // Predicated region
      $region61: #{discriminator_forward.5} parent=59 // pred_check
        %p885 = pneg %p148
      $region62: #{discriminator_forward.5} parent=59 // pred_check_branch
        %887 = sbr.rel (%p885) target = $region64
      $region63: #{discriminator_forward.5} parent=59 // pred_region
        %s888 = smul.u32 %s22, %s21
        %p889 = scmp.lt.s32.totalorder %s888, 1
        %s890 = scalar_select %p889, %s888, 1
        %s891 = smul.addr %s890, 8
        %s892 = smul.addr %s891, 8
        %s893 = scalar_lea.vmem %s4, %s892
      $region64: #{discriminator_forward.5} parent=59 // pred_fallthru
        _
    $region60: #{discriminator_forward.5} parent=5 // pred_fallthru
      _
  $region6: #{discriminator_forward.5} parent=0 // loop_footer
    %s14 = sadd.s32 1, %s10
  $region7: #{discriminator_forward.5} parent=0 // loop_footer_branch
    %9 = sbr.rel target = $region3
  $region8: #{discriminator_forward.5} parent=0 // loop_exit
    _

// kernel: discriminator_forward.6
$region0: #{discriminator_forward.6}
  #allocation0 [shape = 'u32[]', space=smem, size = 0x4, offset = 0x4, fixed_abs, tag = 'smem constant byte address 0x4 - core index']
  #allocation1 [shape = 'u32[72,128]{1,0:T(1,128)}', space=vmem, size = 0x9000, scoped, tag = 'internal scratch']
  #allocation2 [shape = 'f32[2,64,64]{2,1,0:T(8,128)}', space=vmem, size = 0x10000, scoped, tag = 'scratch operand']
  #allocation3 [shape = 'f32[64,1]{1,0:T(8,128)}', space=vmem, size = 0x8000, scoped, tag = 'scratch operand']
  #allocation4 [shape = 'f32[64,1]{1,0:T(8,128)}', space=vmem, size = 0x8000, scoped, tag = 'scratch operand']
  %s0 = inlined_call_operand.vmem [shape: bf16[2,512,64], index: 0, kind: input, shape index: {}]
  %s1 = inlined_call_operand.vmem [shape: bf16[64,512], index: 1, kind: input, shape index: {}]
  %s2 = inlined_call_operand.vmem [shape: f32[64,1], index: 2, kind: input, shape index: {}]
  %s3 = inlined_call_operand.vmem [shape: f32[64,1], index: 3, kind: input, shape index: {}]
  %s4 = inlined_call_operand.vmem [shape: f32[2,64,64], index: 4, kind: output, shape index: {}]
  %s5 = sld [smem:[#allocation0]]
  $region65: #{discriminator_forward.6} parent=0
    _
  %s7 = ssub.s32 1, %s5
  %s8 = scalar_select 0, %s7, %s5
  loop: start=0, step=1, limit=6
  $region2: #{discriminator_forward.6} parent=0 // loop_pre_header
    _
  $region3: #{discriminator_forward.6} parent=0 // loop_header
    %s10 = sphi 0, %s14
    %p11 = scmp.ge.s32.totalorder %s10, 6
    %s17 = sphi 0, %s29
    %s18 = sphi 0, %s25
    %s19 = sphi 0, %s17
    %s20 = sphi 0, %s18
    %s21 = sphi 0, %s19
    %s22 = sphi 0, %s20
    %s38 = sphi 0, %s40
    %s41 = sphi 0, %s38
    %s42 = sphi 0, %s41
    %s58 = sphi 0, %s42
    %s62 = sphi 0, %s62
    %s64 = sphi 0, %s62
    %s65 = sphi 0, %s64
    %s79 = sphi 0, %s65
    %s83 = sphi 0, %s83
    %s85 = sphi 0, %s83
    %s86 = sphi 0, %s85
    %s100 = sphi 0, %s86
    %s104 = sphi 0, %s104
    %s106 = sphi 0, %s104
    %s107 = sphi 0, %s106
    %s121 = sphi 0, %s107
    %s129 = sphi 0, %s131
    %s132 = sphi 0, %s129
    %s133 = sphi 0, %s132
    %s149 = sphi 0, %s133
  $region4: #{discriminator_forward.6} parent=0 // loop_header_branch
    %13 = sbr.rel (%p11) target = $region8
  $region5: #{discriminator_forward.6} parent=0 // loop_body
    %s15 = ssub.s32 %s10, 1
    %s16 = ssub.s32 %s10, 2
    %s23 = sadd.s32 1, %s18
    %p24 = scmp.ge.s32.totalorder %s23, 2
    %s25 = scalar_select %p24, 0, %s23
    %s26 = sadd.s32 1, %s17
    %s27 = scalar_select %p24, %s26, %s17
    %p28 = scmp.ge.s32.totalorder %s27, 2
    %s29 = scalar_select %p28, 0, %s27
    %s30 = ssub.s32 1, %s17
    %s31 = smul.u32 %s18, %s30
    %s32 = sadd.s32 %s31, %s17
    %s33 = ssub.s32 1, %s29
    %s34 = smul.u32 %s25, %s33
    %s35 = sadd.s32 %s34, %s29
    %s36 = ssub.s32 %s32, %s35
    %p37 = scmp.eq.s32.totalorder %s36, 0
    %s39 = sadd.s32 %s38, 1
    %s40 = scalar_select %p37, %s38, %s39
    %p43 = pneg %p37
    %p44 = scmp.eq.s32.totalorder %s10, 3
    %p45 = por %p43, %p44
    %p46 = scmp.ne.s32.totalorder %s38, %s41
    %p47 = scmp.eq.s32.totalorder %s10, 0
    %p48 = por %p46, %p47
    %p49 = scmp.ne.s32.totalorder %s38, %s41
    %p50 = scmp.eq.s32.totalorder %s15, 3
    %p51 = por %p49, %p50
    %p52 = scmp.ne.s32.totalorder %s41, %s42
    %p53 = scmp.eq.s32.totalorder %s15, 0
    %p54 = por %p52, %p53
    %p55 = scmp.ne.s32.totalorder %s41, %s42
    %p56 = scmp.eq.s32.totalorder %s16, 3
    %p57 = por %p55, %p56
    %p59 = scmp.ne.s32.totalorder %s42, %s58
    %p60 = scmp.eq.s32.totalorder %s16, 0
    %p61 = por %p59, %p60
    %s63 = sadd.s32 %s62, 1
    %p66 = scmp.eq.s32.totalorder %s10, 3
    %p67 = scmp.ne.s32.totalorder %s62, %s64
    %p68 = scmp.eq.s32.totalorder %s10, 0
    %p69 = por %p67, %p68
    %p70 = scmp.ne.s32.totalorder %s62, %s64
    %p71 = scmp.eq.s32.totalorder %s15, 3
    %p72 = por %p70, %p71
    %p73 = scmp.ne.s32.totalorder %s64, %s65
    %p74 = scmp.eq.s32.totalorder %s15, 0
    %p75 = por %p73, %p74
    %p76 = scmp.ne.s32.totalorder %s64, %s65
    %p77 = scmp.eq.s32.totalorder %s16, 3
    %p78 = por %p76, %p77
    %p80 = scmp.ne.s32.totalorder %s65, %s79
    %p81 = scmp.eq.s32.totalorder %s16, 0
    %p82 = por %p80, %p81
    %s84 = sadd.s32 %s83, 1
    %p87 = scmp.eq.s32.totalorder %s10, 3
    %p88 = scmp.ne.s32.totalorder %s83, %s85
    %p89 = scmp.eq.s32.totalorder %s10, 0
    %p90 = por %p88, %p89
    %p91 = scmp.ne.s32.totalorder %s83, %s85
    %p92 = scmp.eq.s32.totalorder %s15, 3
    %p93 = por %p91, %p92
    %p94 = scmp.ne.s32.totalorder %s85, %s86
    %p95 = scmp.eq.s32.totalorder %s15, 0
    %p96 = por %p94, %p95
    %p97 = scmp.ne.s32.totalorder %s85, %s86
    %p98 = scmp.eq.s32.totalorder %s16, 3
    %p99 = por %p97, %p98
    %p101 = scmp.ne.s32.totalorder %s86, %s100
    %p102 = scmp.eq.s32.totalorder %s16, 0
    %p103 = por %p101, %p102
    %s105 = sadd.s32 %s104, 1
    %p108 = scmp.eq.s32.totalorder %s10, 3
    %p109 = scmp.ne.s32.totalorder %s104, %s106
    %p110 = scmp.eq.s32.totalorder %s10, 0
    %p111 = por %p109, %p110
    %p112 = scmp.ne.s32.totalorder %s104, %s106
    %p113 = scmp.eq.s32.totalorder %s15, 3
    %p114 = por %p112, %p113
    %p115 = scmp.ne.s32.totalorder %s106, %s107
    %p116 = scmp.eq.s32.totalorder %s15, 0
    %p117 = por %p115, %p116
    %p118 = scmp.ne.s32.totalorder %s106, %s107
    %p119 = scmp.eq.s32.totalorder %s16, 3
    %p120 = por %p118, %p119
    %p122 = scmp.ne.s32.totalorder %s107, %s121
    %p123 = scmp.eq.s32.totalorder %s16, 0
    %p124 = por %p122, %p123
    %s125 = smul.u32 %s18, %s17
    %s126 = smul.u32 %s25, %s29
    %s127 = ssub.s32 %s125, %s126
    %p128 = scmp.eq.s32.totalorder %s127, 0
    %s130 = sadd.s32 %s129, 1
    %s131 = scalar_select %p128, %s129, %s130
    %p134 = pneg %p128
    %p135 = scmp.eq.s32.totalorder %s10, 3
    %p136 = por %p134, %p135
    %p137 = scmp.ne.s32.totalorder %s129, %s132
    %p138 = scmp.eq.s32.totalorder %s10, 0
    %p139 = por %p137, %p138
    %p140 = scmp.ne.s32.totalorder %s129, %s132
    %p141 = scmp.eq.s32.totalorder %s15, 3
    %p142 = por %p140, %p141
    %p143 = scmp.ne.s32.totalorder %s132, %s133
    %p144 = scmp.eq.s32.totalorder %s15, 0
    %p145 = por %p143, %p144
    %p146 = scmp.ne.s32.totalorder %s132, %s133
    %p147 = scmp.eq.s32.totalorder %s16, 3
    %p148 = por %p146, %p147
    %p150 = scmp.ne.s32.totalorder %s133, %s149
    %p151 = scmp.eq.s32.totalorder %s16, 0
    %p152 = por %p150, %p151
    %p153 = scmp.le.s32.totalorder 1, %s10
    %p154 = scmp.lt.s32.totalorder %s10, 5
    %p155 = pnand %p153, %p154
    %p156 = pneg %p155
    // Predicated region
    $region9: #{discriminator_forward.6} parent=5 // pred_check
      _
    $region10: #{discriminator_forward.6} parent=5 // pred_check_branch
      %158 = sbr.rel (%p155) target = $region12
    $region11: #{discriminator_forward.6} parent=5 // pred_region
      %s159 = ssub.s32 %s10, 1
      // Predicated region
      $region13: #{discriminator_forward.6} parent=11 // pred_check
        %p160 = pneg %p75
      $region14: #{discriminator_forward.6} parent=11 // pred_check_branch
        %162 = sbr.rel (%p160) target = $region16
      $region15: #{discriminator_forward.6} parent=11 // pred_region
        _
      $region16: #{discriminator_forward.6} parent=11 // pred_fallthru
        _
      // Predicated region
      $region17: #{discriminator_forward.6} parent=11 // pred_check
        %p163 = pneg %p96
      $region18: #{discriminator_forward.6} parent=11 // pred_check_branch
        %165 = sbr.rel (%p163) target = $region20
      $region19: #{discriminator_forward.6} parent=11 // pred_region
        _
      $region20: #{discriminator_forward.6} parent=11 // pred_fallthru
        _
      // Predicated region
      $region21: #{discriminator_forward.6} parent=11 // pred_check
        %p166 = pneg %p117
      $region22: #{discriminator_forward.6} parent=11 // pred_check_branch
        %168 = sbr.rel (%p166) target = $region24
      $region23: #{discriminator_forward.6} parent=11 // pred_region
        _
      $region24: #{discriminator_forward.6} parent=11 // pred_fallthru
        _
    $region12: #{discriminator_forward.6} parent=5 // pred_fallthru
      _
    %p169 = scmp.lt.s32.totalorder %s10, 4
    // Predicated region
    $region25: #{discriminator_forward.6} parent=5 // pred_check
      %p170 = pneg %p169
    $region26: #{discriminator_forward.6} parent=5 // pred_check_branch
      %172 = sbr.rel (%p170) target = $region28
    $region27: #{discriminator_forward.6} parent=5 // pred_region
      // Predicated region
      $region29: #{discriminator_forward.6} parent=27 // pred_check
        %p173 = pneg %p48
      $region30: #{discriminator_forward.6} parent=27 // pred_check_branch
        %175 = sbr.rel (%p173) target = $region32
      $region31: #{discriminator_forward.6} parent=27 // pred_region
        %s176 = ssub.s32 1, %s17
        %s177 = smul.u32 %s18, %s176
        %s178 = sadd.s32 %s177, %s17
        %p179 = scmp.lt.s32.totalorder %s178, 1
        %s180 = scalar_select %p179, %s178, 1
        %s181 = smul.addr %s180, 64
        %s182 = smul.addr %s181, 4
        %s183 = scalar_lea.vmem %s0, %s182
        %s184 = ssub.s32 1, %s17
        %s185 = smul.u32 %s18, %s184
        %s186 = sadd.s32 %s185, %s17
      $region32: #{discriminator_forward.6} parent=27 // pred_fallthru
        _
    $region28: #{discriminator_forward.6} parent=5 // pred_fallthru
      _
    %p187 = scmp.le.s32.totalorder 1, %s10
    %p188 = scmp.lt.s32.totalorder %s10, 5
    %p189 = pnand %p187, %p188
    %p190 = pneg %p189
    // Predicated region
    $region33: #{discriminator_forward.6} parent=5 // pred_check
      _
    $region34: #{discriminator_forward.6} parent=5 // pred_check_branch
      %192 = sbr.rel (%p189) target = $region36
    $region35: #{discriminator_forward.6} parent=5 // pred_region
      %s193 = ssub.s32 %s10, 1
      %s194 = ssub.s32 1, %s19
      %s195 = smul.u32 %s20, %s194
      %s196 = sadd.s32 %s195, %s19
      %p197 = scmp.lt.s32.totalorder %s196, 1
      %s198 = scalar_select %p197, %s196, 1
      %s199 = smul.addr %s198, 64
      %s200 = smul.addr %s199, 4
      %s201 = scalar_lea.vmem %s0, %s200
      %p202 = pneg %p54
      %p203 = pneg %p51
      %p204 = pneg %p75
      %p205 = pneg %p72
      %p206 = pneg %p96
      %p207 = pneg %p93
      %p208 = pneg %p117
      %p209 = pneg %p114
      %p210 = pneg %p145
      %p211 = pneg %p142
      %s212 = smul.u32 %s20, %s19
      %p213 = scmp.lt.s32.totalorder %s212, 1
      %s214 = scalar_select %p213, %s212, 1
      %s215 = smul.addr %s214, 8
      %s216 = smul.addr %s215, 8
      %s217 = scalar_lea.vmem %s4, %s216
      %s218 = ssub.s32 1, %s19
      %s219 = smul.u32 %s20, %s218
      %s220 = sadd.s32 %s219, %s19
      %p221 = scmp.lt.s32.totalorder %s220, 1
      %s222 = scalar_select %p221, %s220, 1
      %s223 = smul.addr %s222, 64
      %s224 = smul.addr %s223, 4
      %s225 = scalar_lea.vmem %s0, %s224
      %s226 = ssub.s32 1, %s19
      %s227 = smul.u32 %s20, %s226
      %s228 = sadd.s32 %s227, %s19
      %s229 = smul.u32 %s20, %s19
      %p230 = scmp.lt.s32.totalorder %s229, 1
      %s231 = scalar_select %p230, %s229, 1
      %s232 = smul.addr %s231, 8
      %s233 = smul.addr %s232, 8
      %s234 = scalar_lea.vmem %s4, %s233
      %s235 = smul.u32 %s20, %s19
      %p236 = scmp.eq.s32.totalorder %s19, 0
      // Predicated region
      $region37: #{discriminator_forward.6} parent=35 // pred_check
        %p237 = pneg %p236
      $region38: #{discriminator_forward.6} parent=35 // pred_check_branch
        %239 = sbr.rel (%p237) target = $region40
      $region39: #{discriminator_forward.6} parent=35 // pred_region
        %p240 = scmp.eq.s32.totalorder %s20, 0
        // Predicated region
        $region41: #{discriminator_forward.6} parent=39 // pred_check
          %p241 = pneg %p240
        $region42: #{discriminator_forward.6} parent=39 // pred_check_branch
          %243 = sbr.rel (%p241) target = $region44
        $region43: #{discriminator_forward.6} parent=39 // pred_region
          %vm244 = vcmask 7168
          %245 = vst.msk [vmem:[#allocation3] sm:$0xff] %vm244, 0.0
          %246 = vst.msk [vmem:[#allocation3 + $0x8] sm:$0xff] %vm244, 0.0
          %247 = vst.msk [vmem:[#allocation3 + $0x10] sm:$0xff] %vm244, 0.0
          %248 = vst.msk [vmem:[#allocation3 + $0x18] sm:$0xff] %vm244, 0.0
          %249 = vst.msk [vmem:[#allocation3 + $0x20] sm:$0xff] %vm244, 0.0
          %250 = vst.msk [vmem:[#allocation3 + $0x28] sm:$0xff] %vm244, 0.0
          %251 = vst.msk [vmem:[#allocation3 + $0x30] sm:$0xff] %vm244, 0.0
          %252 = vst.msk [vmem:[#allocation3 + $0x38] sm:$0xff] %vm244, 0.0
        $region44: #{discriminator_forward.6} parent=39 // pred_fallthru
          _
        %v253 = vld [vmem:[%s1] sm:$0xff]
        %v254 = vld [vmem:[%s1 + $0x8] sm:$0xff]
        %v255 = vld [vmem:[%s1 + $0x10] sm:$0xff]
        %v256 = vld [vmem:[%s1 + $0x18] sm:$0xff]
        %v257 = vld [vmem:[%s1 + $0x20] sm:$0xff]
        %v258 = vld [vmem:[%s1 + $0x28] sm:$0xff]
        %v259 = vld [vmem:[%s1 + $0x30] sm:$0xff]
        %v260 = vld [vmem:[%s1 + $0x38] sm:$0xff]
        %v261 = vld [vmem:[%s1 + $0x40] sm:$0xff]
        %v262 = vld [vmem:[%s1 + $0x48] sm:$0xff]
        %v263 = vld [vmem:[%s1 + $0x50] sm:$0xff]
        %v264 = vld [vmem:[%s1 + $0x58] sm:$0xff]
        %v265 = vld [vmem:[%s1 + $0x60] sm:$0xff]
        %v266 = vld [vmem:[%s1 + $0x68] sm:$0xff]
        %v267 = vld [vmem:[%s1 + $0x70] sm:$0xff]
        %v268 = vld [vmem:[%s1 + $0x78] sm:$0xff]
        %v269 = vld [vmem:[%s225] sm:$0xf]
        %v270 = vld [vmem:[%s225 + $0x4] sm:$0xf]
        %v271 = vld [vmem:[%s225 + $0x8] sm:$0xf]
        %v272 = vld [vmem:[%s225 + $0xc] sm:$0xf]
        %v273 = vld [vmem:[%s225 + $0x10] sm:$0xf]
        %v274 = vld [vmem:[%s225 + $0x14] sm:$0xf]
        %v275 = vld [vmem:[%s225 + $0x18] sm:$0xf]
        %v276 = vld [vmem:[%s225 + $0x1c] sm:$0xf]
        %v277 = vld [vmem:[%s225 + $0x20] sm:$0xf]
        %v278 = vld [vmem:[%s225 + $0x24] sm:$0xf]
        %v279 = vld [vmem:[%s225 + $0x28] sm:$0xf]
        %v280 = vld [vmem:[%s225 + $0x2c] sm:$0xf]
        %v281 = vld [vmem:[%s225 + $0x30] sm:$0xf]
        %v282 = vld [vmem:[%s225 + $0x34] sm:$0xf]
        %v283 = vld [vmem:[%s225 + $0x38] sm:$0xf]
        %v284 = vld [vmem:[%s225 + $0x3c] sm:$0xf]
        %v285 = vld [vmem:[%s225 + $0x40] sm:$0xf]
        %v286 = vld [vmem:[%s225 + $0x44] sm:$0xf]
        %v287 = vld [vmem:[%s225 + $0x48] sm:$0xf]
        %v288 = vld [vmem:[%s225 + $0x4c] sm:$0xf]
        %v289 = vld [vmem:[%s225 + $0x50] sm:$0xf]
        %v290 = vld [vmem:[%s225 + $0x54] sm:$0xf]
        %v291 = vld [vmem:[%s225 + $0x58] sm:$0xf]
        %v292 = vld [vmem:[%s225 + $0x5c] sm:$0xf]
        %v293 = vld [vmem:[%s225 + $0x60] sm:$0xf]
        %v294 = vld [vmem:[%s225 + $0x64] sm:$0xf]
        %v295 = vld [vmem:[%s225 + $0x68] sm:$0xf]
        %v296 = vld [vmem:[%s225 + $0x6c] sm:$0xf]
        %v297 = vld [vmem:[%s225 + $0x70] sm:$0xf]
        %v298 = vld [vmem:[%s225 + $0x74] sm:$0xf]
        %v299 = vld [vmem:[%s225 + $0x78] sm:$0xf]
        %v300 = vld [vmem:[%s225 + $0x7c] sm:$0xf]
        %v301 = vld [vmem:[%s225 + $0x80] sm:$0xf]
        %v302 = vld [vmem:[%s225 + $0x84] sm:$0xf]
        %v303 = vld [vmem:[%s225 + $0x88] sm:$0xf]
        %v304 = vld [vmem:[%s225 + $0x8c] sm:$0xf]
        %v305 = vld [vmem:[%s225 + $0x90] sm:$0xf]
        %v306 = vld [vmem:[%s225 + $0x94] sm:$0xf]
        %v307 = vld [vmem:[%s225 + $0x98] sm:$0xf]
        %v308 = vld [vmem:[%s225 + $0x9c] sm:$0xf]
        %v309 = vld [vmem:[%s225 + $0xa0] sm:$0xf]
        %v310 = vld [vmem:[%s225 + $0xa4] sm:$0xf]
        %v311 = vld [vmem:[%s225 + $0xa8] sm:$0xf]
        %v312 = vld [vmem:[%s225 + $0xac] sm:$0xf]
        %v313 = vld [vmem:[%s225 + $0xb0] sm:$0xf]
        %v314 = vld [vmem:[%s225 + $0xb4] sm:$0xf]
        %v315 = vld [vmem:[%s225 + $0xb8] sm:$0xf]
        %v316 = vld [vmem:[%s225 + $0xbc] sm:$0xf]
        %v317 = vld [vmem:[%s225 + $0xc0] sm:$0xf]
        %v318 = vld [vmem:[%s225 + $0xc4] sm:$0xf]
        %v319 = vld [vmem:[%s225 + $0xc8] sm:$0xf]
        %v320 = vld [vmem:[%s225 + $0xcc] sm:$0xf]
        %v321 = vld [vmem:[%s225 + $0xd0] sm:$0xf]
        %v322 = vld [vmem:[%s225 + $0xd4] sm:$0xf]
        %v323 = vld [vmem:[%s225 + $0xd8] sm:$0xf]
        %v324 = vld [vmem:[%s225 + $0xdc] sm:$0xf]
        %v325 = vld [vmem:[%s225 + $0xe0] sm:$0xf]
        %v326 = vld [vmem:[%s225 + $0xe4] sm:$0xf]
        %v327 = vld [vmem:[%s225 + $0xe8] sm:$0xf]
        %v328 = vld [vmem:[%s225 + $0xec] sm:$0xf]
        %v329 = vld [vmem:[%s225 + $0xf0] sm:$0xf]
        %v330 = vld [vmem:[%s225 + $0xf4] sm:$0xf]
        %v331 = vld [vmem:[%s225 + $0xf8] sm:$0xf]
        %v332 = vld [vmem:[%s225 + $0xfc] sm:$0xf]
        %v349 = vunpack.c.l.b16 %v253
        %v350 = vunpack.c.h.b16 %v253
        %v351 = vunpack.c.l.b16 %v254
        %v352 = vunpack.c.h.b16 %v254
        %v353 = vunpack.c.l.b16 %v255
        %v354 = vunpack.c.h.b16 %v255
        %v355 = vunpack.c.l.b16 %v256
        %v356 = vunpack.c.h.b16 %v256
        %v357 = vunpack.c.l.b16 %v257
        %v358 = vunpack.c.h.b16 %v257
        %v359 = vunpack.c.l.b16 %v258
        %v360 = vunpack.c.h.b16 %v258
        %v361 = vunpack.c.l.b16 %v259
        %v362 = vunpack.c.h.b16 %v259
        %v363 = vunpack.c.l.b16 %v260
        %v364 = vunpack.c.h.b16 %v260
        %v365 = vunpack.c.l.b16 %v261
        %v366 = vunpack.c.h.b16 %v261
        %v367 = vunpack.c.l.b16 %v262
        %v368 = vunpack.c.h.b16 %v262
        %v369 = vunpack.c.l.b16 %v263
        %v370 = vunpack.c.h.b16 %v263
        %v371 = vunpack.c.l.b16 %v264
        %v372 = vunpack.c.h.b16 %v264
        %v373 = vunpack.c.l.b16 %v265
        %v374 = vunpack.c.h.b16 %v265
        %v375 = vunpack.c.l.b16 %v266
        %v376 = vunpack.c.h.b16 %v266
        %v377 = vunpack.c.l.b16 %v267
        %v378 = vunpack.c.h.b16 %v267
        %v379 = vunpack.c.l.b16 %v268
        %v380 = vunpack.c.h.b16 %v268
        %v381 = vpack.c.b16 %v353, %v349
        %v382 = vpack.c.b16 %v354, %v350
        %v383 = vpack.c.b16 %v355, %v351
        %v384 = vpack.c.b16 %v356, %v352
        %v385 = vpack.c.b16 %v361, %v357
        %v386 = vpack.c.b16 %v362, %v358
        %v387 = vpack.c.b16 %v363, %v359
        %v388 = vpack.c.b16 %v364, %v360
        %v389 = vpack.c.b16 %v369, %v365
        %v390 = vpack.c.b16 %v370, %v366
        %v391 = vpack.c.b16 %v371, %v367
        %v392 = vpack.c.b16 %v372, %v368
        %v393 = vpack.c.b16 %v377, %v373
        %v394 = vpack.c.b16 %v378, %v374
        %v395 = vpack.c.b16 %v379, %v375
        %v396 = vpack.c.b16 %v380, %v376
        %v477 = vunpack.c.l.b16 %v269
        %v478 = vunpack.c.l.b16 %v270
        %v479 = vunpack.c.l.b16 %v271
        %v480 = vunpack.c.l.b16 %v272
        %v481 = vunpack.c.l.b16 %v273
        %v482 = vunpack.c.l.b16 %v274
        %v483 = vunpack.c.l.b16 %v275
        %v484 = vunpack.c.l.b16 %v276
        %v485 = vunpack.c.l.b16 %v277
        %v486 = vunpack.c.l.b16 %v278
        %v487 = vunpack.c.l.b16 %v279
        %v488 = vunpack.c.l.b16 %v280
        %v489 = vunpack.c.l.b16 %v281
        %v490 = vunpack.c.l.b16 %v282
        %v491 = vunpack.c.l.b16 %v283
        %v492 = vunpack.c.l.b16 %v284
        %v493 = vunpack.c.l.b16 %v285
        %v494 = vunpack.c.l.b16 %v286
        %v495 = vunpack.c.l.b16 %v287
        %v496 = vunpack.c.l.b16 %v288
        %v497 = vunpack.c.l.b16 %v289
        %v498 = vunpack.c.l.b16 %v290
        %v499 = vunpack.c.l.b16 %v291
        %v500 = vunpack.c.l.b16 %v292
        %v501 = vunpack.c.l.b16 %v293
        %v502 = vunpack.c.l.b16 %v294
        %v503 = vunpack.c.l.b16 %v295
        %v504 = vunpack.c.l.b16 %v296
        %v505 = vunpack.c.l.b16 %v297
        %v506 = vunpack.c.l.b16 %v298
        %v507 = vunpack.c.l.b16 %v299
        %v508 = vunpack.c.l.b16 %v300
        %v509 = vunpack.c.l.b16 %v301
        %v510 = vunpack.c.l.b16 %v302
        %v511 = vunpack.c.l.b16 %v303
        %v512 = vunpack.c.l.b16 %v304
        %v513 = vunpack.c.l.b16 %v305
        %v514 = vunpack.c.l.b16 %v306
        %v515 = vunpack.c.l.b16 %v307
        %v516 = vunpack.c.l.b16 %v308
        %v517 = vunpack.c.l.b16 %v309
        %v518 = vunpack.c.l.b16 %v310
        %v519 = vunpack.c.l.b16 %v311
        %v520 = vunpack.c.l.b16 %v312
        %v521 = vunpack.c.l.b16 %v313
        %v522 = vunpack.c.l.b16 %v314
        %v523 = vunpack.c.l.b16 %v315
        %v524 = vunpack.c.l.b16 %v316
        %v525 = vunpack.c.l.b16 %v317
        %v526 = vunpack.c.l.b16 %v318
        %v527 = vunpack.c.l.b16 %v319
        %v528 = vunpack.c.l.b16 %v320
        %v529 = vunpack.c.l.b16 %v321
        %v530 = vunpack.c.l.b16 %v322
        %v531 = vunpack.c.l.b16 %v323
        %v532 = vunpack.c.l.b16 %v324
        %v533 = vunpack.c.l.b16 %v325
        %v534 = vunpack.c.l.b16 %v326
        %v535 = vunpack.c.l.b16 %v327
        %v536 = vunpack.c.l.b16 %v328
        %v537 = vunpack.c.l.b16 %v329
        %v538 = vunpack.c.l.b16 %v330
        %v539 = vunpack.c.l.b16 %v331
        %v540 = vunpack.c.l.b16 %v332
        %v541 = vpack.c.b16 %v478, %v477
        %v542 = vpack.c.b16 %v480, %v479
        %v543 = vpack.c.b16 %v482, %v481
        %v544 = vpack.c.b16 %v484, %v483
        %v545 = vpack.c.b16 %v486, %v485
        %v546 = vpack.c.b16 %v488, %v487
        %v547 = vpack.c.b16 %v490, %v489
        %v548 = vpack.c.b16 %v492, %v491
        %v549 = vpack.c.b16 %v494, %v493
        %v550 = vpack.c.b16 %v496, %v495
        %v551 = vpack.c.b16 %v498, %v497
        %v552 = vpack.c.b16 %v500, %v499
        %v553 = vpack.c.b16 %v502, %v501
        %v554 = vpack.c.b16 %v504, %v503
        %v555 = vpack.c.b16 %v506, %v505
        %v556 = vpack.c.b16 %v508, %v507
        %v557 = vpack.c.b16 %v510, %v509
        %v558 = vpack.c.b16 %v512, %v511
        %v559 = vpack.c.b16 %v514, %v513
        %v560 = vpack.c.b16 %v516, %v515
        %v561 = vpack.c.b16 %v518, %v517
        %v562 = vpack.c.b16 %v520, %v519
        %v563 = vpack.c.b16 %v522, %v521
        %v564 = vpack.c.b16 %v524, %v523
        %v565 = vpack.c.b16 %v526, %v525
        %v566 = vpack.c.b16 %v528, %v527
        %v567 = vpack.c.b16 %v530, %v529
        %v568 = vpack.c.b16 %v532, %v531
        %v569 = vpack.c.b16 %v534, %v533
        %v570 = vpack.c.b16 %v536, %v535
        %v571 = vpack.c.b16 %v538, %v537
        %v572 = vpack.c.b16 %v540, %v539
        %605 = vmatpush.bf16.msra.mxu0 %v548
        %606 = vmatpush.bf16.msra.mxu0 %v547
        %607 = vmatpush.bf16.msra.mxu0 %v546
        %608 = vmatpush.bf16.msra.mxu0 %v545
        %609 = vmatpush.bf16.msra.mxu0 %v544
        %610 = vmatpush.bf16.msra.mxu0 %v543
        %611 = vmatpush.bf16.msra.mxu0 %v542
        %612 = vmatpush.bf16.msra.mxu0 %v541
        %613 = vmatmul.bf16.gmra.mxu0 %v381
        %v614 = vpop.f32.mrf.mxu0
        %v615 = vadd.f32 0.0, %v614
        %v616 = vpop.f32.mrf.mxu0
        %v617 = vadd.f32 0.0, %v616
        %618 = vmatmul.bf16.gmra.mxu0 %v385
        %v619 = vpop.f32.mrf.mxu0
        %v620 = vadd.f32 0.0, %v619
        %v621 = vpop.f32.mrf.mxu0
        %v622 = vadd.f32 0.0, %v621
        %623 = vmatmul.bf16.gmra.mxu0 %v389
        %v624 = vpop.f32.mrf.mxu0
        %v625 = vadd.f32 0.0, %v624
        %v626 = vpop.f32.mrf.mxu0
        %v627 = vadd.f32 0.0, %v626
        %628 = vmatmul.bf16.gmra.mxu0 %v393
        %v629 = vpop.f32.mrf.mxu0
        %v630 = vadd.f32 0.0, %v629
        %v631 = vpop.f32.mrf.mxu0
        %v632 = vadd.f32 0.0, %v631
        %633 = vdwg.mxu0
        %634 = vmatpush.bf16.msra.mxu0 %v556
        %635 = vmatpush.bf16.msra.mxu0 %v555
        %636 = vmatpush.bf16.msra.mxu0 %v554
        %637 = vmatpush.bf16.msra.mxu0 %v553
        %638 = vmatpush.bf16.msra.mxu0 %v552
        %639 = vmatpush.bf16.msra.mxu0 %v551
        %640 = vmatpush.bf16.msra.mxu0 %v550
        %641 = vmatpush.bf16.msra.mxu0 %v549
        %642 = vmatmul.bf16.gmra.mxu0 %v382
        %v643 = vpop.f32.mrf.mxu0
        %v644 = vadd.f32 %v615, %v643
        %v645 = vpop.f32.mrf.mxu0
        %v646 = vadd.f32 %v617, %v645
        %647 = vmatmul.bf16.gmra.mxu0 %v386
        %v648 = vpop.f32.mrf.mxu0
        %v649 = vadd.f32 %v620, %v648
        %v650 = vpop.f32.mrf.mxu0
        %v651 = vadd.f32 %v622, %v650
        %652 = vmatmul.bf16.gmra.mxu0 %v390
        %v653 = vpop.f32.mrf.mxu0
        %v654 = vadd.f32 %v625, %v653
        %v655 = vpop.f32.mrf.mxu0
        %v656 = vadd.f32 %v627, %v655
        %657 = vmatmul.bf16.gmra.mxu0 %v394
        %v658 = vpop.f32.mrf.mxu0
        %v659 = vadd.f32 %v630, %v658
        %v660 = vpop.f32.mrf.mxu0
        %v661 = vadd.f32 %v632, %v660
        %662 = vdwg.mxu0
        %663 = vmatpush.bf16.msra.mxu0 %v564
        %664 = vmatpush.bf16.msra.mxu0 %v563
        %665 = vmatpush.bf16.msra.mxu0 %v562
        %666 = vmatpush.bf16.msra.mxu0 %v561
        %667 = vmatpush.bf16.msra.mxu0 %v560
        %668 = vmatpush.bf16.msra.mxu0 %v559
        %669 = vmatpush.bf16.msra.mxu0 %v558
        %670 = vmatpush.bf16.msra.mxu0 %v557
        %671 = vmatmul.bf16.gmra.mxu0 %v383
        %v672 = vpop.f32.mrf.mxu0
        %v673 = vadd.f32 %v644, %v672
        %v674 = vpop.f32.mrf.mxu0
        %v675 = vadd.f32 %v646, %v674
        %676 = vmatmul.bf16.gmra.mxu0 %v387
        %v677 = vpop.f32.mrf.mxu0
        %v678 = vadd.f32 %v649, %v677
        %v679 = vpop.f32.mrf.mxu0
        %v680 = vadd.f32 %v651, %v679
        %681 = vmatmul.bf16.gmra.mxu0 %v391
        %v682 = vpop.f32.mrf.mxu0
        %v683 = vadd.f32 %v654, %v682
        %v684 = vpop.f32.mrf.mxu0
        %v685 = vadd.f32 %v656, %v684
        %686 = vmatmul.bf16.gmra.mxu0 %v395
        %v687 = vpop.f32.mrf.mxu0
        %v688 = vadd.f32 %v659, %v687
        %v689 = vpop.f32.mrf.mxu0
        %v690 = vadd.f32 %v661, %v689
        %691 = vdwg.mxu0
        %692 = vmatpush.bf16.msra.mxu0 %v572
        %693 = vmatpush.bf16.msra.mxu0 %v571
        %694 = vmatpush.bf16.msra.mxu0 %v570
        %695 = vmatpush.bf16.msra.mxu0 %v569
        %696 = vmatpush.bf16.msra.mxu0 %v568
        %697 = vmatpush.bf16.msra.mxu0 %v567
        %698 = vmatpush.bf16.msra.mxu0 %v566
        %699 = vmatpush.bf16.msra.mxu0 %v565
        %700 = vmatmul.bf16.gmra.mxu0 %v384
        %v701 = vpop.f32.mrf.mxu0
        %v702 = vadd.f32 %v673, %v701
        %v703 = vpop.f32.mrf.mxu0
        %v704 = vadd.f32 %v675, %v703
        %705 = vmatmul.bf16.gmra.mxu0 %v388
        %v706 = vpop.f32.mrf.mxu0
        %v707 = vadd.f32 %v678, %v706
        %v708 = vpop.f32.mrf.mxu0
        %v709 = vadd.f32 %v680, %v708
        %710 = vmatmul.bf16.gmra.mxu0 %v392
        %v711 = vpop.f32.mrf.mxu0
        %v712 = vadd.f32 %v683, %v711
        %v713 = vpop.f32.mrf.mxu0
        %v714 = vadd.f32 %v685, %v713
        %715 = vmatmul.bf16.gmra.mxu0 %v396
        %v716 = vpop.f32.mrf.mxu0
        %v717 = vadd.f32 %v688, %v716
        %v718 = vpop.f32.mrf.mxu0
        %v719 = vadd.f32 %v690, %v718
        %720 = vdwg.mxu0
        %s721 = smul.u32 %s20, 64
        %s722 = scalar_lea.vmem [#allocation2], %s721
        %vm723 = vcmask 523264
        %724 = vst.msk [vmem:[%s722] sm:$0xff] %vm723, %v702
        %725 = vst.msk [vmem:[%s722 + $0x8] sm:$0xff] %vm723, %v704
        %726 = vst.msk [vmem:[%s722 + $0x10] sm:$0xff] %vm723, %v707
        %727 = vst.msk [vmem:[%s722 + $0x18] sm:$0xff] %vm723, %v709
        %728 = vst.msk [vmem:[%s722 + $0x20] sm:$0xff] %vm723, %v712
        %729 = vst.msk [vmem:[%s722 + $0x28] sm:$0xff] %vm723, %v714
        %730 = vst.msk [vmem:[%s722 + $0x30] sm:$0xff] %vm723, %v717
        %731 = vst.msk [vmem:[%s722 + $0x38] sm:$0xff] %vm723, %v719
        %v732 = vld [vmem:[#allocation3] sm:$0xff]
        %v733 = vld [vmem:[#allocation3 + $0x8] sm:$0xff]
        %v734 = vld [vmem:[#allocation3 + $0x10] sm:$0xff]
        %v735 = vld [vmem:[#allocation3 + $0x18] sm:$0xff]
        %v736 = vld [vmem:[#allocation3 + $0x20] sm:$0xff]
        %v737 = vld [vmem:[#allocation3 + $0x28] sm:$0xff]
        %v738 = vld [vmem:[#allocation3 + $0x30] sm:$0xff]
        %v739 = vld [vmem:[#allocation3 + $0x38] sm:$0xff]
        %v740 = vsel %vm723, %v702, 0.0
        %741 = vadd.xlane.f32.xlu0 %v740
        %v742 = vpop.xlane.xlu0 %741
        %v743 = vsel %vm723, %v704, 0.0
        %744 = vadd.xlane.f32.xlu0 %v743
        %v745 = vpop.xlane.xlu0 %744
        %v746 = vsel %vm723, %v707, 0.0
        %747 = vadd.xlane.f32.xlu0 %v746
        %v748 = vpop.xlane.xlu0 %747
        %v749 = vsel %vm723, %v709, 0.0
        %750 = vadd.xlane.f32.xlu0 %v749
        %v751 = vpop.xlane.xlu0 %750
        %v752 = vsel %vm723, %v712, 0.0
        %753 = vadd.xlane.f32.xlu0 %v752
        %v754 = vpop.xlane.xlu0 %753
        %v755 = vsel %vm723, %v714, 0.0
        %756 = vadd.xlane.f32.xlu0 %v755
        %v757 = vpop.xlane.xlu0 %756
        %v758 = vsel %vm723, %v717, 0.0
        %759 = vadd.xlane.f32.xlu0 %v758
        %v760 = vpop.xlane.xlu0 %759
        %v761 = vsel %vm723, %v719, 0.0
        %762 = vadd.xlane.f32.xlu0 %v761
        %v763 = vpop.xlane.xlu0 %762
        %v764 = vadd.f32 %v732, %v742
        %v765 = vadd.f32 %v733, %v745
        %v766 = vadd.f32 %v734, %v748
        %v767 = vadd.f32 %v735, %v751
        %v768 = vadd.f32 %v736, %v754
        %v769 = vadd.f32 %v737, %v757
        %v770 = vadd.f32 %v738, %v760
        %v771 = vadd.f32 %v739, %v763
        %vm772 = vcmask 7168
        %773 = vst.msk [vmem:[#allocation3] sm:$0xff] %vm772, %v764
        %774 = vst.msk [vmem:[#allocation3 + $0x8] sm:$0xff] %vm772, %v765
        %775 = vst.msk [vmem:[#allocation3 + $0x10] sm:$0xff] %vm772, %v766
        %776 = vst.msk [vmem:[#allocation3 + $0x18] sm:$0xff] %vm772, %v767
        %777 = vst.msk [vmem:[#allocation3 + $0x20] sm:$0xff] %vm772, %v768
        %778 = vst.msk [vmem:[#allocation3 + $0x28] sm:$0xff] %vm772, %v769
        %779 = vst.msk [vmem:[#allocation3 + $0x30] sm:$0xff] %vm772, %v770
        %780 = vst.msk [vmem:[#allocation3 + $0x38] sm:$0xff] %vm772, %v771
      $region40: #{discriminator_forward.6} parent=35 // pred_fallthru
        _
      %p781 = scmp.eq.s32.totalorder %s19, 1
      // Predicated region
      $region45: #{discriminator_forward.6} parent=35 // pred_check
        %p782 = pneg %p781
      $region46: #{discriminator_forward.6} parent=35 // pred_check_branch
        %784 = sbr.rel (%p782) target = $region48
      $region47: #{discriminator_forward.6} parent=35 // pred_region
        %v785 = vld [vmem:[#allocation3] sm:$0xff]
        %v786 = vld [vmem:[#allocation3 + $0x8] sm:$0xff]
        %v787 = vld [vmem:[#allocation3 + $0x10] sm:$0xff]
        %v788 = vld [vmem:[#allocation3 + $0x18] sm:$0xff]
        %v789 = vld [vmem:[#allocation3 + $0x20] sm:$0xff]
        %v790 = vld [vmem:[#allocation3 + $0x28] sm:$0xff]
        %v791 = vld [vmem:[#allocation3 + $0x30] sm:$0xff]
        %v792 = vld [vmem:[#allocation3 + $0x38] sm:$0xff]
        %v793 = vmul.f32 %v785, 0.0078125
        %v794 = vmul.f32 %v786, 0.0078125
        %v795 = vmul.f32 %v787, 0.0078125
        %v796 = vmul.f32 %v788, 0.0078125
        %v797 = vmul.f32 %v789, 0.0078125
        %v798 = vmul.f32 %v790, 0.0078125
        %v799 = vmul.f32 %v791, 0.0078125
        %v800 = vmul.f32 %v792, 0.0078125
        %p801 = scmp.eq.s32.totalorder %s20, 0
        // Predicated region
        $region49: #{discriminator_forward.6} parent=47 // pred_check
          %p802 = pneg %p801
        $region50: #{discriminator_forward.6} parent=47 // pred_check_branch
          %804 = sbr.rel (%p802) target = $region52
        $region51: #{discriminator_forward.6} parent=47 // pred_region
          %v805 = vld [vmem:[#allocation2] sm:$0xff]
          %v806 = vld [vmem:[#allocation2 + $0x8] sm:$0xff]
          %v807 = vld [vmem:[#allocation2 + $0x10] sm:$0xff]
          %v808 = vld [vmem:[#allocation2 + $0x18] sm:$0xff]
          %v809 = vld [vmem:[#allocation2 + $0x20] sm:$0xff]
          %v810 = vld [vmem:[#allocation2 + $0x28] sm:$0xff]
          %v811 = vld [vmem:[#allocation2 + $0x30] sm:$0xff]
          %v812 = vld [vmem:[#allocation2 + $0x38] sm:$0xff]
          %814 = vset.pattern.permute.xlu0 0
          %815 = vperm.xlu0 %814, %v793
          %v816 = vpop.permute.xlu0 %815
          %819 = vset.pattern.permute.xlu0 0
          %820 = vperm.xlu0 %819, %v794
          %v821 = vpop.permute.xlu0 %820
          %824 = vset.pattern.permute.xlu0 0
          %825 = vperm.xlu0 %824, %v795
          %v826 = vpop.permute.xlu0 %825
          %829 = vset.pattern.permute.xlu0 0
          %830 = vperm.xlu0 %829, %v796
          %v831 = vpop.permute.xlu0 %830
          %834 = vset.pattern.permute.xlu0 0
          %835 = vperm.xlu0 %834, %v797
          %v836 = vpop.permute.xlu0 %835
          %839 = vset.pattern.permute.xlu0 0
          %840 = vperm.xlu0 %839, %v798
          %v841 = vpop.permute.xlu0 %840
          %844 = vset.pattern.permute.xlu0 0
          %845 = vperm.xlu0 %844, %v799
          %v846 = vpop.permute.xlu0 %845
          %849 = vset.pattern.permute.xlu0 0
          %850 = vperm.xlu0 %849, %v800
          %v851 = vpop.permute.xlu0 %850
          %v853 = vsub.f32 %v805, %v816
          %v854 = vsub.f32 %v806, %v821
          %v855 = vsub.f32 %v807, %v826
          %v856 = vsub.f32 %v808, %v831
          %v857 = vsub.f32 %v809, %v836
          %v858 = vsub.f32 %v810, %v841
          %v859 = vsub.f32 %v811, %v846
          %v860 = vsub.f32 %v812, %v851
          %v861 = vmul.f32 %v853, %v853
          %v862 = vmul.f32 %v854, %v854
          %v863 = vmul.f32 %v855, %v855
          %v864 = vmul.f32 %v856, %v856
          %v865 = vmul.f32 %v857, %v857
          %v866 = vmul.f32 %v858, %v858
          %v867 = vmul.f32 %v859, %v859
          %v868 = vmul.f32 %v860, %v860
          %vm869 = vcmask 523264
          %v870 = vsel %vm869, %v861, 0.0
          %871 = vadd.xlane.f32.xlu0 %v870
          %v872 = vpop.xlane.xlu0 %871
          %v873 = vsel %vm869, %v862, 0.0
          %874 = vadd.xlane.f32.xlu0 %v873
          %v875 = vpop.xlane.xlu0 %874
          %v876 = vsel %vm869, %v863, 0.0
          %877 = vadd.xlane.f32.xlu0 %v876
          %v878 = vpop.xlane.xlu0 %877
          %v879 = vsel %vm869, %v864, 0.0
          %880 = vadd.xlane.f32.xlu0 %v879
          %v881 = vpop.xlane.xlu0 %880
          %v882 = vsel %vm869, %v865, 0.0
          %883 = vadd.xlane.f32.xlu0 %v882
          %v884 = vpop.xlane.xlu0 %883
          %v885 = vsel %vm869, %v866, 0.0
          %886 = vadd.xlane.f32.xlu0 %v885
          %v887 = vpop.xlane.xlu0 %886
          %v888 = vsel %vm869, %v867, 0.0
          %889 = vadd.xlane.f32.xlu0 %v888
          %v890 = vpop.xlane.xlu0 %889
          %v891 = vsel %vm869, %v868, 0.0
          %892 = vadd.xlane.f32.xlu0 %v891
          %v893 = vpop.xlane.xlu0 %892
          %v894 = vadd.f32 %v872, 0.0
          %v895 = vadd.f32 %v875, 0.0
          %v896 = vadd.f32 %v878, 0.0
          %v897 = vadd.f32 %v881, 0.0
          %v898 = vadd.f32 %v884, 0.0
          %v899 = vadd.f32 %v887, 0.0
          %v900 = vadd.f32 %v890, 0.0
          %v901 = vadd.f32 %v893, 0.0
          %s902 = scalar_lea.vmem [#allocation2], 64
          %v903 = vld [vmem:[%s902] sm:$0xff]
          %v904 = vld [vmem:[%s902 + $0x8] sm:$0xff]
          %v905 = vld [vmem:[%s902 + $0x10] sm:$0xff]
          %v906 = vld [vmem:[%s902 + $0x18] sm:$0xff]
          %v907 = vld [vmem:[%s902 + $0x20] sm:$0xff]
          %v908 = vld [vmem:[%s902 + $0x28] sm:$0xff]
          %v909 = vld [vmem:[%s902 + $0x30] sm:$0xff]
          %v910 = vld [vmem:[%s902 + $0x38] sm:$0xff]
          %v911 = vsub.f32 %v903, %v816
          %v912 = vsub.f32 %v904, %v821
          %v913 = vsub.f32 %v905, %v826
          %v914 = vsub.f32 %v906, %v831
          %v915 = vsub.f32 %v907, %v836
          %v916 = vsub.f32 %v908, %v841
          %v917 = vsub.f32 %v909, %v846
          %v918 = vsub.f32 %v910, %v851
          %v919 = vmul.f32 %v911, %v911
          %v920 = vmul.f32 %v912, %v912
          %v921 = vmul.f32 %v913, %v913
          %v922 = vmul.f32 %v914, %v914
          %v923 = vmul.f32 %v915, %v915
          %v924 = vmul.f32 %v916, %v916
          %v925 = vmul.f32 %v917, %v917
          %v926 = vmul.f32 %v918, %v918
          %v927 = vsel %vm869, %v919, 0.0
          %928 = vadd.xlane.f32.xlu0 %v927
          %v929 = vpop.xlane.xlu0 %928
          %v930 = vsel %vm869, %v920, 0.0
          %931 = vadd.xlane.f32.xlu0 %v930
          %v932 = vpop.xlane.xlu0 %931
          %v933 = vsel %vm869, %v921, 0.0
          %934 = vadd.xlane.f32.xlu0 %v933
          %v935 = vpop.xlane.xlu0 %934
          %v936 = vsel %vm869, %v922, 0.0
          %937 = vadd.xlane.f32.xlu0 %v936
          %v938 = vpop.xlane.xlu0 %937
          %v939 = vsel %vm869, %v923, 0.0
          %940 = vadd.xlane.f32.xlu0 %v939
          %v941 = vpop.xlane.xlu0 %940
          %v942 = vsel %vm869, %v924, 0.0
          %943 = vadd.xlane.f32.xlu0 %v942
          %v944 = vpop.xlane.xlu0 %943
          %v945 = vsel %vm869, %v925, 0.0
          %946 = vadd.xlane.f32.xlu0 %v945
          %v947 = vpop.xlane.xlu0 %946
          %v948 = vsel %vm869, %v926, 0.0
          %949 = vadd.xlane.f32.xlu0 %v948
          %v950 = vpop.xlane.xlu0 %949
          %v951 = vadd.f32 %v894, %v929
          %v952 = vadd.f32 %v895, %v932
          %v953 = vadd.f32 %v896, %v935
          %v954 = vadd.f32 %v897, %v938
          %v955 = vadd.f32 %v898, %v941
          %v956 = vadd.f32 %v899, %v944
          %v957 = vadd.f32 %v900, %v947
          %v958 = vadd.f32 %v901, %v950
          %v959 = vmul.f32 %v951, 0.0078125
          %v960 = vmul.f32 %v952, 0.0078125
          %v961 = vmul.f32 %v953, 0.0078125
          %v962 = vmul.f32 %v954, 0.0078125
          %v963 = vmul.f32 %v955, 0.0078125
          %v964 = vmul.f32 %v956, 0.0078125
          %v965 = vmul.f32 %v957, 0.0078125
          %v966 = vmul.f32 %v958, 0.0078125
          %vm967 = vcmask 7168
          %968 = vst.msk [vmem:[#allocation4] sm:$0xff] %vm967, %v959
          %969 = vst.msk [vmem:[#allocation4 + $0x8] sm:$0xff] %vm967, %v960
          %970 = vst.msk [vmem:[#allocation4 + $0x10] sm:$0xff] %vm967, %v961
          %971 = vst.msk [vmem:[#allocation4 + $0x18] sm:$0xff] %vm967, %v962
          %972 = vst.msk [vmem:[#allocation4 + $0x20] sm:$0xff] %vm967, %v963
          %973 = vst.msk [vmem:[#allocation4 + $0x28] sm:$0xff] %vm967, %v964
          %974 = vst.msk [vmem:[#allocation4 + $0x30] sm:$0xff] %vm967, %v965
          %975 = vst.msk [vmem:[#allocation4 + $0x38] sm:$0xff] %vm967, %v966
        $region52: #{discriminator_forward.6} parent=47 // pred_fallthru
          _
        %v976 = vld [vmem:[%s2] sm:$0xff]
        %v977 = vld [vmem:[%s2 + $0x8] sm:$0xff]
        %v978 = vld [vmem:[%s2 + $0x10] sm:$0xff]
        %v979 = vld [vmem:[%s2 + $0x18] sm:$0xff]
        %v980 = vld [vmem:[%s2 + $0x20] sm:$0xff]
        %v981 = vld [vmem:[%s2 + $0x28] sm:$0xff]
        %v982 = vld [vmem:[%s2 + $0x30] sm:$0xff]
        %v983 = vld [vmem:[%s2 + $0x38] sm:$0xff]
        %v984 = vld [vmem:[#allocation4] sm:$0xff]
        %v985 = vld [vmem:[#allocation4 + $0x8] sm:$0xff]
        %v986 = vld [vmem:[#allocation4 + $0x10] sm:$0xff]
        %v987 = vld [vmem:[#allocation4 + $0x18] sm:$0xff]
        %v988 = vld [vmem:[#allocation4 + $0x20] sm:$0xff]
        %v989 = vld [vmem:[#allocation4 + $0x28] sm:$0xff]
        %v990 = vld [vmem:[#allocation4 + $0x30] sm:$0xff]
        %v991 = vld [vmem:[#allocation4 + $0x38] sm:$0xff]
        %v992 = vadd.f32 %v984, 1e-05
        %v993 = vadd.f32 %v985, 1e-05
        %v994 = vadd.f32 %v986, 1e-05
        %v995 = vadd.f32 %v987, 1e-05
        %v996 = vadd.f32 %v988, 1e-05
        %v997 = vadd.f32 %v989, 1e-05
        %v998 = vadd.f32 %v990, 1e-05
        %v999 = vadd.f32 %v991, 1e-05
        %v1000 = vrsqrt.pop %v992
        %v1001 = vmul.f32 %v1000, %v992
        %v1002 = vmul.f32 %v1001, %v1000
        %v1003 = vmul.f32 0.5, %v1002
        %v1004 = vsub.f32 1.5, %v1003
        %v1005 = vmul.f32 %v1000, %v1004
        %vm1006 = vweird.f32 %v992
        %vm1007 = vweird.f32 %v1000
        %vm1008 = vmor %vm1006, %vm1007
        %v1009 = vsel %vm1008, %v1000, %v1005
        %v1010 = vrsqrt.pop %v993
        %v1011 = vmul.f32 %v1010, %v993
        %v1012 = vmul.f32 %v1011, %v1010
        %v1013 = vmul.f32 0.5, %v1012
        %v1014 = vsub.f32 1.5, %v1013
        %v1015 = vmul.f32 %v1010, %v1014
        %vm1016 = vweird.f32 %v993
        %vm1017 = vweird.f32 %v1010
        %vm1018 = vmor %vm1016, %vm1017
        %v1019 = vsel %vm1018, %v1010, %v1015
        %v1020 = vrsqrt.pop %v994
        %v1021 = vmul.f32 %v1020, %v994
        %v1022 = vmul.f32 %v1021, %v1020
        %v1023 = vmul.f32 0.5, %v1022
        %v1024 = vsub.f32 1.5, %v1023
        %v1025 = vmul.f32 %v1020, %v1024
        %vm1026 = vweird.f32 %v994
        %vm1027 = vweird.f32 %v1020
        %vm1028 = vmor %vm1026, %vm1027
        %v1029 = vsel %vm1028, %v1020, %v1025
        %v1030 = vrsqrt.pop %v995
        %v1031 = vmul.f32 %v1030, %v995
        %v1032 = vmul.f32 %v1031, %v1030
        %v1033 = vmul.f32 0.5, %v1032
        %v1034 = vsub.f32 1.5, %v1033
        %v1035 = vmul.f32 %v1030, %v1034
        %vm1036 = vweird.f32 %v995
        %vm1037 = vweird.f32 %v1030
        %vm1038 = vmor %vm1036, %vm1037
        %v1039 = vsel %vm1038, %v1030, %v1035
        %v1040 = vrsqrt.pop %v996
        %v1041 = vmul.f32 %v1040, %v996
        %v1042 = vmul.f32 %v1041, %v1040
        %v1043 = vmul.f32 0.5, %v1042
        %v1044 = vsub.f32 1.5, %v1043
        %v1045 = vmul.f32 %v1040, %v1044
        %vm1046 = vweird.f32 %v996
        %vm1047 = vweird.f32 %v1040
        %vm1048 = vmor %vm1046, %vm1047
        %v1049 = vsel %vm1048, %v1040, %v1045
        %v1050 = vrsqrt.pop %v997
        %v1051 = vmul.f32 %v1050, %v997
        %v1052 = vmul.f32 %v1051, %v1050
        %v1053 = vmul.f32 0.5, %v1052
        %v1054 = vsub.f32 1.5, %v1053
        %v1055 = vmul.f32 %v1050, %v1054
        %vm1056 = vweird.f32 %v997
        %vm1057 = vweird.f32 %v1050
        %vm1058 = vmor %vm1056, %vm1057
        %v1059 = vsel %vm1058, %v1050, %v1055
        %v1060 = vrsqrt.pop %v998
        %v1061 = vmul.f32 %v1060, %v998
        %v1062 = vmul.f32 %v1061, %v1060
        %v1063 = vmul.f32 0.5, %v1062
        %v1064 = vsub.f32 1.5, %v1063
        %v1065 = vmul.f32 %v1060, %v1064
        %vm1066 = vweird.f32 %v998
        %vm1067 = vweird.f32 %v1060
        %vm1068 = vmor %vm1066, %vm1067
        %v1069 = vsel %vm1068, %v1060, %v1065
        %v1070 = vrsqrt.pop %v999
        %v1071 = vmul.f32 %v1070, %v999
        %v1072 = vmul.f32 %v1071, %v1070
        %v1073 = vmul.f32 0.5, %v1072
        %v1074 = vsub.f32 1.5, %v1073
        %v1075 = vmul.f32 %v1070, %v1074
        %vm1076 = vweird.f32 %v999
        %vm1077 = vweird.f32 %v1070
        %vm1078 = vmor %vm1076, %vm1077
        %v1079 = vsel %vm1078, %v1070, %v1075
        %v1080 = vmul.f32 %v976, %v1009
        %v1081 = vmul.f32 %v977, %v1019
        %v1082 = vmul.f32 %v978, %v1029
        %v1083 = vmul.f32 %v979, %v1039
        %v1084 = vmul.f32 %v980, %v1049
        %v1085 = vmul.f32 %v981, %v1059
        %v1086 = vmul.f32 %v982, %v1069
        %v1087 = vmul.f32 %v983, %v1079
        %v1088 = vld [vmem:[%s3] sm:$0xff]
        %v1089 = vld [vmem:[%s3 + $0x8] sm:$0xff]
        %v1090 = vld [vmem:[%s3 + $0x10] sm:$0xff]
        %v1091 = vld [vmem:[%s3 + $0x18] sm:$0xff]
        %v1092 = vld [vmem:[%s3 + $0x20] sm:$0xff]
        %v1093 = vld [vmem:[%s3 + $0x28] sm:$0xff]
        %v1094 = vld [vmem:[%s3 + $0x30] sm:$0xff]
        %v1095 = vld [vmem:[%s3 + $0x38] sm:$0xff]
        %v1096 = vmul.f32 %v793, %v1080
        %v1097 = vmul.f32 %v794, %v1081
        %v1098 = vmul.f32 %v795, %v1082
        %v1099 = vmul.f32 %v796, %v1083
        %v1100 = vmul.f32 %v797, %v1084
        %v1101 = vmul.f32 %v798, %v1085
        %v1102 = vmul.f32 %v799, %v1086
        %v1103 = vmul.f32 %v800, %v1087
        %v1104 = vsub.f32 %v1088, %v1096
        %v1105 = vsub.f32 %v1089, %v1097
        %v1106 = vsub.f32 %v1090, %v1098
        %v1107 = vsub.f32 %v1091, %v1099
        %v1108 = vsub.f32 %v1092, %v1100
        %v1109 = vsub.f32 %v1093, %v1101
        %v1110 = vsub.f32 %v1094, %v1102
        %v1111 = vsub.f32 %v1095, %v1103
        %s1112 = smul.u32 %s20, 64
        %s1113 = scalar_lea.vmem [#allocation2], %s1112
        %v1114 = vld [vmem:[%s1113] sm:$0xff]
        %v1115 = vld [vmem:[%s1113 + $0x8] sm:$0xff]
        %v1116 = vld [vmem:[%s1113 + $0x10] sm:$0xff]
        %v1117 = vld [vmem:[%s1113 + $0x18] sm:$0xff]
        %v1118 = vld [vmem:[%s1113 + $0x20] sm:$0xff]
        %v1119 = vld [vmem:[%s1113 + $0x28] sm:$0xff]
        %v1120 = vld [vmem:[%s1113 + $0x30] sm:$0xff]
        %v1121 = vld [vmem:[%s1113 + $0x38] sm:$0xff]
        %1123 = vset.pattern.permute.xlu0 0
        %1124 = vperm.xlu0 %1123, %v1080
        %v1125 = vpop.permute.xlu0 %1124
        %1128 = vset.pattern.permute.xlu0 0
        %1129 = vperm.xlu0 %1128, %v1081
        %v1130 = vpop.permute.xlu0 %1129
        %1133 = vset.pattern.permute.xlu0 0
        %1134 = vperm.xlu0 %1133, %v1082
        %v1135 = vpop.permute.xlu0 %1134
        %1138 = vset.pattern.permute.xlu0 0
        %1139 = vperm.xlu0 %1138, %v1083
        %v1140 = vpop.permute.xlu0 %1139
        %1143 = vset.pattern.permute.xlu0 0
        %1144 = vperm.xlu0 %1143, %v1084
        %v1145 = vpop.permute.xlu0 %1144
        %1148 = vset.pattern.permute.xlu0 0
        %1149 = vperm.xlu0 %1148, %v1085
        %v1150 = vpop.permute.xlu0 %1149
        %1153 = vset.pattern.permute.xlu0 0
        %1154 = vperm.xlu0 %1153, %v1086
        %v1155 = vpop.permute.xlu0 %1154
        %1158 = vset.pattern.permute.xlu0 0
        %1159 = vperm.xlu0 %1158, %v1087
        %v1160 = vpop.permute.xlu0 %1159
        %v1162 = vmul.f32 %v1114, %v1125
        %v1163 = vmul.f32 %v1115, %v1130
        %v1164 = vmul.f32 %v1116, %v1135
        %v1165 = vmul.f32 %v1117, %v1140
        %v1166 = vmul.f32 %v1118, %v1145
        %v1167 = vmul.f32 %v1119, %v1150
        %v1168 = vmul.f32 %v1120, %v1155
        %v1169 = vmul.f32 %v1121, %v1160
        %1171 = vset.pattern.permute.xlu0 0
        %1172 = vperm.xlu0 %1171, %v1104
        %v1173 = vpop.permute.xlu0 %1172
        %1176 = vset.pattern.permute.xlu0 0
        %1177 = vperm.xlu0 %1176, %v1105
        %v1178 = vpop.permute.xlu0 %1177
        %1181 = vset.pattern.permute.xlu0 0
        %1182 = vperm.xlu0 %1181, %v1106
        %v1183 = vpop.permute.xlu0 %1182
        %1186 = vset.pattern.permute.xlu0 0
        %1187 = vperm.xlu0 %1186, %v1107
        %v1188 = vpop.permute.xlu0 %1187
        %1191 = vset.pattern.permute.xlu0 0
        %1192 = vperm.xlu0 %1191, %v1108
        %v1193 = vpop.permute.xlu0 %1192
        %1196 = vset.pattern.permute.xlu0 0
        %1197 = vperm.xlu0 %1196, %v1109
        %v1198 = vpop.permute.xlu0 %1197
        %1201 = vset.pattern.permute.xlu0 0
        %1202 = vperm.xlu0 %1201, %v1110
        %v1203 = vpop.permute.xlu0 %1202
        %1206 = vset.pattern.permute.xlu0 0
        %1207 = vperm.xlu0 %1206, %v1111
        %v1208 = vpop.permute.xlu0 %1207
        %v1210 = vadd.f32 %v1162, %v1173
        %v1211 = vadd.f32 %v1163, %v1178
        %v1212 = vadd.f32 %v1164, %v1183
        %v1213 = vadd.f32 %v1165, %v1188
        %v1214 = vadd.f32 %v1166, %v1193
        %v1215 = vadd.f32 %v1167, %v1198
        %v1216 = vadd.f32 %v1168, %v1203
        %v1217 = vadd.f32 %v1169, %v1208
        %vm1218 = vcmp.ge.f32.partialorder %v1210, 0.0
        %vm1219 = vcmp.ge.f32.partialorder %v1211, 0.0
        %vm1220 = vcmp.ge.f32.partialorder %v1212, 0.0
        %vm1221 = vcmp.ge.f32.partialorder %v1213, 0.0
        %vm1222 = vcmp.ge.f32.partialorder %v1214, 0.0
        %vm1223 = vcmp.ge.f32.partialorder %v1215, 0.0
        %vm1224 = vcmp.ge.f32.partialorder %v1216, 0.0
        %vm1225 = vcmp.ge.f32.partialorder %v1217, 0.0
        %v1226 = vmul.f32 %v1210, 0.2
        %v1227 = vmul.f32 %v1211, 0.2
        %v1228 = vmul.f32 %v1212, 0.2
        %v1229 = vmul.f32 %v1213, 0.2
        %v1230 = vmul.f32 %v1214, 0.2
        %v1231 = vmul.f32 %v1215, 0.2
        %v1232 = vmul.f32 %v1216, 0.2
        %v1233 = vmul.f32 %v1217, 0.2
        %v1234 = vsel %vm1218, %v1210, %v1226
        %v1235 = vsel %vm1219, %v1211, %v1227
        %v1236 = vsel %vm1220, %v1212, %v1228
        %v1237 = vsel %vm1221, %v1213, %v1229
        %v1238 = vsel %vm1222, %v1214, %v1230
        %v1239 = vsel %vm1223, %v1215, %v1231
        %v1240 = vsel %vm1224, %v1216, %v1232
        %v1241 = vsel %vm1225, %v1217, %v1233
        %vm1242 = vcmask 523264
        %1243 = vst.msk [vmem:[%s234] sm:$0xff] %vm1242, %v1234
        %1244 = vst.msk [vmem:[%s234 + $0x8] sm:$0xff] %vm1242, %v1235
        %1245 = vst.msk [vmem:[%s234 + $0x10] sm:$0xff] %vm1242, %v1236
        %1246 = vst.msk [vmem:[%s234 + $0x18] sm:$0xff] %vm1242, %v1237
        %1247 = vst.msk [vmem:[%s234 + $0x20] sm:$0xff] %vm1242, %v1238
        %1248 = vst.msk [vmem:[%s234 + $0x28] sm:$0xff] %vm1242, %v1239
        %1249 = vst.msk [vmem:[%s234 + $0x30] sm:$0xff] %vm1242, %v1240
        %1250 = vst.msk [vmem:[%s234 + $0x38] sm:$0xff] %vm1242, %v1241
      $region48: #{discriminator_forward.6} parent=35 // pred_fallthru
        _
      %s1251 = smul.u32 %s20, %s19
      %p1252 = scmp.lt.s32.totalorder %s1251, 1
      %s1253 = scalar_select %p1252, %s1251, 1
      %s1254 = smul.addr %s1253, 8
      %s1255 = smul.addr %s1254, 8
      %s1256 = scalar_lea.vmem %s4, %s1255
      // Predicated region
      $region53: #{discriminator_forward.6} parent=35 // pred_check
        %p1257 = pneg %p142
      $region54: #{discriminator_forward.6} parent=35 // pred_check_branch
        %1259 = sbr.rel (%p1257) target = $region56
      $region55: #{discriminator_forward.6} parent=35 // pred_region
        %s1260 = smul.u32 %s20, %s19
      $region56: #{discriminator_forward.6} parent=35 // pred_fallthru
        _
    $region36: #{discriminator_forward.6} parent=5 // pred_fallthru
      _
    %p1261 = scmp.le.s32.totalorder 2, %s10
    // Predicated region
    $region57: #{discriminator_forward.6} parent=5 // pred_check
      %p1262 = pneg %p1261
    $region58: #{discriminator_forward.6} parent=5 // pred_check_branch
      %1264 = sbr.rel (%p1262) target = $region60
    $region59: #{discriminator_forward.6} parent=5 // pred_region
      %s1265 = ssub.s32 %s10, 2
      // Predicated region
      $region61: #{discriminator_forward.6} parent=59 // pred_check
        %p1266 = pneg %p148
      $region62: #{discriminator_forward.6} parent=59 // pred_check_branch
        %1268 = sbr.rel (%p1266) target = $region64
      $region63: #{discriminator_forward.6} parent=59 // pred_region
        %s1269 = smul.u32 %s22, %s21
        %p1270 = scmp.lt.s32.totalorder %s1269, 1
        %s1271 = scalar_select %p1270, %s1269, 1
        %s1272 = smul.addr %s1271, 8
        %s1273 = smul.addr %s1272, 8
        %s1274 = scalar_lea.vmem %s4, %s1273
      $region64: #{discriminator_forward.6} parent=59 // pred_fallthru
        _
    $region60: #{discriminator_forward.6} parent=5 // pred_fallthru
      _
  $region6: #{discriminator_forward.6} parent=0 // loop_footer
    %s14 = sadd.s32 1, %s10
  $region7: #{discriminator_forward.6} parent=0 // loop_footer_branch
    %9 = sbr.rel target = $region3
  $region8: #{discriminator_forward.6} parent=0 // loop_exit
    _

// kernel: discriminator_forward.7
$region0: #{discriminator_forward.7}
  #allocation0 [shape = 'u32[]', space=smem, size = 0x4, offset = 0x4, fixed_abs, tag = 'smem constant byte address 0x4 - core index']
  #allocation1 [shape = 'u32[72,128]{1,0:T(1,128)}', space=vmem, size = 0x9000, scoped, tag = 'internal scratch']
  #allocation2 [shape = 'f32[2,128,16]{2,1,0:T(8,128)}', space=vmem, size = 0x20000, scoped, tag = 'scratch operand']
  #allocation3 [shape = 'f32[128,1]{1,0:T(8,128)}', space=vmem, size = 0x10000, scoped, tag = 'scratch operand']
  #allocation4 [shape = 'f32[128,1]{1,0:T(8,128)}', space=vmem, size = 0x10000, scoped, tag = 'scratch operand']
  %s0 = inlined_call_operand.vmem [shape: bf16[2,1024,16], index: 0, kind: input, shape index: {}]
  %s1 = inlined_call_operand.vmem [shape: bf16[128,1024], index: 1, kind: input, shape index: {}]
  %s2 = inlined_call_operand.vmem [shape: f32[128,1], index: 2, kind: input, shape index: {}]
  %s3 = inlined_call_operand.vmem [shape: f32[128,1], index: 3, kind: input, shape index: {}]
  %s4 = inlined_call_operand.vmem [shape: f32[2,128,16], index: 4, kind: input, shape index: {}]
  %s5 = inlined_call_operand.vmem [shape: f32[2,1,128], index: 5, kind: output, shape index: {}]
  %s6 = sld [smem:[#allocation0]]
  $region69: #{discriminator_forward.7} parent=0
    _
  %s8 = ssub.s32 1, %s6
  %s9 = scalar_select 0, %s8, %s6
  loop: start=0, step=1, limit=6
  $region2: #{discriminator_forward.7} parent=0 // loop_pre_header
    _
  $region3: #{discriminator_forward.7} parent=0 // loop_header
    %s11 = sphi 0, %s15
    %p12 = scmp.ge.s32.totalorder %s11, 6
    %s18 = sphi 0, %s30
    %s19 = sphi 0, %s26
    %s20 = sphi 0, %s18
    %s21 = sphi 0, %s19
    %s22 = sphi 0, %s20
    %s23 = sphi 0, %s21
    %s39 = sphi 0, %s41
    %s42 = sphi 0, %s39
    %s43 = sphi 0, %s42
    %s59 = sphi 0, %s43
    %s63 = sphi 0, %s63
    %s65 = sphi 0, %s63
    %s66 = sphi 0, %s65
    %s80 = sphi 0, %s66
    %s84 = sphi 0, %s84
    %s86 = sphi 0, %s84
    %s87 = sphi 0, %s86
    %s101 = sphi 0, %s87
    %s105 = sphi 0, %s105
    %s107 = sphi 0, %s105
    %s108 = sphi 0, %s107
    %s122 = sphi 0, %s108
    %s126 = sphi 0, %s126
    %s128 = sphi 0, %s126
    %s129 = sphi 0, %s128
    %s143 = sphi 0, %s129
    %s151 = sphi 0, %s153
    %s154 = sphi 0, %s151
    %s155 = sphi 0, %s154
    %s171 = sphi 0, %s155
  $region4: #{discriminator_forward.7} parent=0 // loop_header_branch
    %14 = sbr.rel (%p12) target = $region8
  $region5: #{discriminator_forward.7} parent=0 // loop_body
    %s16 = ssub.s32 %s11, 1
    %s17 = ssub.s32 %s11, 2
    %s24 = sadd.s32 1, %s19
    %p25 = scmp.ge.s32.totalorder %s24, 2
    %s26 = scalar_select %p25, 0, %s24
    %s27 = sadd.s32 1, %s18
    %s28 = scalar_select %p25, %s27, %s18
    %p29 = scmp.ge.s32.totalorder %s28, 2
    %s30 = scalar_select %p29, 0, %s28
    %s31 = ssub.s32 1, %s18
    %s32 = smul.u32 %s19, %s31
    %s33 = sadd.s32 %s32, %s18
    %s34 = ssub.s32 1, %s30
    %s35 = smul.u32 %s26, %s34
    %s36 = sadd.s32 %s35, %s30
    %s37 = ssub.s32 %s33, %s36
    %p38 = scmp.eq.s32.totalorder %s37, 0
    %s40 = sadd.s32 %s39, 1
    %s41 = scalar_select %p38, %s39, %s40
    %p44 = pneg %p38
    %p45 = scmp.eq.s32.totalorder %s11, 3
    %p46 = por %p44, %p45
    %p47 = scmp.ne.s32.totalorder %s39, %s42
    %p48 = scmp.eq.s32.totalorder %s11, 0
    %p49 = por %p47, %p48
    %p50 = scmp.ne.s32.totalorder %s39, %s42
    %p51 = scmp.eq.s32.totalorder %s16, 3
    %p52 = por %p50, %p51
    %p53 = scmp.ne.s32.totalorder %s42, %s43
    %p54 = scmp.eq.s32.totalorder %s16, 0
    %p55 = por %p53, %p54
    %p56 = scmp.ne.s32.totalorder %s42, %s43
    %p57 = scmp.eq.s32.totalorder %s17, 3
    %p58 = por %p56, %p57
    %p60 = scmp.ne.s32.totalorder %s43, %s59
    %p61 = scmp.eq.s32.totalorder %s17, 0
    %p62 = por %p60, %p61
    %s64 = sadd.s32 %s63, 1
    %p67 = scmp.eq.s32.totalorder %s11, 3
    %p68 = scmp.ne.s32.totalorder %s63, %s65
    %p69 = scmp.eq.s32.totalorder %s11, 0
    %p70 = por %p68, %p69
    %p71 = scmp.ne.s32.totalorder %s63, %s65
    %p72 = scmp.eq.s32.totalorder %s16, 3
    %p73 = por %p71, %p72
    %p74 = scmp.ne.s32.totalorder %s65, %s66
    %p75 = scmp.eq.s32.totalorder %s16, 0
    %p76 = por %p74, %p75
    %p77 = scmp.ne.s32.totalorder %s65, %s66
    %p78 = scmp.eq.s32.totalorder %s17, 3
    %p79 = por %p77, %p78
    %p81 = scmp.ne.s32.totalorder %s66, %s80
    %p82 = scmp.eq.s32.totalorder %s17, 0
    %p83 = por %p81, %p82
    %s85 = sadd.s32 %s84, 1
    %p88 = scmp.eq.s32.totalorder %s11, 3
    %p89 = scmp.ne.s32.totalorder %s84, %s86
    %p90 = scmp.eq.s32.totalorder %s11, 0
    %p91 = por %p89, %p90
    %p92 = scmp.ne.s32.totalorder %s84, %s86
    %p93 = scmp.eq.s32.totalorder %s16, 3
    %p94 = por %p92, %p93
    %p95 = scmp.ne.s32.totalorder %s86, %s87
    %p96 = scmp.eq.s32.totalorder %s16, 0
    %p97 = por %p95, %p96
    %p98 = scmp.ne.s32.totalorder %s86, %s87
    %p99 = scmp.eq.s32.totalorder %s17, 3
    %p100 = por %p98, %p99
    %p102 = scmp.ne.s32.totalorder %s87, %s101
    %p103 = scmp.eq.s32.totalorder %s17, 0
    %p104 = por %p102, %p103
    %s106 = sadd.s32 %s105, 1
    %p109 = scmp.eq.s32.totalorder %s11, 3
    %p110 = scmp.ne.s32.totalorder %s105, %s107
    %p111 = scmp.eq.s32.totalorder %s11, 0
    %p112 = por %p110, %p111
    %p113 = scmp.ne.s32.totalorder %s105, %s107
    %p114 = scmp.eq.s32.totalorder %s16, 3
    %p115 = por %p113, %p114
    %p116 = scmp.ne.s32.totalorder %s107, %s108
    %p117 = scmp.eq.s32.totalorder %s16, 0
    %p118 = por %p116, %p117
    %p119 = scmp.ne.s32.totalorder %s107, %s108
    %p120 = scmp.eq.s32.totalorder %s17, 3
    %p121 = por %p119, %p120
    %p123 = scmp.ne.s32.totalorder %s108, %s122
    %p124 = scmp.eq.s32.totalorder %s17, 0
    %p125 = por %p123, %p124
    %s127 = sadd.s32 %s126, 1
    %p130 = scmp.eq.s32.totalorder %s11, 3
    %p131 = scmp.ne.s32.totalorder %s126, %s128
    %p132 = scmp.eq.s32.totalorder %s11, 0
    %p133 = por %p131, %p132
    %p134 = scmp.ne.s32.totalorder %s126, %s128
    %p135 = scmp.eq.s32.totalorder %s16, 3
    %p136 = por %p134, %p135
    %p137 = scmp.ne.s32.totalorder %s128, %s129
    %p138 = scmp.eq.s32.totalorder %s16, 0
    %p139 = por %p137, %p138
    %p140 = scmp.ne.s32.totalorder %s128, %s129
    %p141 = scmp.eq.s32.totalorder %s17, 3
    %p142 = por %p140, %p141
    %p144 = scmp.ne.s32.totalorder %s129, %s143
    %p145 = scmp.eq.s32.totalorder %s17, 0
    %p146 = por %p144, %p145
    %s147 = smul.u32 %s19, %s18
    %s148 = smul.u32 %s26, %s30
    %s149 = ssub.s32 %s147, %s148
    %p150 = scmp.eq.s32.totalorder %s149, 0
    %s152 = sadd.s32 %s151, 1
    %s153 = scalar_select %p150, %s151, %s152
    %p156 = pneg %p150
    %p157 = scmp.eq.s32.totalorder %s11, 3
    %p158 = por %p156, %p157
    %p159 = scmp.ne.s32.totalorder %s151, %s154
    %p160 = scmp.eq.s32.totalorder %s11, 0
    %p161 = por %p159, %p160
    %p162 = scmp.ne.s32.totalorder %s151, %s154
    %p163 = scmp.eq.s32.totalorder %s16, 3
    %p164 = por %p162, %p163
    %p165 = scmp.ne.s32.totalorder %s154, %s155
    %p166 = scmp.eq.s32.totalorder %s16, 0
    %p167 = por %p165, %p166
    %p168 = scmp.ne.s32.totalorder %s154, %s155
    %p169 = scmp.eq.s32.totalorder %s17, 3
    %p170 = por %p168, %p169
    %p172 = scmp.ne.s32.totalorder %s155, %s171
    %p173 = scmp.eq.s32.totalorder %s17, 0
    %p174 = por %p172, %p173
    %p175 = scmp.le.s32.totalorder 1, %s11
    %p176 = scmp.lt.s32.totalorder %s11, 5
    %p177 = pnand %p175, %p176
    %p178 = pneg %p177
    // Predicated region
    $region9: #{discriminator_forward.7} parent=5 // pred_check
      _
    $region10: #{discriminator_forward.7} parent=5 // pred_check_branch
      %180 = sbr.rel (%p177) target = $region12
    $region11: #{discriminator_forward.7} parent=5 // pred_region
      %s181 = ssub.s32 %s11, 1
      // Predicated region
      $region13: #{discriminator_forward.7} parent=11 // pred_check
        %p182 = pneg %p76
      $region14: #{discriminator_forward.7} parent=11 // pred_check_branch
        %184 = sbr.rel (%p182) target = $region16
      $region15: #{discriminator_forward.7} parent=11 // pred_region
        _
      $region16: #{discriminator_forward.7} parent=11 // pred_fallthru
        _
      // Predicated region
      $region17: #{discriminator_forward.7} parent=11 // pred_check
        %p185 = pneg %p97
      $region18: #{discriminator_forward.7} parent=11 // pred_check_branch
        %187 = sbr.rel (%p185) target = $region20
      $region19: #{discriminator_forward.7} parent=11 // pred_region
        _
      $region20: #{discriminator_forward.7} parent=11 // pred_fallthru
        _
      // Predicated region
      $region21: #{discriminator_forward.7} parent=11 // pred_check
        %p188 = pneg %p118
      $region22: #{discriminator_forward.7} parent=11 // pred_check_branch
        %190 = sbr.rel (%p188) target = $region24
      $region23: #{discriminator_forward.7} parent=11 // pred_region
        _
      $region24: #{discriminator_forward.7} parent=11 // pred_fallthru
        _
      // Predicated region
      $region25: #{discriminator_forward.7} parent=11 // pred_check
        %p191 = pneg %p139
      $region26: #{discriminator_forward.7} parent=11 // pred_check_branch
        %193 = sbr.rel (%p191) target = $region28
      $region27: #{discriminator_forward.7} parent=11 // pred_region
        _
      $region28: #{discriminator_forward.7} parent=11 // pred_fallthru
        _
    $region12: #{discriminator_forward.7} parent=5 // pred_fallthru
      _
    %p194 = scmp.lt.s32.totalorder %s11, 4
    // Predicated region
    $region29: #{discriminator_forward.7} parent=5 // pred_check
      %p195 = pneg %p194
    $region30: #{discriminator_forward.7} parent=5 // pred_check_branch
      %197 = sbr.rel (%p195) target = $region32
    $region31: #{discriminator_forward.7} parent=5 // pred_region
      // Predicated region
      $region33: #{discriminator_forward.7} parent=31 // pred_check
        %p198 = pneg %p49
      $region34: #{discriminator_forward.7} parent=31 // pred_check_branch
        %200 = sbr.rel (%p198) target = $region36
      $region35: #{discriminator_forward.7} parent=31 // pred_region
        %s201 = ssub.s32 1, %s18
        %s202 = smul.u32 %s19, %s201
        %s203 = sadd.s32 %s202, %s18
        %p204 = scmp.lt.s32.totalorder %s203, 1
        %s205 = scalar_select %p204, %s203, 1
        %s206 = smul.addr %s205, 128
        %s207 = smul.addr %s206, 4
        %s208 = scalar_lea.vmem %s0, %s207
        %s209 = ssub.s32 1, %s18
        %s210 = smul.u32 %s19, %s209
        %s211 = sadd.s32 %s210, %s18
      $region36: #{discriminator_forward.7} parent=31 // pred_fallthru
        _
    $region32: #{discriminator_forward.7} parent=5 // pred_fallthru
      _
    %p212 = scmp.le.s32.totalorder 1, %s11
    %p213 = scmp.lt.s32.totalorder %s11, 5
    %p214 = pnand %p212, %p213
    %p215 = pneg %p214
    // Predicated region
    $region37: #{discriminator_forward.7} parent=5 // pred_check
      _
    $region38: #{discriminator_forward.7} parent=5 // pred_check_branch
      %217 = sbr.rel (%p214) target = $region40
    $region39: #{discriminator_forward.7} parent=5 // pred_region
      %s218 = ssub.s32 %s11, 1
      %s219 = ssub.s32 1, %s20
      %s220 = smul.u32 %s21, %s219
      %s221 = sadd.s32 %s220, %s20
      %p222 = scmp.lt.s32.totalorder %s221, 1
      %s223 = scalar_select %p222, %s221, 1
      %s224 = smul.addr %s223, 128
      %s225 = smul.addr %s224, 4
      %s226 = scalar_lea.vmem %s0, %s225
      %p227 = pneg %p55
      %p228 = pneg %p52
      %p229 = pneg %p76
      %p230 = pneg %p73
      %p231 = pneg %p97
      %p232 = pneg %p94
      %p233 = pneg %p118
      %p234 = pneg %p115
      %p235 = pneg %p139
      %p236 = pneg %p136
      %p237 = pneg %p167
      %p238 = pneg %p164
      %s239 = smul.u32 %s21, %s20
      %p240 = scmp.lt.s32.totalorder %s239, 1
      %s241 = scalar_select %p240, %s239, 1
      %s242 = scalar_lea.vmem %s5, %s241
      %s243 = ssub.s32 1, %s20
      %s244 = smul.u32 %s21, %s243
      %s245 = sadd.s32 %s244, %s20
      %p246 = scmp.lt.s32.totalorder %s245, 1
      %s247 = scalar_select %p246, %s245, 1
      %s248 = smul.addr %s247, 128
      %s249 = smul.addr %s248, 4
      %s250 = scalar_lea.vmem %s0, %s249
      %s251 = ssub.s32 1, %s20
      %s252 = smul.u32 %s21, %s251
      %s253 = sadd.s32 %s252, %s20
      %s254 = smul.u32 %s21, %s20
      %p255 = scmp.lt.s32.totalorder %s254, 1
      %s256 = scalar_select %p255, %s254, 1
      %s257 = scalar_lea.vmem %s5, %s256
      %s258 = smul.u32 %s21, %s20
      %p259 = scmp.eq.s32.totalorder %s20, 0
      // Predicated region
      $region41: #{discriminator_forward.7} parent=39 // pred_check
        %p260 = pneg %p259
      $region42: #{discriminator_forward.7} parent=39 // pred_check_branch
        %262 = sbr.rel (%p260) target = $region44
      $region43: #{discriminator_forward.7} parent=39 // pred_region
        %p263 = scmp.eq.s32.totalorder %s21, 0
        // Predicated region
        $region45: #{discriminator_forward.7} parent=43 // pred_check
          %p264 = pneg %p263
        $region46: #{discriminator_forward.7} parent=43 // pred_check_branch
          %266 = sbr.rel (%p264) target = $region48
        $region47: #{discriminator_forward.7} parent=43 // pred_region
          %vm267 = vcmask 7168
          %268 = vst.msk [vmem:[#allocation3] sm:$0xff] %vm267, 0.0
          %269 = vst.msk [vmem:[#allocation3 + $0x8] sm:$0xff] %vm267, 0.0
          %270 = vst.msk [vmem:[#allocation3 + $0x10] sm:$0xff] %vm267, 0.0
          %271 = vst.msk [vmem:[#allocation3 + $0x18] sm:$0xff] %vm267, 0.0
          %272 = vst.msk [vmem:[#allocation3 + $0x20] sm:$0xff] %vm267, 0.0
          %273 = vst.msk [vmem:[#allocation3 + $0x28] sm:$0xff] %vm267, 0.0
          %274 = vst.msk [vmem:[#allocation3 + $0x30] sm:$0xff] %vm267, 0.0
          %275 = vst.msk [vmem:[#allocation3 + $0x38] sm:$0xff] %vm267, 0.0
          %276 = vst.msk [vmem:[#allocation3 + $0x40] sm:$0xff] %vm267, 0.0
          %277 = vst.msk [vmem:[#allocation3 + $0x48] sm:$0xff] %vm267, 0.0
          %278 = vst.msk [vmem:[#allocation3 + $0x50] sm:$0xff] %vm267, 0.0
          %279 = vst.msk [vmem:[#allocation3 + $0x58] sm:$0xff] %vm267, 0.0
          %280 = vst.msk [vmem:[#allocation3 + $0x60] sm:$0xff] %vm267, 0.0
          %281 = vst.msk [vmem:[#allocation3 + $0x68] sm:$0xff] %vm267, 0.0
          %282 = vst.msk [vmem:[#allocation3 + $0x70] sm:$0xff] %vm267, 0.0
          %283 = vst.msk [vmem:[#allocation3 + $0x78] sm:$0xff] %vm267, 0.0
        $region48: #{discriminator_forward.7} parent=43 // pred_fallthru
          _
        %v284 = vld [vmem:[%s1] sm:$0xff]
        %v285 = vld [vmem:[%s1 + $0x8] sm:$0xff]
        %v286 = vld [vmem:[%s1 + $0x10] sm:$0xff]
        %v287 = vld [vmem:[%s1 + $0x18] sm:$0xff]
        %v288 = vld [vmem:[%s1 + $0x20] sm:$0xff]
        %v289 = vld [vmem:[%s1 + $0x28] sm:$0xff]
        %v290 = vld [vmem:[%s1 + $0x30] sm:$0xff]
        %v291 = vld [vmem:[%s1 + $0x38] sm:$0xff]
        %v292 = vld [vmem:[%s1 + $0x40] sm:$0xff]
        %v293 = vld [vmem:[%s1 + $0x48] sm:$0xff]
        %v294 = vld [vmem:[%s1 + $0x50] sm:$0xff]
        %v295 = vld [vmem:[%s1 + $0x58] sm:$0xff]
        %v296 = vld [vmem:[%s1 + $0x60] sm:$0xff]
        %v297 = vld [vmem:[%s1 + $0x68] sm:$0xff]
        %v298 = vld [vmem:[%s1 + $0x70] sm:$0xff]
        %v299 = vld [vmem:[%s1 + $0x78] sm:$0xff]
        %v300 = vld [vmem:[%s1 + $0x80] sm:$0xff]
        %v301 = vld [vmem:[%s1 + $0x88] sm:$0xff]
        %v302 = vld [vmem:[%s1 + $0x90] sm:$0xff]
        %v303 = vld [vmem:[%s1 + $0x98] sm:$0xff]
        %v304 = vld [vmem:[%s1 + $0xa0] sm:$0xff]
        %v305 = vld [vmem:[%s1 + $0xa8] sm:$0xff]
        %v306 = vld [vmem:[%s1 + $0xb0] sm:$0xff]
        %v307 = vld [vmem:[%s1 + $0xb8] sm:$0xff]
        %v308 = vld [vmem:[%s1 + $0xc0] sm:$0xff]
        %v309 = vld [vmem:[%s1 + $0xc8] sm:$0xff]
        %v310 = vld [vmem:[%s1 + $0xd0] sm:$0xff]
        %v311 = vld [vmem:[%s1 + $0xd8] sm:$0xff]
        %v312 = vld [vmem:[%s1 + $0xe0] sm:$0xff]
        %v313 = vld [vmem:[%s1 + $0xe8] sm:$0xff]
        %v314 = vld [vmem:[%s1 + $0xf0] sm:$0xff]
        %v315 = vld [vmem:[%s1 + $0xf8] sm:$0xff]
        %v316 = vld [vmem:[%s1 + $0x100] sm:$0xff]
        %v317 = vld [vmem:[%s1 + $0x108] sm:$0xff]
        %v318 = vld [vmem:[%s1 + $0x110] sm:$0xff]
        %v319 = vld [vmem:[%s1 + $0x118] sm:$0xff]
        %v320 = vld [vmem:[%s1 + $0x120] sm:$0xff]
        %v321 = vld [vmem:[%s1 + $0x128] sm:$0xff]
        %v322 = vld [vmem:[%s1 + $0x130] sm:$0xff]
        %v323 = vld [vmem:[%s1 + $0x138] sm:$0xff]
        %v324 = vld [vmem:[%s1 + $0x140] sm:$0xff]
        %v325 = vld [vmem:[%s1 + $0x148] sm:$0xff]
        %v326 = vld [vmem:[%s1 + $0x150] sm:$0xff]
        %v327 = vld [vmem:[%s1 + $0x158] sm:$0xff]
        %v328 = vld [vmem:[%s1 + $0x160] sm:$0xff]
        %v329 = vld [vmem:[%s1 + $0x168] sm:$0xff]
        %v330 = vld [vmem:[%s1 + $0x170] sm:$0xff]
        %v331 = vld [vmem:[%s1 + $0x178] sm:$0xff]
        %v332 = vld [vmem:[%s1 + $0x180] sm:$0xff]
        %v333 = vld [vmem:[%s1 + $0x188] sm:$0xff]
        %v334 = vld [vmem:[%s1 + $0x190] sm:$0xff]
        %v335 = vld [vmem:[%s1 + $0x198] sm:$0xff]
        %v336 = vld [vmem:[%s1 + $0x1a0] sm:$0xff]
        %v337 = vld [vmem:[%s1 + $0x1a8] sm:$0xff]
        %v338 = vld [vmem:[%s1 + $0x1b0] sm:$0xff]
        %v339 = vld [vmem:[%s1 + $0x1b8] sm:$0xff]
        %v340 = vld [vmem:[%s1 + $0x1c0] sm:$0xff]
        %v341 = vld [vmem:[%s1 + $0x1c8] sm:$0xff]
        %v342 = vld [vmem:[%s1 + $0x1d0] sm:$0xff]
        %v343 = vld [vmem:[%s1 + $0x1d8] sm:$0xff]
        %v344 = vld [vmem:[%s1 + $0x1e0] sm:$0xff]
        %v345 = vld [vmem:[%s1 + $0x1e8] sm:$0xff]
        %v346 = vld [vmem:[%s1 + $0x1f0] sm:$0xff]
        %v347 = vld [vmem:[%s1 + $0x1f8] sm:$0xff]
        %v348 = vld [vmem:[%s250] sm:$0xf]
        %v349 = vld [vmem:[%s250 + $0x4] sm:$0xf]
        %v350 = vld [vmem:[%s250 + $0x8] sm:$0xf]
        %v351 = vld [vmem:[%s250 + $0xc] sm:$0xf]
        %v352 = vld [vmem:[%s250 + $0x10] sm:$0xf]
        %v353 = vld [vmem:[%s250 + $0x14] sm:$0xf]
        %v354 = vld [vmem:[%s250 + $0x18] sm:$0xf]
        %v355 = vld [vmem:[%s250 + $0x1c] sm:$0xf]
        %v356 = vld [vmem:[%s250 + $0x20] sm:$0xf]
        %v357 = vld [vmem:[%s250 + $0x24] sm:$0xf]
        %v358 = vld [vmem:[%s250 + $0x28] sm:$0xf]
        %v359 = vld [vmem:[%s250 + $0x2c] sm:$0xf]
        %v360 = vld [vmem:[%s250 + $0x30] sm:$0xf]
        %v361 = vld [vmem:[%s250 + $0x34] sm:$0xf]
        %v362 = vld [vmem:[%s250 + $0x38] sm:$0xf]
        %v363 = vld [vmem:[%s250 + $0x3c] sm:$0xf]
        %v364 = vld [vmem:[%s250 + $0x40] sm:$0xf]
        %v365 = vld [vmem:[%s250 + $0x44] sm:$0xf]
        %v366 = vld [vmem:[%s250 + $0x48] sm:$0xf]
        %v367 = vld [vmem:[%s250 + $0x4c] sm:$0xf]
        %v368 = vld [vmem:[%s250 + $0x50] sm:$0xf]
        %v369 = vld [vmem:[%s250 + $0x54] sm:$0xf]
        %v370 = vld [vmem:[%s250 + $0x58] sm:$0xf]
        %v371 = vld [vmem:[%s250 + $0x5c] sm:$0xf]
        %v372 = vld [vmem:[%s250 + $0x60] sm:$0xf]
        %v373 = vld [vmem:[%s250 + $0x64] sm:$0xf]
        %v374 = vld [vmem:[%s250 + $0x68] sm:$0xf]
        %v375 = vld [vmem:[%s250 + $0x6c] sm:$0xf]
        %v376 = vld [vmem:[%s250 + $0x70] sm:$0xf]
        %v377 = vld [vmem:[%s250 + $0x74] sm:$0xf]
        %v378 = vld [vmem:[%s250 + $0x78] sm:$0xf]
        %v379 = vld [vmem:[%s250 + $0x7c] sm:$0xf]
        %v380 = vld [vmem:[%s250 + $0x80] sm:$0xf]
        %v381 = vld [vmem:[%s250 + $0x84] sm:$0xf]
        %v382 = vld [vmem:[%s250 + $0x88] sm:$0xf]
        %v383 = vld [vmem:[%s250 + $0x8c] sm:$0xf]
        %v384 = vld [vmem:[%s250 + $0x90] sm:$0xf]
        %v385 = vld [vmem:[%s250 + $0x94] sm:$0xf]
        %v386 = vld [vmem:[%s250 + $0x98] sm:$0xf]
        %v387 = vld [vmem:[%s250 + $0x9c] sm:$0xf]
        %v388 = vld [vmem:[%s250 + $0xa0] sm:$0xf]
        %v389 = vld [vmem:[%s250 + $0xa4] sm:$0xf]
        %v390 = vld [vmem:[%s250 + $0xa8] sm:$0xf]
        %v391 = vld [vmem:[%s250 + $0xac] sm:$0xf]
        %v392 = vld [vmem:[%s250 + $0xb0] sm:$0xf]
        %v393 = vld [vmem:[%s250 + $0xb4] sm:$0xf]
        %v394 = vld [vmem:[%s250 + $0xb8] sm:$0xf]
        %v395 = vld [vmem:[%s250 + $0xbc] sm:$0xf]
        %v396 = vld [vmem:[%s250 + $0xc0] sm:$0xf]
        %v397 = vld [vmem:[%s250 + $0xc4] sm:$0xf]
        %v398 = vld [vmem:[%s250 + $0xc8] sm:$0xf]
        %v399 = vld [vmem:[%s250 + $0xcc] sm:$0xf]
        %v400 = vld [vmem:[%s250 + $0xd0] sm:$0xf]
        %v401 = vld [vmem:[%s250 + $0xd4] sm:$0xf]
        %v402 = vld [vmem:[%s250 + $0xd8] sm:$0xf]
        %v403 = vld [vmem:[%s250 + $0xdc] sm:$0xf]
        %v404 = vld [vmem:[%s250 + $0xe0] sm:$0xf]
        %v405 = vld [vmem:[%s250 + $0xe4] sm:$0xf]
        %v406 = vld [vmem:[%s250 + $0xe8] sm:$0xf]
        %v407 = vld [vmem:[%s250 + $0xec] sm:$0xf]
        %v408 = vld [vmem:[%s250 + $0xf0] sm:$0xf]
        %v409 = vld [vmem:[%s250 + $0xf4] sm:$0xf]
        %v410 = vld [vmem:[%s250 + $0xf8] sm:$0xf]
        %v411 = vld [vmem:[%s250 + $0xfc] sm:$0xf]
        %v412 = vld [vmem:[%s250 + $0x100] sm:$0xf]
        %v413 = vld [vmem:[%s250 + $0x104] sm:$0xf]
        %v414 = vld [vmem:[%s250 + $0x108] sm:$0xf]
        %v415 = vld [vmem:[%s250 + $0x10c] sm:$0xf]
        %v416 = vld [vmem:[%s250 + $0x110] sm:$0xf]
        %v417 = vld [vmem:[%s250 + $0x114] sm:$0xf]
        %v418 = vld [vmem:[%s250 + $0x118] sm:$0xf]
        %v419 = vld [vmem:[%s250 + $0x11c] sm:$0xf]
        %v420 = vld [vmem:[%s250 + $0x120] sm:$0xf]
        %v421 = vld [vmem:[%s250 + $0x124] sm:$0xf]
        %v422 = vld [vmem:[%s250 + $0x128] sm:$0xf]
        %v423 = vld [vmem:[%s250 + $0x12c] sm:$0xf]
        %v424 = vld [vmem:[%s250 + $0x130] sm:$0xf]
        %v425 = vld [vmem:[%s250 + $0x134] sm:$0xf]
        %v426 = vld [vmem:[%s250 + $0x138] sm:$0xf]
        %v427 = vld [vmem:[%s250 + $0x13c] sm:$0xf]
        %v428 = vld [vmem:[%s250 + $0x140] sm:$0xf]
        %v429 = vld [vmem:[%s250 + $0x144] sm:$0xf]
        %v430 = vld [vmem:[%s250 + $0x148] sm:$0xf]
        %v431 = vld [vmem:[%s250 + $0x14c] sm:$0xf]
        %v432 = vld [vmem:[%s250 + $0x150] sm:$0xf]
        %v433 = vld [vmem:[%s250 + $0x154] sm:$0xf]
        %v434 = vld [vmem:[%s250 + $0x158] sm:$0xf]
        %v435 = vld [vmem:[%s250 + $0x15c] sm:$0xf]
        %v436 = vld [vmem:[%s250 + $0x160] sm:$0xf]
        %v437 = vld [vmem:[%s250 + $0x164] sm:$0xf]
        %v438 = vld [vmem:[%s250 + $0x168] sm:$0xf]
        %v439 = vld [vmem:[%s250 + $0x16c] sm:$0xf]
        %v440 = vld [vmem:[%s250 + $0x170] sm:$0xf]
        %v441 = vld [vmem:[%s250 + $0x174] sm:$0xf]
        %v442 = vld [vmem:[%s250 + $0x178] sm:$0xf]
        %v443 = vld [vmem:[%s250 + $0x17c] sm:$0xf]
        %v444 = vld [vmem:[%s250 + $0x180] sm:$0xf]
        %v445 = vld [vmem:[%s250 + $0x184] sm:$0xf]
        %v446 = vld [vmem:[%s250 + $0x188] sm:$0xf]
        %v447 = vld [vmem:[%s250 + $0x18c] sm:$0xf]
        %v448 = vld [vmem:[%s250 + $0x190] sm:$0xf]
        %v449 = vld [vmem:[%s250 + $0x194] sm:$0xf]
        %v450 = vld [vmem:[%s250 + $0x198] sm:$0xf]
        %v451 = vld [vmem:[%s250 + $0x19c] sm:$0xf]
        %v452 = vld [vmem:[%s250 + $0x1a0] sm:$0xf]
        %v453 = vld [vmem:[%s250 + $0x1a4] sm:$0xf]
        %v454 = vld [vmem:[%s250 + $0x1a8] sm:$0xf]
        %v455 = vld [vmem:[%s250 + $0x1ac] sm:$0xf]
        %v456 = vld [vmem:[%s250 + $0x1b0] sm:$0xf]
        %v457 = vld [vmem:[%s250 + $0x1b4] sm:$0xf]
        %v458 = vld [vmem:[%s250 + $0x1b8] sm:$0xf]
        %v459 = vld [vmem:[%s250 + $0x1bc] sm:$0xf]
        %v460 = vld [vmem:[%s250 + $0x1c0] sm:$0xf]
        %v461 = vld [vmem:[%s250 + $0x1c4] sm:$0xf]
        %v462 = vld [vmem:[%s250 + $0x1c8] sm:$0xf]
        %v463 = vld [vmem:[%s250 + $0x1cc] sm:$0xf]
        %v464 = vld [vmem:[%s250 + $0x1d0] sm:$0xf]
        %v465 = vld [vmem:[%s250 + $0x1d4] sm:$0xf]
        %v466 = vld [vmem:[%s250 + $0x1d8] sm:$0xf]
        %v467 = vld [vmem:[%s250 + $0x1dc] sm:$0xf]
        %v468 = vld [vmem:[%s250 + $0x1e0] sm:$0xf]
        %v469 = vld [vmem:[%s250 + $0x1e4] sm:$0xf]
        %v470 = vld [vmem:[%s250 + $0x1e8] sm:$0xf]
        %v471 = vld [vmem:[%s250 + $0x1ec] sm:$0xf]
        %v472 = vld [vmem:[%s250 + $0x1f0] sm:$0xf]
        %v473 = vld [vmem:[%s250 + $0x1f4] sm:$0xf]
        %v474 = vld [vmem:[%s250 + $0x1f8] sm:$0xf]
        %v475 = vld [vmem:[%s250 + $0x1fc] sm:$0xf]
        %v540 = vunpack.c.l.b16 %v284
        %v541 = vunpack.c.h.b16 %v284
        %v542 = vunpack.c.l.b16 %v285
        %v543 = vunpack.c.h.b16 %v285
        %v544 = vunpack.c.l.b16 %v286
        %v545 = vunpack.c.h.b16 %v286
        %v546 = vunpack.c.l.b16 %v287
        %v547 = vunpack.c.h.b16 %v287
        %v548 = vunpack.c.l.b16 %v288
        %v549 = vunpack.c.h.b16 %v288
        %v550 = vunpack.c.l.b16 %v289
        %v551 = vunpack.c.h.b16 %v289
        %v552 = vunpack.c.l.b16 %v290
        %v553 = vunpack.c.h.b16 %v290
        %v554 = vunpack.c.l.b16 %v291
        %v555 = vunpack.c.h.b16 %v291
        %v556 = vunpack.c.l.b16 %v292
        %v557 = vunpack.c.h.b16 %v292
        %v558 = vunpack.c.l.b16 %v293
        %v559 = vunpack.c.h.b16 %v293
        %v560 = vunpack.c.l.b16 %v294
        %v561 = vunpack.c.h.b16 %v294
        %v562 = vunpack.c.l.b16 %v295
        %v563 = vunpack.c.h.b16 %v295
        %v564 = vunpack.c.l.b16 %v296
        %v565 = vunpack.c.h.b16 %v296
        %v566 = vunpack.c.l.b16 %v297
        %v567 = vunpack.c.h.b16 %v297
        %v568 = vunpack.c.l.b16 %v298
        %v569 = vunpack.c.h.b16 %v298
        %v570 = vunpack.c.l.b16 %v299
        %v571 = vunpack.c.h.b16 %v299
        %v572 = vunpack.c.l.b16 %v300
        %v573 = vunpack.c.h.b16 %v300
        %v574 = vunpack.c.l.b16 %v301
        %v575 = vunpack.c.h.b16 %v301
        %v576 = vunpack.c.l.b16 %v302
        %v577 = vunpack.c.h.b16 %v302
        %v578 = vunpack.c.l.b16 %v303
        %v579 = vunpack.c.h.b16 %v303
        %v580 = vunpack.c.l.b16 %v304
        %v581 = vunpack.c.h.b16 %v304
        %v582 = vunpack.c.l.b16 %v305
        %v583 = vunpack.c.h.b16 %v305
        %v584 = vunpack.c.l.b16 %v306
        %v585 = vunpack.c.h.b16 %v306
        %v586 = vunpack.c.l.b16 %v307
        %v587 = vunpack.c.h.b16 %v307
        %v588 = vunpack.c.l.b16 %v308
        %v589 = vunpack.c.h.b16 %v308
        %v590 = vunpack.c.l.b16 %v309
        %v591 = vunpack.c.h.b16 %v309
        %v592 = vunpack.c.l.b16 %v310
        %v593 = vunpack.c.h.b16 %v310
        %v594 = vunpack.c.l.b16 %v311
        %v595 = vunpack.c.h.b16 %v311
        %v596 = vunpack.c.l.b16 %v312
        %v597 = vunpack.c.h.b16 %v312
        %v598 = vunpack.c.l.b16 %v313
        %v599 = vunpack.c.h.b16 %v313
        %v600 = vunpack.c.l.b16 %v314
        %v601 = vunpack.c.h.b16 %v314
        %v602 = vunpack.c.l.b16 %v315
        %v603 = vunpack.c.h.b16 %v315
        %v604 = vunpack.c.l.b16 %v316
        %v605 = vunpack.c.h.b16 %v316
        %v606 = vunpack.c.l.b16 %v317
        %v607 = vunpack.c.h.b16 %v317
        %v608 = vunpack.c.l.b16 %v318
        %v609 = vunpack.c.h.b16 %v318
        %v610 = vunpack.c.l.b16 %v319
        %v611 = vunpack.c.h.b16 %v319
        %v612 = vunpack.c.l.b16 %v320
        %v613 = vunpack.c.h.b16 %v320
        %v614 = vunpack.c.l.b16 %v321
        %v615 = vunpack.c.h.b16 %v321
        %v616 = vunpack.c.l.b16 %v322
        %v617 = vunpack.c.h.b16 %v322
        %v618 = vunpack.c.l.b16 %v323
        %v619 = vunpack.c.h.b16 %v323
        %v620 = vunpack.c.l.b16 %v324
        %v621 = vunpack.c.h.b16 %v324
        %v622 = vunpack.c.l.b16 %v325
        %v623 = vunpack.c.h.b16 %v325
        %v624 = vunpack.c.l.b16 %v326
        %v625 = vunpack.c.h.b16 %v326
        %v626 = vunpack.c.l.b16 %v327
        %v627 = vunpack.c.h.b16 %v327
        %v628 = vunpack.c.l.b16 %v328
        %v629 = vunpack.c.h.b16 %v328
        %v630 = vunpack.c.l.b16 %v329
        %v631 = vunpack.c.h.b16 %v329
        %v632 = vunpack.c.l.b16 %v330
        %v633 = vunpack.c.h.b16 %v330
        %v634 = vunpack.c.l.b16 %v331
        %v635 = vunpack.c.h.b16 %v331
        %v636 = vunpack.c.l.b16 %v332
        %v637 = vunpack.c.h.b16 %v332
        %v638 = vunpack.c.l.b16 %v333
        %v639 = vunpack.c.h.b16 %v333
        %v640 = vunpack.c.l.b16 %v334
        %v641 = vunpack.c.h.b16 %v334
        %v642 = vunpack.c.l.b16 %v335
        %v643 = vunpack.c.h.b16 %v335
        %v644 = vunpack.c.l.b16 %v336
        %v645 = vunpack.c.h.b16 %v336
        %v646 = vunpack.c.l.b16 %v337
        %v647 = vunpack.c.h.b16 %v337
        %v648 = vunpack.c.l.b16 %v338
        %v649 = vunpack.c.h.b16 %v338
        %v650 = vunpack.c.l.b16 %v339
        %v651 = vunpack.c.h.b16 %v339
        %v652 = vunpack.c.l.b16 %v340
        %v653 = vunpack.c.h.b16 %v340
        %v654 = vunpack.c.l.b16 %v341
        %v655 = vunpack.c.h.b16 %v341
        %v656 = vunpack.c.l.b16 %v342
        %v657 = vunpack.c.h.b16 %v342
        %v658 = vunpack.c.l.b16 %v343
        %v659 = vunpack.c.h.b16 %v343
        %v660 = vunpack.c.l.b16 %v344
        %v661 = vunpack.c.h.b16 %v344
        %v662 = vunpack.c.l.b16 %v345
        %v663 = vunpack.c.h.b16 %v345
        %v664 = vunpack.c.l.b16 %v346
        %v665 = vunpack.c.h.b16 %v346
        %v666 = vunpack.c.l.b16 %v347
        %v667 = vunpack.c.h.b16 %v347
        %v668 = vpack.c.b16 %v548, %v540
        %v669 = vpack.c.b16 %v549, %v541
        %v670 = vpack.c.b16 %v550, %v542
        %v671 = vpack.c.b16 %v551, %v543
        %v672 = vpack.c.b16 %v552, %v544
        %v673 = vpack.c.b16 %v553, %v545
        %v674 = vpack.c.b16 %v554, %v546
        %v675 = vpack.c.b16 %v555, %v547
        %v676 = vpack.c.b16 %v564, %v556
        %v677 = vpack.c.b16 %v565, %v557
        %v678 = vpack.c.b16 %v566, %v558
        %v679 = vpack.c.b16 %v567, %v559
        %v680 = vpack.c.b16 %v568, %v560
        %v681 = vpack.c.b16 %v569, %v561
        %v682 = vpack.c.b16 %v570, %v562
        %v683 = vpack.c.b16 %v571, %v563
        %v684 = vpack.c.b16 %v580, %v572
        %v685 = vpack.c.b16 %v581, %v573
        %v686 = vpack.c.b16 %v582, %v574
        %v687 = vpack.c.b16 %v583, %v575
        %v688 = vpack.c.b16 %v584, %v576
        %v689 = vpack.c.b16 %v585, %v577
        %v690 = vpack.c.b16 %v586, %v578
        %v691 = vpack.c.b16 %v587, %v579
        %v692 = vpack.c.b16 %v596, %v588
        %v693 = vpack.c.b16 %v597, %v589
        %v694 = vpack.c.b16 %v598, %v590
        %v695 = vpack.c.b16 %v599, %v591
        %v696 = vpack.c.b16 %v600, %v592
        %v697 = vpack.c.b16 %v601, %v593
        %v698 = vpack.c.b16 %v602, %v594
        %v699 = vpack.c.b16 %v603, %v595
        %v700 = vpack.c.b16 %v612, %v604
        %v701 = vpack.c.b16 %v613, %v605
        %v702 = vpack.c.b16 %v614, %v606
        %v703 = vpack.c.b16 %v615, %v607
        %v704 = vpack.c.b16 %v616, %v608
        %v705 = vpack.c.b16 %v617, %v609
        %v706 = vpack.c.b16 %v618, %v610
        %v707 = vpack.c.b16 %v619, %v611
        %v708 = vpack.c.b16 %v628, %v620
        %v709 = vpack.c.b16 %v629, %v621
        %v710 = vpack.c.b16 %v630, %v622
        %v711 = vpack.c.b16 %v631, %v623
        %v712 = vpack.c.b16 %v632, %v624
        %v713 = vpack.c.b16 %v633, %v625
        %v714 = vpack.c.b16 %v634, %v626
        %v715 = vpack.c.b16 %v635, %v627
        %v716 = vpack.c.b16 %v644, %v636
        %v717 = vpack.c.b16 %v645, %v637
        %v718 = vpack.c.b16 %v646, %v638
        %v719 = vpack.c.b16 %v647, %v639
        %v720 = vpack.c.b16 %v648, %v640
        %v721 = vpack.c.b16 %v649, %v641
        %v722 = vpack.c.b16 %v650, %v642
        %v723 = vpack.c.b16 %v651, %v643
        %v724 = vpack.c.b16 %v660, %v652
        %v725 = vpack.c.b16 %v661, %v653
        %v726 = vpack.c.b16 %v662, %v654
        %v727 = vpack.c.b16 %v663, %v655
        %v728 = vpack.c.b16 %v664, %v656
        %v729 = vpack.c.b16 %v665, %v657
        %v730 = vpack.c.b16 %v666, %v658
        %v731 = vpack.c.b16 %v667, %v659
        %v924 = vunpack.c.l.b16 %v348
        %v925 = vunpack.c.l.b16 %v349
        %v926 = vunpack.c.l.b16 %v350
        %v927 = vunpack.c.l.b16 %v351
        %v928 = vunpack.c.l.b16 %v352
        %v929 = vunpack.c.l.b16 %v353
        %v930 = vunpack.c.l.b16 %v354
        %v931 = vunpack.c.l.b16 %v355
        %v932 = vunpack.c.l.b16 %v356
        %v933 = vunpack.c.l.b16 %v357
        %v934 = vunpack.c.l.b16 %v358
        %v935 = vunpack.c.l.b16 %v359
        %v936 = vunpack.c.l.b16 %v360
        %v937 = vunpack.c.l.b16 %v361
        %v938 = vunpack.c.l.b16 %v362
        %v939 = vunpack.c.l.b16 %v363
        %v940 = vunpack.c.l.b16 %v364
        %v941 = vunpack.c.l.b16 %v365
        %v942 = vunpack.c.l.b16 %v366
        %v943 = vunpack.c.l.b16 %v367
        %v944 = vunpack.c.l.b16 %v368
        %v945 = vunpack.c.l.b16 %v369
        %v946 = vunpack.c.l.b16 %v370
        %v947 = vunpack.c.l.b16 %v371
        %v948 = vunpack.c.l.b16 %v372
        %v949 = vunpack.c.l.b16 %v373
        %v950 = vunpack.c.l.b16 %v374
        %v951 = vunpack.c.l.b16 %v375
        %v952 = vunpack.c.l.b16 %v376
        %v953 = vunpack.c.l.b16 %v377
        %v954 = vunpack.c.l.b16 %v378
        %v955 = vunpack.c.l.b16 %v379
        %v956 = vunpack.c.l.b16 %v380
        %v957 = vunpack.c.l.b16 %v381
        %v958 = vunpack.c.l.b16 %v382
        %v959 = vunpack.c.l.b16 %v383
        %v960 = vunpack.c.l.b16 %v384
        %v961 = vunpack.c.l.b16 %v385
        %v962 = vunpack.c.l.b16 %v386
        %v963 = vunpack.c.l.b16 %v387
        %v964 = vunpack.c.l.b16 %v388
        %v965 = vunpack.c.l.b16 %v389
        %v966 = vunpack.c.l.b16 %v390
        %v967 = vunpack.c.l.b16 %v391
        %v968 = vunpack.c.l.b16 %v392
        %v969 = vunpack.c.l.b16 %v393
        %v970 = vunpack.c.l.b16 %v394
        %v971 = vunpack.c.l.b16 %v395
        %v972 = vunpack.c.l.b16 %v396
        %v973 = vunpack.c.l.b16 %v397
        %v974 = vunpack.c.l.b16 %v398
        %v975 = vunpack.c.l.b16 %v399
        %v976 = vunpack.c.l.b16 %v400
        %v977 = vunpack.c.l.b16 %v401
        %v978 = vunpack.c.l.b16 %v402
        %v979 = vunpack.c.l.b16 %v403
        %v980 = vunpack.c.l.b16 %v404
        %v981 = vunpack.c.l.b16 %v405
        %v982 = vunpack.c.l.b16 %v406
        %v983 = vunpack.c.l.b16 %v407
        %v984 = vunpack.c.l.b16 %v408
        %v985 = vunpack.c.l.b16 %v409
        %v986 = vunpack.c.l.b16 %v410
        %v987 = vunpack.c.l.b16 %v411
        %v988 = vunpack.c.l.b16 %v412
        %v989 = vunpack.c.l.b16 %v413
        %v990 = vunpack.c.l.b16 %v414
        %v991 = vunpack.c.l.b16 %v415
        %v992 = vunpack.c.l.b16 %v416
        %v993 = vunpack.c.l.b16 %v417
        %v994 = vunpack.c.l.b16 %v418
        %v995 = vunpack.c.l.b16 %v419
        %v996 = vunpack.c.l.b16 %v420
        %v997 = vunpack.c.l.b16 %v421
        %v998 = vunpack.c.l.b16 %v422
        %v999 = vunpack.c.l.b16 %v423
        %v1000 = vunpack.c.l.b16 %v424
        %v1001 = vunpack.c.l.b16 %v425
        %v1002 = vunpack.c.l.b16 %v426
        %v1003 = vunpack.c.l.b16 %v427
        %v1004 = vunpack.c.l.b16 %v428
        %v1005 = vunpack.c.l.b16 %v429
        %v1006 = vunpack.c.l.b16 %v430
        %v1007 = vunpack.c.l.b16 %v431
        %v1008 = vunpack.c.l.b16 %v432
        %v1009 = vunpack.c.l.b16 %v433
        %v1010 = vunpack.c.l.b16 %v434
        %v1011 = vunpack.c.l.b16 %v435
        %v1012 = vunpack.c.l.b16 %v436
        %v1013 = vunpack.c.l.b16 %v437
        %v1014 = vunpack.c.l.b16 %v438
        %v1015 = vunpack.c.l.b16 %v439
        %v1016 = vunpack.c.l.b16 %v440
        %v1017 = vunpack.c.l.b16 %v441
        %v1018 = vunpack.c.l.b16 %v442
        %v1019 = vunpack.c.l.b16 %v443
        %v1020 = vunpack.c.l.b16 %v444
        %v1021 = vunpack.c.l.b16 %v445
        %v1022 = vunpack.c.l.b16 %v446
        %v1023 = vunpack.c.l.b16 %v447
        %v1024 = vunpack.c.l.b16 %v448
        %v1025 = vunpack.c.l.b16 %v449
        %v1026 = vunpack.c.l.b16 %v450
        %v1027 = vunpack.c.l.b16 %v451
        %v1028 = vunpack.c.l.b16 %v452
        %v1029 = vunpack.c.l.b16 %v453
        %v1030 = vunpack.c.l.b16 %v454
        %v1031 = vunpack.c.l.b16 %v455
        %v1032 = vunpack.c.l.b16 %v456
        %v1033 = vunpack.c.l.b16 %v457
        %v1034 = vunpack.c.l.b16 %v458
        %v1035 = vunpack.c.l.b16 %v459
        %v1036 = vunpack.c.l.b16 %v460
        %v1037 = vunpack.c.l.b16 %v461
        %v1038 = vunpack.c.l.b16 %v462
        %v1039 = vunpack.c.l.b16 %v463
        %v1040 = vunpack.c.l.b16 %v464
        %v1041 = vunpack.c.l.b16 %v465
        %v1042 = vunpack.c.l.b16 %v466
        %v1043 = vunpack.c.l.b16 %v467
        %v1044 = vunpack.c.l.b16 %v468
        %v1045 = vunpack.c.l.b16 %v469
        %v1046 = vunpack.c.l.b16 %v470
        %v1047 = vunpack.c.l.b16 %v471
        %v1048 = vunpack.c.l.b16 %v472
        %v1049 = vunpack.c.l.b16 %v473
        %v1050 = vunpack.c.l.b16 %v474
        %v1051 = vunpack.c.l.b16 %v475
        %v1052 = vpack.c.b16 %v925, %v924
        %v1053 = vpack.c.b16 %v927, %v926
        %v1054 = vpack.c.b16 %v929, %v928
        %v1055 = vpack.c.b16 %v931, %v930
        %v1056 = vpack.c.b16 %v933, %v932
        %v1057 = vpack.c.b16 %v935, %v934
        %v1058 = vpack.c.b16 %v937, %v936
        %v1059 = vpack.c.b16 %v939, %v938
        %v1060 = vpack.c.b16 %v941, %v940
        %v1061 = vpack.c.b16 %v943, %v942
        %v1062 = vpack.c.b16 %v945, %v944
        %v1063 = vpack.c.b16 %v947, %v946
        %v1064 = vpack.c.b16 %v949, %v948
        %v1065 = vpack.c.b16 %v951, %v950
        %v1066 = vpack.c.b16 %v953, %v952
        %v1067 = vpack.c.b16 %v955, %v954
        %v1068 = vpack.c.b16 %v957, %v956
        %v1069 = vpack.c.b16 %v959, %v958
        %v1070 = vpack.c.b16 %v961, %v960
        %v1071 = vpack.c.b16 %v963, %v962
        %v1072 = vpack.c.b16 %v965, %v964
        %v1073 = vpack.c.b16 %v967, %v966
        %v1074 = vpack.c.b16 %v969, %v968
        %v1075 = vpack.c.b16 %v971, %v970
        %v1076 = vpack.c.b16 %v973, %v972
        %v1077 = vpack.c.b16 %v975, %v974
        %v1078 = vpack.c.b16 %v977, %v976
        %v1079 = vpack.c.b16 %v979, %v978
        %v1080 = vpack.c.b16 %v981, %v980
        %v1081 = vpack.c.b16 %v983, %v982
        %v1082 = vpack.c.b16 %v985, %v984
        %v1083 = vpack.c.b16 %v987, %v986
        %v1084 = vpack.c.b16 %v989, %v988
        %v1085 = vpack.c.b16 %v991, %v990
        %v1086 = vpack.c.b16 %v993, %v992
        %v1087 = vpack.c.b16 %v995, %v994
        %v1088 = vpack.c.b16 %v997, %v996
        %v1089 = vpack.c.b16 %v999, %v998
        %v1090 = vpack.c.b16 %v1001, %v1000
        %v1091 = vpack.c.b16 %v1003, %v1002
        %v1092 = vpack.c.b16 %v1005, %v1004
        %v1093 = vpack.c.b16 %v1007, %v1006
        %v1094 = vpack.c.b16 %v1009, %v1008
        %v1095 = vpack.c.b16 %v1011, %v1010
        %v1096 = vpack.c.b16 %v1013, %v1012
        %v1097 = vpack.c.b16 %v1015, %v1014
        %v1098 = vpack.c.b16 %v1017, %v1016
        %v1099 = vpack.c.b16 %v1019, %v1018
        %v1100 = vpack.c.b16 %v1021, %v1020
        %v1101 = vpack.c.b16 %v1023, %v1022
        %v1102 = vpack.c.b16 %v1025, %v1024
        %v1103 = vpack.c.b16 %v1027, %v1026
        %v1104 = vpack.c.b16 %v1029, %v1028
        %v1105 = vpack.c.b16 %v1031, %v1030
        %v1106 = vpack.c.b16 %v1033, %v1032
        %v1107 = vpack.c.b16 %v1035, %v1034
        %v1108 = vpack.c.b16 %v1037, %v1036
        %v1109 = vpack.c.b16 %v1039, %v1038
        %v1110 = vpack.c.b16 %v1041, %v1040
        %v1111 = vpack.c.b16 %v1043, %v1042
        %v1112 = vpack.c.b16 %v1045, %v1044
        %v1113 = vpack.c.b16 %v1047, %v1046
        %v1114 = vpack.c.b16 %v1049, %v1048
        %v1115 = vpack.c.b16 %v1051, %v1050
        %1180 = vmatpush.bf16.msra.mxu0 %v1059
        %1181 = vmatpush.bf16.msra.mxu0 %v1058
        %1182 = vmatpush.bf16.msra.mxu0 %v1057
        %1183 = vmatpush.bf16.msra.mxu0 %v1056
        %1184 = vmatpush.bf16.msra.mxu0 %v1055
        %1185 = vmatpush.bf16.msra.mxu0 %v1054
        %1186 = vmatpush.bf16.msra.mxu0 %v1053
        %1187 = vmatpush.bf16.msra.mxu0 %v1052
        %1188 = vmatmul.bf16.gmra.mxu0 %v668
        %v1189 = vpop.f32.mrf.mxu0
        %v1190 = vadd.f32 0.0, %v1189
        %v1191 = vpop.f32.mrf.mxu0
        %v1192 = vadd.f32 0.0, %v1191
        %1193 = vmatmul.bf16.gmra.mxu0 %v676
        %v1194 = vpop.f32.mrf.mxu0
        %v1195 = vadd.f32 0.0, %v1194
        %v1196 = vpop.f32.mrf.mxu0
        %v1197 = vadd.f32 0.0, %v1196
        %1198 = vmatmul.bf16.gmra.mxu0 %v684
        %v1199 = vpop.f32.mrf.mxu0
        %v1200 = vadd.f32 0.0, %v1199
        %v1201 = vpop.f32.mrf.mxu0
        %v1202 = vadd.f32 0.0, %v1201
        %1203 = vmatmul.bf16.gmra.mxu0 %v692
        %v1204 = vpop.f32.mrf.mxu0
        %v1205 = vadd.f32 0.0, %v1204
        %v1206 = vpop.f32.mrf.mxu0
        %v1207 = vadd.f32 0.0, %v1206
        %1208 = vmatmul.bf16.gmra.mxu0 %v700
        %v1209 = vpop.f32.mrf.mxu0
        %v1210 = vadd.f32 0.0, %v1209
        %v1211 = vpop.f32.mrf.mxu0
        %v1212 = vadd.f32 0.0, %v1211
        %1213 = vmatmul.bf16.gmra.mxu0 %v708
        %v1214 = vpop.f32.mrf.mxu0
        %v1215 = vadd.f32 0.0, %v1214
        %v1216 = vpop.f32.mrf.mxu0
        %v1217 = vadd.f32 0.0, %v1216
        %1218 = vmatmul.bf16.gmra.mxu0 %v716
        %v1219 = vpop.f32.mrf.mxu0
        %v1220 = vadd.f32 0.0, %v1219
        %v1221 = vpop.f32.mrf.mxu0
        %v1222 = vadd.f32 0.0, %v1221
        %1223 = vmatmul.bf16.gmra.mxu0 %v724
        %v1224 = vpop.f32.mrf.mxu0
        %v1225 = vadd.f32 0.0, %v1224
        %v1226 = vpop.f32.mrf.mxu0
        %v1227 = vadd.f32 0.0, %v1226
        %1228 = vdwg.mxu0
        %1229 = vmatpush.bf16.msra.mxu0 %v1067
        %1230 = vmatpush.bf16.msra.mxu0 %v1066
        %1231 = vmatpush.bf16.msra.mxu0 %v1065
        %1232 = vmatpush.bf16.msra.mxu0 %v1064
        %1233 = vmatpush.bf16.msra.mxu0 %v1063
        %1234 = vmatpush.bf16.msra.mxu0 %v1062
        %1235 = vmatpush.bf16.msra.mxu0 %v1061
        %1236 = vmatpush.bf16.msra.mxu0 %v1060
        %1237 = vmatmul.bf16.gmra.mxu0 %v669
        %v1238 = vpop.f32.mrf.mxu0
        %v1239 = vadd.f32 %v1190, %v1238
        %v1240 = vpop.f32.mrf.mxu0
        %v1241 = vadd.f32 %v1192, %v1240
        %1242 = vmatmul.bf16.gmra.mxu0 %v677
        %v1243 = vpop.f32.mrf.mxu0
        %v1244 = vadd.f32 %v1195, %v1243
        %v1245 = vpop.f32.mrf.mxu0
        %v1246 = vadd.f32 %v1197, %v1245
        %1247 = vmatmul.bf16.gmra.mxu0 %v685
        %v1248 = vpop.f32.mrf.mxu0
        %v1249 = vadd.f32 %v1200, %v1248
        %v1250 = vpop.f32.mrf.mxu0
        %v1251 = vadd.f32 %v1202, %v1250
        %1252 = vmatmul.bf16.gmra.mxu0 %v693
        %v1253 = vpop.f32.mrf.mxu0
        %v1254 = vadd.f32 %v1205, %v1253
        %v1255 = vpop.f32.mrf.mxu0
        %v1256 = vadd.f32 %v1207, %v1255
        %1257 = vmatmul.bf16.gmra.mxu0 %v701
        %v1258 = vpop.f32.mrf.mxu0
        %v1259 = vadd.f32 %v1210, %v1258
        %v1260 = vpop.f32.mrf.mxu0
        %v1261 = vadd.f32 %v1212, %v1260
        %1262 = vmatmul.bf16.gmra.mxu0 %v709
        %v1263 = vpop.f32.mrf.mxu0
        %v1264 = vadd.f32 %v1215, %v1263
        %v1265 = vpop.f32.mrf.mxu0
        %v1266 = vadd.f32 %v1217, %v1265
        %1267 = vmatmul.bf16.gmra.mxu0 %v717
        %v1268 = vpop.f32.mrf.mxu0
        %v1269 = vadd.f32 %v1220, %v1268
        %v1270 = vpop.f32.mrf.mxu0
        %v1271 = vadd.f32 %v1222, %v1270
        %1272 = vmatmul.bf16.gmra.mxu0 %v725
        %v1273 = vpop.f32.mrf.mxu0
        %v1274 = vadd.f32 %v1225, %v1273
        %v1275 = vpop.f32.mrf.mxu0
        %v1276 = vadd.f32 %v1227, %v1275
        %1277 = vdwg.mxu0
        %1278 = vmatpush.bf16.msra.mxu0 %v1075
        %1279 = vmatpush.bf16.msra.mxu0 %v1074
        %1280 = vmatpush.bf16.msra.mxu0 %v1073
        %1281 = vmatpush.bf16.msra.mxu0 %v1072
        %1282 = vmatpush.bf16.msra.mxu0 %v1071
        %1283 = vmatpush.bf16.msra.mxu0 %v1070
        %1284 = vmatpush.bf16.msra.mxu0 %v1069
        %1285 = vmatpush.bf16.msra.mxu0 %v1068
        %1286 = vmatmul.bf16.gmra.mxu0 %v670
        %v1287 = vpop.f32.mrf.mxu0
        %v1288 = vadd.f32 %v1239, %v1287
        %v1289 = vpop.f32.mrf.mxu0
        %v1290 = vadd.f32 %v1241, %v1289
        %1291 = vmatmul.bf16.gmra.mxu0 %v678
        %v1292 = vpop.f32.mrf.mxu0
        %v1293 = vadd.f32 %v1244, %v1292
        %v1294 = vpop.f32.mrf.mxu0
        %v1295 = vadd.f32 %v1246, %v1294
        %1296 = vmatmul.bf16.gmra.mxu0 %v686
        %v1297 = vpop.f32.mrf.mxu0
        %v1298 = vadd.f32 %v1249, %v1297
        %v1299 = vpop.f32.mrf.mxu0
        %v1300 = vadd.f32 %v1251, %v1299
        %1301 = vmatmul.bf16.gmra.mxu0 %v694
        %v1302 = vpop.f32.mrf.mxu0
        %v1303 = vadd.f32 %v1254, %v1302
        %v1304 = vpop.f32.mrf.mxu0
        %v1305 = vadd.f32 %v1256, %v1304
        %1306 = vmatmul.bf16.gmra.mxu0 %v702
        %v1307 = vpop.f32.mrf.mxu0
        %v1308 = vadd.f32 %v1259, %v1307
        %v1309 = vpop.f32.mrf.mxu0
        %v1310 = vadd.f32 %v1261, %v1309
        %1311 = vmatmul.bf16.gmra.mxu0 %v710
        %v1312 = vpop.f32.mrf.mxu0
        %v1313 = vadd.f32 %v1264, %v1312
        %v1314 = vpop.f32.mrf.mxu0
        %v1315 = vadd.f32 %v1266, %v1314
        %1316 = vmatmul.bf16.gmra.mxu0 %v718
        %v1317 = vpop.f32.mrf.mxu0
        %v1318 = vadd.f32 %v1269, %v1317
        %v1319 = vpop.f32.mrf.mxu0
        %v1320 = vadd.f32 %v1271, %v1319
        %1321 = vmatmul.bf16.gmra.mxu0 %v726
        %v1322 = vpop.f32.mrf.mxu0
        %v1323 = vadd.f32 %v1274, %v1322
        %v1324 = vpop.f32.mrf.mxu0
        %v1325 = vadd.f32 %v1276, %v1324
        %1326 = vdwg.mxu0
        %1327 = vmatpush.bf16.msra.mxu0 %v1083
        %1328 = vmatpush.bf16.msra.mxu0 %v1082
        %1329 = vmatpush.bf16.msra.mxu0 %v1081
        %1330 = vmatpush.bf16.msra.mxu0 %v1080
        %1331 = vmatpush.bf16.msra.mxu0 %v1079
        %1332 = vmatpush.bf16.msra.mxu0 %v1078
        %1333 = vmatpush.bf16.msra.mxu0 %v1077
        %1334 = vmatpush.bf16.msra.mxu0 %v1076
        %1335 = vmatmul.bf16.gmra.mxu0 %v671
        %v1336 = vpop.f32.mrf.mxu0
        %v1337 = vadd.f32 %v1288, %v1336
        %v1338 = vpop.f32.mrf.mxu0
        %v1339 = vadd.f32 %v1290, %v1338
        %1340 = vmatmul.bf16.gmra.mxu0 %v679
        %v1341 = vpop.f32.mrf.mxu0
        %v1342 = vadd.f32 %v1293, %v1341
        %v1343 = vpop.f32.mrf.mxu0
        %v1344 = vadd.f32 %v1295, %v1343
        %1345 = vmatmul.bf16.gmra.mxu0 %v687
        %v1346 = vpop.f32.mrf.mxu0
        %v1347 = vadd.f32 %v1298, %v1346
        %v1348 = vpop.f32.mrf.mxu0
        %v1349 = vadd.f32 %v1300, %v1348
        %1350 = vmatmul.bf16.gmra.mxu0 %v695
        %v1351 = vpop.f32.mrf.mxu0
        %v1352 = vadd.f32 %v1303, %v1351
        %v1353 = vpop.f32.mrf.mxu0
        %v1354 = vadd.f32 %v1305, %v1353
        %1355 = vmatmul.bf16.gmra.mxu0 %v703
        %v1356 = vpop.f32.mrf.mxu0
        %v1357 = vadd.f32 %v1308, %v1356
        %v1358 = vpop.f32.mrf.mxu0
        %v1359 = vadd.f32 %v1310, %v1358
        %1360 = vmatmul.bf16.gmra.mxu0 %v711
        %v1361 = vpop.f32.mrf.mxu0
        %v1362 = vadd.f32 %v1313, %v1361
        %v1363 = vpop.f32.mrf.mxu0
        %v1364 = vadd.f32 %v1315, %v1363
        %1365 = vmatmul.bf16.gmra.mxu0 %v719
        %v1366 = vpop.f32.mrf.mxu0
        %v1367 = vadd.f32 %v1318, %v1366
        %v1368 = vpop.f32.mrf.mxu0
        %v1369 = vadd.f32 %v1320, %v1368
        %1370 = vmatmul.bf16.gmra.mxu0 %v727
        %v1371 = vpop.f32.mrf.mxu0
        %v1372 = vadd.f32 %v1323, %v1371
        %v1373 = vpop.f32.mrf.mxu0
        %v1374 = vadd.f32 %v1325, %v1373
        %1375 = vdwg.mxu0
        %1376 = vmatpush.bf16.msra.mxu0 %v1091
        %1377 = vmatpush.bf16.msra.mxu0 %v1090
        %1378 = vmatpush.bf16.msra.mxu0 %v1089
        %1379 = vmatpush.bf16.msra.mxu0 %v1088
        %1380 = vmatpush.bf16.msra.mxu0 %v1087
        %1381 = vmatpush.bf16.msra.mxu0 %v1086
        %1382 = vmatpush.bf16.msra.mxu0 %v1085
        %1383 = vmatpush.bf16.msra.mxu0 %v1084
        %1384 = vmatmul.bf16.gmra.mxu0 %v672
        %v1385 = vpop.f32.mrf.mxu0
        %v1386 = vadd.f32 %v1337, %v1385
        %v1387 = vpop.f32.mrf.mxu0
        %v1388 = vadd.f32 %v1339, %v1387
        %1389 = vmatmul.bf16.gmra.mxu0 %v680
        %v1390 = vpop.f32.mrf.mxu0
        %v1391 = vadd.f32 %v1342, %v1390
        %v1392 = vpop.f32.mrf.mxu0
        %v1393 = vadd.f32 %v1344, %v1392
        %1394 = vmatmul.bf16.gmra.mxu0 %v688
        %v1395 = vpop.f32.mrf.mxu0
        %v1396 = vadd.f32 %v1347, %v1395
        %v1397 = vpop.f32.mrf.mxu0
        %v1398 = vadd.f32 %v1349, %v1397
        %1399 = vmatmul.bf16.gmra.mxu0 %v696
        %v1400 = vpop.f32.mrf.mxu0
        %v1401 = vadd.f32 %v1352, %v1400
        %v1402 = vpop.f32.mrf.mxu0
        %v1403 = vadd.f32 %v1354, %v1402
        %1404 = vmatmul.bf16.gmra.mxu0 %v704
        %v1405 = vpop.f32.mrf.mxu0
        %v1406 = vadd.f32 %v1357, %v1405
        %v1407 = vpop.f32.mrf.mxu0
        %v1408 = vadd.f32 %v1359, %v1407
        %1409 = vmatmul.bf16.gmra.mxu0 %v712
        %v1410 = vpop.f32.mrf.mxu0
        %v1411 = vadd.f32 %v1362, %v1410
        %v1412 = vpop.f32.mrf.mxu0
        %v1413 = vadd.f32 %v1364, %v1412
        %1414 = vmatmul.bf16.gmra.mxu0 %v720
        %v1415 = vpop.f32.mrf.mxu0
        %v1416 = vadd.f32 %v1367, %v1415
        %v1417 = vpop.f32.mrf.mxu0
        %v1418 = vadd.f32 %v1369, %v1417
        %1419 = vmatmul.bf16.gmra.mxu0 %v728
        %v1420 = vpop.f32.mrf.mxu0
        %v1421 = vadd.f32 %v1372, %v1420
        %v1422 = vpop.f32.mrf.mxu0
        %v1423 = vadd.f32 %v1374, %v1422
        %1424 = vdwg.mxu0
        %1425 = vmatpush.bf16.msra.mxu0 %v1099
        %1426 = vmatpush.bf16.msra.mxu0 %v1098
        %1427 = vmatpush.bf16.msra.mxu0 %v1097
        %1428 = vmatpush.bf16.msra.mxu0 %v1096
        %1429 = vmatpush.bf16.msra.mxu0 %v1095
        %1430 = vmatpush.bf16.msra.mxu0 %v1094
        %1431 = vmatpush.bf16.msra.mxu0 %v1093
        %1432 = vmatpush.bf16.msra.mxu0 %v1092
        %1433 = vmatmul.bf16.gmra.mxu0 %v673
        %v1434 = vpop.f32.mrf.mxu0
        %v1435 = vadd.f32 %v1386, %v1434
        %v1436 = vpop.f32.mrf.mxu0
        %v1437 = vadd.f32 %v1388, %v1436
        %1438 = vmatmul.bf16.gmra.mxu0 %v681
        %v1439 = vpop.f32.mrf.mxu0
        %v1440 = vadd.f32 %v1391, %v1439
        %v1441 = vpop.f32.mrf.mxu0
        %v1442 = vadd.f32 %v1393, %v1441
        %1443 = vmatmul.bf16.gmra.mxu0 %v689
        %v1444 = vpop.f32.mrf.mxu0
        %v1445 = vadd.f32 %v1396, %v1444
        %v1446 = vpop.f32.mrf.mxu0
        %v1447 = vadd.f32 %v1398, %v1446
        %1448 = vmatmul.bf16.gmra.mxu0 %v697
        %v1449 = vpop.f32.mrf.mxu0
        %v1450 = vadd.f32 %v1401, %v1449
        %v1451 = vpop.f32.mrf.mxu0
        %v1452 = vadd.f32 %v1403, %v1451
        %1453 = vmatmul.bf16.gmra.mxu0 %v705
        %v1454 = vpop.f32.mrf.mxu0
        %v1455 = vadd.f32 %v1406, %v1454
        %v1456 = vpop.f32.mrf.mxu0
        %v1457 = vadd.f32 %v1408, %v1456
        %1458 = vmatmul.bf16.gmra.mxu0 %v713
        %v1459 = vpop.f32.mrf.mxu0
        %v1460 = vadd.f32 %v1411, %v1459
        %v1461 = vpop.f32.mrf.mxu0
        %v1462 = vadd.f32 %v1413, %v1461
        %1463 = vmatmul.bf16.gmra.mxu0 %v721
        %v1464 = vpop.f32.mrf.mxu0
        %v1465 = vadd.f32 %v1416, %v1464
        %v1466 = vpop.f32.mrf.mxu0
        %v1467 = vadd.f32 %v1418, %v1466
        %1468 = vmatmul.bf16.gmra.mxu0 %v729
        %v1469 = vpop.f32.mrf.mxu0
        %v1470 = vadd.f32 %v1421, %v1469
        %v1471 = vpop.f32.mrf.mxu0
        %v1472 = vadd.f32 %v1423, %v1471
        %1473 = vdwg.mxu0
        %1474 = vmatpush.bf16.msra.mxu0 %v1107
        %1475 = vmatpush.bf16.msra.mxu0 %v1106
        %1476 = vmatpush.bf16.msra.mxu0 %v1105
        %1477 = vmatpush.bf16.msra.mxu0 %v1104
        %1478 = vmatpush.bf16.msra.mxu0 %v1103
        %1479 = vmatpush.bf16.msra.mxu0 %v1102
        %1480 = vmatpush.bf16.msra.mxu0 %v1101
        %1481 = vmatpush.bf16.msra.mxu0 %v1100
        %1482 = vmatmul.bf16.gmra.mxu0 %v674
        %v1483 = vpop.f32.mrf.mxu0
        %v1484 = vadd.f32 %v1435, %v1483
        %v1485 = vpop.f32.mrf.mxu0
        %v1486 = vadd.f32 %v1437, %v1485
        %1487 = vmatmul.bf16.gmra.mxu0 %v682
        %v1488 = vpop.f32.mrf.mxu0
        %v1489 = vadd.f32 %v1440, %v1488
        %v1490 = vpop.f32.mrf.mxu0
        %v1491 = vadd.f32 %v1442, %v1490
        %1492 = vmatmul.bf16.gmra.mxu0 %v690
        %v1493 = vpop.f32.mrf.mxu0
        %v1494 = vadd.f32 %v1445, %v1493
        %v1495 = vpop.f32.mrf.mxu0
        %v1496 = vadd.f32 %v1447, %v1495
        %1497 = vmatmul.bf16.gmra.mxu0 %v698
        %v1498 = vpop.f32.mrf.mxu0
        %v1499 = vadd.f32 %v1450, %v1498
        %v1500 = vpop.f32.mrf.mxu0
        %v1501 = vadd.f32 %v1452, %v1500
        %1502 = vmatmul.bf16.gmra.mxu0 %v706
        %v1503 = vpop.f32.mrf.mxu0
        %v1504 = vadd.f32 %v1455, %v1503
        %v1505 = vpop.f32.mrf.mxu0
        %v1506 = vadd.f32 %v1457, %v1505
        %1507 = vmatmul.bf16.gmra.mxu0 %v714
        %v1508 = vpop.f32.mrf.mxu0
        %v1509 = vadd.f32 %v1460, %v1508
        %v1510 = vpop.f32.mrf.mxu0
        %v1511 = vadd.f32 %v1462, %v1510
        %1512 = vmatmul.bf16.gmra.mxu0 %v722
        %v1513 = vpop.f32.mrf.mxu0
        %v1514 = vadd.f32 %v1465, %v1513
        %v1515 = vpop.f32.mrf.mxu0
        %v1516 = vadd.f32 %v1467, %v1515
        %1517 = vmatmul.bf16.gmra.mxu0 %v730
        %v1518 = vpop.f32.mrf.mxu0
        %v1519 = vadd.f32 %v1470, %v1518
        %v1520 = vpop.f32.mrf.mxu0
        %v1521 = vadd.f32 %v1472, %v1520
        %1522 = vdwg.mxu0
        %1523 = vmatpush.bf16.msra.mxu0 %v1115
        %1524 = vmatpush.bf16.msra.mxu0 %v1114
        %1525 = vmatpush.bf16.msra.mxu0 %v1113
        %1526 = vmatpush.bf16.msra.mxu0 %v1112
        %1527 = vmatpush.bf16.msra.mxu0 %v1111
        %1528 = vmatpush.bf16.msra.mxu0 %v1110
        %1529 = vmatpush.bf16.msra.mxu0 %v1109
        %1530 = vmatpush.bf16.msra.mxu0 %v1108
        %1531 = vmatmul.bf16.gmra.mxu0 %v675
        %v1532 = vpop.f32.mrf.mxu0
        %v1533 = vadd.f32 %v1484, %v1532
        %v1534 = vpop.f32.mrf.mxu0
        %v1535 = vadd.f32 %v1486, %v1534
        %1536 = vmatmul.bf16.gmra.mxu0 %v683
        %v1537 = vpop.f32.mrf.mxu0
        %v1538 = vadd.f32 %v1489, %v1537
        %v1539 = vpop.f32.mrf.mxu0
        %v1540 = vadd.f32 %v1491, %v1539
        %1541 = vmatmul.bf16.gmra.mxu0 %v691
        %v1542 = vpop.f32.mrf.mxu0
        %v1543 = vadd.f32 %v1494, %v1542
        %v1544 = vpop.f32.mrf.mxu0
        %v1545 = vadd.f32 %v1496, %v1544
        %1546 = vmatmul.bf16.gmra.mxu0 %v699
        %v1547 = vpop.f32.mrf.mxu0
        %v1548 = vadd.f32 %v1499, %v1547
        %v1549 = vpop.f32.mrf.mxu0
        %v1550 = vadd.f32 %v1501, %v1549
        %1551 = vmatmul.bf16.gmra.mxu0 %v707
        %v1552 = vpop.f32.mrf.mxu0
        %v1553 = vadd.f32 %v1504, %v1552
        %v1554 = vpop.f32.mrf.mxu0
        %v1555 = vadd.f32 %v1506, %v1554
        %1556 = vmatmul.bf16.gmra.mxu0 %v715
        %v1557 = vpop.f32.mrf.mxu0
        %v1558 = vadd.f32 %v1509, %v1557
        %v1559 = vpop.f32.mrf.mxu0
        %v1560 = vadd.f32 %v1511, %v1559
        %1561 = vmatmul.bf16.gmra.mxu0 %v723
        %v1562 = vpop.f32.mrf.mxu0
        %v1563 = vadd.f32 %v1514, %v1562
        %v1564 = vpop.f32.mrf.mxu0
        %v1565 = vadd.f32 %v1516, %v1564
        %1566 = vmatmul.bf16.gmra.mxu0 %v731
        %v1567 = vpop.f32.mrf.mxu0
        %v1568 = vadd.f32 %v1519, %v1567
        %v1569 = vpop.f32.mrf.mxu0
        %v1570 = vadd.f32 %v1521, %v1569
        %1571 = vdwg.mxu0
        %s1572 = smul.u32 %s21, 128
        %s1573 = scalar_lea.vmem [#allocation2], %s1572
        %vm1574 = vcmask 130048
        %1575 = vst.msk [vmem:[%s1573] sm:$0xff] %vm1574, %v1533
        %1576 = vst.msk [vmem:[%s1573 + $0x8] sm:$0xff] %vm1574, %v1535
        %1577 = vst.msk [vmem:[%s1573 + $0x10] sm:$0xff] %vm1574, %v1538
        %1578 = vst.msk [vmem:[%s1573 + $0x18] sm:$0xff] %vm1574, %v1540
        %1579 = vst.msk [vmem:[%s1573 + $0x20] sm:$0xff] %vm1574, %v1543
        %1580 = vst.msk [vmem:[%s1573 + $0x28] sm:$0xff] %vm1574, %v1545
        %1581 = vst.msk [vmem:[%s1573 + $0x30] sm:$0xff] %vm1574, %v1548
        %1582 = vst.msk [vmem:[%s1573 + $0x38] sm:$0xff] %vm1574, %v1550
        %1583 = vst.msk [vmem:[%s1573 + $0x40] sm:$0xff] %vm1574, %v1553
        %1584 = vst.msk [vmem:[%s1573 + $0x48] sm:$0xff] %vm1574, %v1555
        %1585 = vst.msk [vmem:[%s1573 + $0x50] sm:$0xff] %vm1574, %v1558
        %1586 = vst.msk [vmem:[%s1573 + $0x58] sm:$0xff] %vm1574, %v1560
        %1587 = vst.msk [vmem:[%s1573 + $0x60] sm:$0xff] %vm1574, %v1563
        %1588 = vst.msk [vmem:[%s1573 + $0x68] sm:$0xff] %vm1574, %v1565
        %1589 = vst.msk [vmem:[%s1573 + $0x70] sm:$0xff] %vm1574, %v1568
        %1590 = vst.msk [vmem:[%s1573 + $0x78] sm:$0xff] %vm1574, %v1570
        %v1591 = vld [vmem:[#allocation3] sm:$0xff]
        %v1592 = vld [vmem:[#allocation3 + $0x8] sm:$0xff]
        %v1593 = vld [vmem:[#allocation3 + $0x10] sm:$0xff]
        %v1594 = vld [vmem:[#allocation3 + $0x18] sm:$0xff]
        %v1595 = vld [vmem:[#allocation3 + $0x20] sm:$0xff]
        %v1596 = vld [vmem:[#allocation3 + $0x28] sm:$0xff]
        %v1597 = vld [vmem:[#allocation3 + $0x30] sm:$0xff]
        %v1598 = vld [vmem:[#allocation3 + $0x38] sm:$0xff]
        %v1599 = vld [vmem:[#allocation3 + $0x40] sm:$0xff]
        %v1600 = vld [vmem:[#allocation3 + $0x48] sm:$0xff]
        %v1601 = vld [vmem:[#allocation3 + $0x50] sm:$0xff]
        %v1602 = vld [vmem:[#allocation3 + $0x58] sm:$0xff]
        %v1603 = vld [vmem:[#allocation3 + $0x60] sm:$0xff]
        %v1604 = vld [vmem:[#allocation3 + $0x68] sm:$0xff]
        %v1605 = vld [vmem:[#allocation3 + $0x70] sm:$0xff]
        %v1606 = vld [vmem:[#allocation3 + $0x78] sm:$0xff]
        %v1607 = vsel %vm1574, %v1533, 0.0
        %1608 = vadd.xlane.f32.xlu0 %v1607
        %v1609 = vpop.xlane.xlu0 %1608
        %v1610 = vsel %vm1574, %v1535, 0.0
        %1611 = vadd.xlane.f32.xlu0 %v1610
        %v1612 = vpop.xlane.xlu0 %1611
        %v1613 = vsel %vm1574, %v1538, 0.0
        %1614 = vadd.xlane.f32.xlu0 %v1613
        %v1615 = vpop.xlane.xlu0 %1614
        %v1616 = vsel %vm1574, %v1540, 0.0
        %1617 = vadd.xlane.f32.xlu0 %v1616
        %v1618 = vpop.xlane.xlu0 %1617
        %v1619 = vsel %vm1574, %v1543, 0.0
        %1620 = vadd.xlane.f32.xlu0 %v1619
        %v1621 = vpop.xlane.xlu0 %1620
        %v1622 = vsel %vm1574, %v1545, 0.0
        %1623 = vadd.xlane.f32.xlu0 %v1622
        %v1624 = vpop.xlane.xlu0 %1623
        %v1625 = vsel %vm1574, %v1548, 0.0
        %1626 = vadd.xlane.f32.xlu0 %v1625
        %v1627 = vpop.xlane.xlu0 %1626
        %v1628 = vsel %vm1574, %v1550, 0.0
        %1629 = vadd.xlane.f32.xlu0 %v1628
        %v1630 = vpop.xlane.xlu0 %1629
        %v1631 = vsel %vm1574, %v1553, 0.0
        %1632 = vadd.xlane.f32.xlu0 %v1631
        %v1633 = vpop.xlane.xlu0 %1632
        %v1634 = vsel %vm1574, %v1555, 0.0
        %1635 = vadd.xlane.f32.xlu0 %v1634
        %v1636 = vpop.xlane.xlu0 %1635
        %v1637 = vsel %vm1574, %v1558, 0.0
        %1638 = vadd.xlane.f32.xlu0 %v1637
        %v1639 = vpop.xlane.xlu0 %1638
        %v1640 = vsel %vm1574, %v1560, 0.0
        %1641 = vadd.xlane.f32.xlu0 %v1640
        %v1642 = vpop.xlane.xlu0 %1641
        %v1643 = vsel %vm1574, %v1563, 0.0
        %1644 = vadd.xlane.f32.xlu0 %v1643
        %v1645 = vpop.xlane.xlu0 %1644
        %v1646 = vsel %vm1574, %v1565, 0.0
        %1647 = vadd.xlane.f32.xlu0 %v1646
        %v1648 = vpop.xlane.xlu0 %1647
        %v1649 = vsel %vm1574, %v1568, 0.0
        %1650 = vadd.xlane.f32.xlu0 %v1649
        %v1651 = vpop.xlane.xlu0 %1650
        %v1652 = vsel %vm1574, %v1570, 0.0
        %1653 = vadd.xlane.f32.xlu0 %v1652
        %v1654 = vpop.xlane.xlu0 %1653
        %v1655 = vadd.f32 %v1591, %v1609
        %v1656 = vadd.f32 %v1592, %v1612
        %v1657 = vadd.f32 %v1593, %v1615
        %v1658 = vadd.f32 %v1594, %v1618
        %v1659 = vadd.f32 %v1595, %v1621
        %v1660 = vadd.f32 %v1596, %v1624
        %v1661 = vadd.f32 %v1597, %v1627
        %v1662 = vadd.f32 %v1598, %v1630
        %v1663 = vadd.f32 %v1599, %v1633
        %v1664 = vadd.f32 %v1600, %v1636
        %v1665 = vadd.f32 %v1601, %v1639
        %v1666 = vadd.f32 %v1602, %v1642
        %v1667 = vadd.f32 %v1603, %v1645
        %v1668 = vadd.f32 %v1604, %v1648
        %v1669 = vadd.f32 %v1605, %v1651
        %v1670 = vadd.f32 %v1606, %v1654
        %vm1671 = vcmask 7168
        %1672 = vst.msk [vmem:[#allocation3] sm:$0xff] %vm1671, %v1655
        %1673 = vst.msk [vmem:[#allocation3 + $0x8] sm:$0xff] %vm1671, %v1656
        %1674 = vst.msk [vmem:[#allocation3 + $0x10] sm:$0xff] %vm1671, %v1657
        %1675 = vst.msk [vmem:[#allocation3 + $0x18] sm:$0xff] %vm1671, %v1658
        %1676 = vst.msk [vmem:[#allocation3 + $0x20] sm:$0xff] %vm1671, %v1659
        %1677 = vst.msk [vmem:[#allocation3 + $0x28] sm:$0xff] %vm1671, %v1660
        %1678 = vst.msk [vmem:[#allocation3 + $0x30] sm:$0xff] %vm1671, %v1661
        %1679 = vst.msk [vmem:[#allocation3 + $0x38] sm:$0xff] %vm1671, %v1662
        %1680 = vst.msk [vmem:[#allocation3 + $0x40] sm:$0xff] %vm1671, %v1663
        %1681 = vst.msk [vmem:[#allocation3 + $0x48] sm:$0xff] %vm1671, %v1664
        %1682 = vst.msk [vmem:[#allocation3 + $0x50] sm:$0xff] %vm1671, %v1665
        %1683 = vst.msk [vmem:[#allocation3 + $0x58] sm:$0xff] %vm1671, %v1666
        %1684 = vst.msk [vmem:[#allocation3 + $0x60] sm:$0xff] %vm1671, %v1667
        %1685 = vst.msk [vmem:[#allocation3 + $0x68] sm:$0xff] %vm1671, %v1668
        %1686 = vst.msk [vmem:[#allocation3 + $0x70] sm:$0xff] %vm1671, %v1669
        %1687 = vst.msk [vmem:[#allocation3 + $0x78] sm:$0xff] %vm1671, %v1670
      $region44: #{discriminator_forward.7} parent=39 // pred_fallthru
        _
      %p1688 = scmp.eq.s32.totalorder %s20, 1
      // Predicated region
      $region49: #{discriminator_forward.7} parent=39 // pred_check
        %p1689 = pneg %p1688
      $region50: #{discriminator_forward.7} parent=39 // pred_check_branch
        %1691 = sbr.rel (%p1689) target = $region52
      $region51: #{discriminator_forward.7} parent=39 // pred_region
        %v1692 = vld [vmem:[#allocation3] sm:$0xff]
        %v1693 = vld [vmem:[#allocation3 + $0x8] sm:$0xff]
        %v1694 = vld [vmem:[#allocation3 + $0x10] sm:$0xff]
        %v1695 = vld [vmem:[#allocation3 + $0x18] sm:$0xff]
        %v1696 = vld [vmem:[#allocation3 + $0x20] sm:$0xff]
        %v1697 = vld [vmem:[#allocation3 + $0x28] sm:$0xff]
        %v1698 = vld [vmem:[#allocation3 + $0x30] sm:$0xff]
        %v1699 = vld [vmem:[#allocation3 + $0x38] sm:$0xff]
        %v1700 = vld [vmem:[#allocation3 + $0x40] sm:$0xff]
        %v1701 = vld [vmem:[#allocation3 + $0x48] sm:$0xff]
        %v1702 = vld [vmem:[#allocation3 + $0x50] sm:$0xff]
        %v1703 = vld [vmem:[#allocation3 + $0x58] sm:$0xff]
        %v1704 = vld [vmem:[#allocation3 + $0x60] sm:$0xff]
        %v1705 = vld [vmem:[#allocation3 + $0x68] sm:$0xff]
        %v1706 = vld [vmem:[#allocation3 + $0x70] sm:$0xff]
        %v1707 = vld [vmem:[#allocation3 + $0x78] sm:$0xff]
        %v1708 = vmul.f32 %v1692, 0.03125
        %v1709 = vmul.f32 %v1693, 0.03125
        %v1710 = vmul.f32 %v1694, 0.03125
        %v1711 = vmul.f32 %v1695, 0.03125
        %v1712 = vmul.f32 %v1696, 0.03125
        %v1713 = vmul.f32 %v1697, 0.03125
        %v1714 = vmul.f32 %v1698, 0.03125
        %v1715 = vmul.f32 %v1699, 0.03125
        %v1716 = vmul.f32 %v1700, 0.03125
        %v1717 = vmul.f32 %v1701, 0.03125
        %v1718 = vmul.f32 %v1702, 0.03125
        %v1719 = vmul.f32 %v1703, 0.03125
        %v1720 = vmul.f32 %v1704, 0.03125
        %v1721 = vmul.f32 %v1705, 0.03125
        %v1722 = vmul.f32 %v1706, 0.03125
        %v1723 = vmul.f32 %v1707, 0.03125
        %p1724 = scmp.eq.s32.totalorder %s21, 0
        // Predicated region
        $region53: #{discriminator_forward.7} parent=51 // pred_check
          %p1725 = pneg %p1724
        $region54: #{discriminator_forward.7} parent=51 // pred_check_branch
          %1727 = sbr.rel (%p1725) target = $region56
        $region55: #{discriminator_forward.7} parent=51 // pred_region
          %v1728 = vld [vmem:[#allocation2] sm:$0xff]
          %v1729 = vld [vmem:[#allocation2 + $0x8] sm:$0xff]
          %v1730 = vld [vmem:[#allocation2 + $0x10] sm:$0xff]
          %v1731 = vld [vmem:[#allocation2 + $0x18] sm:$0xff]
          %v1732 = vld [vmem:[#allocation2 + $0x20] sm:$0xff]
          %v1733 = vld [vmem:[#allocation2 + $0x28] sm:$0xff]
          %v1734 = vld [vmem:[#allocation2 + $0x30] sm:$0xff]
          %v1735 = vld [vmem:[#allocation2 + $0x38] sm:$0xff]
          %v1736 = vld [vmem:[#allocation2 + $0x40] sm:$0xff]
          %v1737 = vld [vmem:[#allocation2 + $0x48] sm:$0xff]
          %v1738 = vld [vmem:[#allocation2 + $0x50] sm:$0xff]
          %v1739 = vld [vmem:[#allocation2 + $0x58] sm:$0xff]
          %v1740 = vld [vmem:[#allocation2 + $0x60] sm:$0xff]
          %v1741 = vld [vmem:[#allocation2 + $0x68] sm:$0xff]
          %v1742 = vld [vmem:[#allocation2 + $0x70] sm:$0xff]
          %v1743 = vld [vmem:[#allocation2 + $0x78] sm:$0xff]
          %1745 = vset.pattern.permute.xlu0 0
          %1746 = vperm.xlu0 %1745, %v1708
          %v1747 = vpop.permute.xlu0 %1746
          %1750 = vset.pattern.permute.xlu0 0
          %1751 = vperm.xlu0 %1750, %v1709
          %v1752 = vpop.permute.xlu0 %1751
          %1755 = vset.pattern.permute.xlu0 0
          %1756 = vperm.xlu0 %1755, %v1710
          %v1757 = vpop.permute.xlu0 %1756
          %1760 = vset.pattern.permute.xlu0 0
          %1761 = vperm.xlu0 %1760, %v1711
          %v1762 = vpop.permute.xlu0 %1761
          %1765 = vset.pattern.permute.xlu0 0
          %1766 = vperm.xlu0 %1765, %v1712
          %v1767 = vpop.permute.xlu0 %1766
          %1770 = vset.pattern.permute.xlu0 0
          %1771 = vperm.xlu0 %1770, %v1713
          %v1772 = vpop.permute.xlu0 %1771
          %1775 = vset.pattern.permute.xlu0 0
          %1776 = vperm.xlu0 %1775, %v1714
          %v1777 = vpop.permute.xlu0 %1776
          %1780 = vset.pattern.permute.xlu0 0
          %1781 = vperm.xlu0 %1780, %v1715
          %v1782 = vpop.permute.xlu0 %1781
          %1785 = vset.pattern.permute.xlu0 0
          %1786 = vperm.xlu0 %1785, %v1716
          %v1787 = vpop.permute.xlu0 %1786
          %1790 = vset.pattern.permute.xlu0 0
          %1791 = vperm.xlu0 %1790, %v1717
          %v1792 = vpop.permute.xlu0 %1791
          %1795 = vset.pattern.permute.xlu0 0
          %1796 = vperm.xlu0 %1795, %v1718
          %v1797 = vpop.permute.xlu0 %1796
          %1800 = vset.pattern.permute.xlu0 0
          %1801 = vperm.xlu0 %1800, %v1719
          %v1802 = vpop.permute.xlu0 %1801
          %1805 = vset.pattern.permute.xlu0 0
          %1806 = vperm.xlu0 %1805, %v1720
          %v1807 = vpop.permute.xlu0 %1806
          %1810 = vset.pattern.permute.xlu0 0
          %1811 = vperm.xlu0 %1810, %v1721
          %v1812 = vpop.permute.xlu0 %1811
          %1815 = vset.pattern.permute.xlu0 0
          %1816 = vperm.xlu0 %1815, %v1722
          %v1817 = vpop.permute.xlu0 %1816
          %1820 = vset.pattern.permute.xlu0 0
          %1821 = vperm.xlu0 %1820, %v1723
          %v1822 = vpop.permute.xlu0 %1821
          %v1824 = vsub.f32 %v1728, %v1747
          %v1825 = vsub.f32 %v1729, %v1752
          %v1826 = vsub.f32 %v1730, %v1757
          %v1827 = vsub.f32 %v1731, %v1762
          %v1828 = vsub.f32 %v1732, %v1767
          %v1829 = vsub.f32 %v1733, %v1772
          %v1830 = vsub.f32 %v1734, %v1777
          %v1831 = vsub.f32 %v1735, %v1782
          %v1832 = vsub.f32 %v1736, %v1787
          %v1833 = vsub.f32 %v1737, %v1792
          %v1834 = vsub.f32 %v1738, %v1797
          %v1835 = vsub.f32 %v1739, %v1802
          %v1836 = vsub.f32 %v1740, %v1807
          %v1837 = vsub.f32 %v1741, %v1812
          %v1838 = vsub.f32 %v1742, %v1817
          %v1839 = vsub.f32 %v1743, %v1822
          %v1840 = vmul.f32 %v1824, %v1824
          %v1841 = vmul.f32 %v1825, %v1825
          %v1842 = vmul.f32 %v1826, %v1826
          %v1843 = vmul.f32 %v1827, %v1827
          %v1844 = vmul.f32 %v1828, %v1828
          %v1845 = vmul.f32 %v1829, %v1829
          %v1846 = vmul.f32 %v1830, %v1830
          %v1847 = vmul.f32 %v1831, %v1831
          %v1848 = vmul.f32 %v1832, %v1832
          %v1849 = vmul.f32 %v1833, %v1833
          %v1850 = vmul.f32 %v1834, %v1834
          %v1851 = vmul.f32 %v1835, %v1835
          %v1852 = vmul.f32 %v1836, %v1836
          %v1853 = vmul.f32 %v1837, %v1837
          %v1854 = vmul.f32 %v1838, %v1838
          %v1855 = vmul.f32 %v1839, %v1839
          %vm1856 = vcmask 130048
          %v1857 = vsel %vm1856, %v1840, 0.0
          %1858 = vadd.xlane.f32.xlu0 %v1857
          %v1859 = vpop.xlane.xlu0 %1858
          %v1860 = vsel %vm1856, %v1841, 0.0
          %1861 = vadd.xlane.f32.xlu0 %v1860
          %v1862 = vpop.xlane.xlu0 %1861
          %v1863 = vsel %vm1856, %v1842, 0.0
          %1864 = vadd.xlane.f32.xlu0 %v1863
          %v1865 = vpop.xlane.xlu0 %1864
          %v1866 = vsel %vm1856, %v1843, 0.0
          %1867 = vadd.xlane.f32.xlu0 %v1866
          %v1868 = vpop.xlane.xlu0 %1867
          %v1869 = vsel %vm1856, %v1844, 0.0
          %1870 = vadd.xlane.f32.xlu0 %v1869
          %v1871 = vpop.xlane.xlu0 %1870
          %v1872 = vsel %vm1856, %v1845, 0.0
          %1873 = vadd.xlane.f32.xlu0 %v1872
          %v1874 = vpop.xlane.xlu0 %1873
          %v1875 = vsel %vm1856, %v1846, 0.0
          %1876 = vadd.xlane.f32.xlu0 %v1875
          %v1877 = vpop.xlane.xlu0 %1876
          %v1878 = vsel %vm1856, %v1847, 0.0
          %1879 = vadd.xlane.f32.xlu0 %v1878
          %v1880 = vpop.xlane.xlu0 %1879
          %v1881 = vsel %vm1856, %v1848, 0.0
          %1882 = vadd.xlane.f32.xlu0 %v1881
          %v1883 = vpop.xlane.xlu0 %1882
          %v1884 = vsel %vm1856, %v1849, 0.0
          %1885 = vadd.xlane.f32.xlu0 %v1884
          %v1886 = vpop.xlane.xlu0 %1885
          %v1887 = vsel %vm1856, %v1850, 0.0
          %1888 = vadd.xlane.f32.xlu0 %v1887
          %v1889 = vpop.xlane.xlu0 %1888
          %v1890 = vsel %vm1856, %v1851, 0.0
          %1891 = vadd.xlane.f32.xlu0 %v1890
          %v1892 = vpop.xlane.xlu0 %1891
          %v1893 = vsel %vm1856, %v1852, 0.0
          %1894 = vadd.xlane.f32.xlu0 %v1893
          %v1895 = vpop.xlane.xlu0 %1894
          %v1896 = vsel %vm1856, %v1853, 0.0
          %1897 = vadd.xlane.f32.xlu0 %v1896
          %v1898 = vpop.xlane.xlu0 %1897
          %v1899 = vsel %vm1856, %v1854, 0.0
          %1900 = vadd.xlane.f32.xlu0 %v1899
          %v1901 = vpop.xlane.xlu0 %1900
          %v1902 = vsel %vm1856, %v1855, 0.0
          %1903 = vadd.xlane.f32.xlu0 %v1902
          %v1904 = vpop.xlane.xlu0 %1903
          %v1905 = vadd.f32 %v1859, 0.0
          %v1906 = vadd.f32 %v1862, 0.0
          %v1907 = vadd.f32 %v1865, 0.0
          %v1908 = vadd.f32 %v1868, 0.0
          %v1909 = vadd.f32 %v1871, 0.0
          %v1910 = vadd.f32 %v1874, 0.0
          %v1911 = vadd.f32 %v1877, 0.0
          %v1912 = vadd.f32 %v1880, 0.0
          %v1913 = vadd.f32 %v1883, 0.0
          %v1914 = vadd.f32 %v1886, 0.0
          %v1915 = vadd.f32 %v1889, 0.0
          %v1916 = vadd.f32 %v1892, 0.0
          %v1917 = vadd.f32 %v1895, 0.0
          %v1918 = vadd.f32 %v1898, 0.0
          %v1919 = vadd.f32 %v1901, 0.0
          %v1920 = vadd.f32 %v1904, 0.0
          %s1921 = scalar_lea.vmem [#allocation2], 128
          %v1922 = vld [vmem:[%s1921] sm:$0xff]
          %v1923 = vld [vmem:[%s1921 + $0x8] sm:$0xff]
          %v1924 = vld [vmem:[%s1921 + $0x10] sm:$0xff]
          %v1925 = vld [vmem:[%s1921 + $0x18] sm:$0xff]
          %v1926 = vld [vmem:[%s1921 + $0x20] sm:$0xff]
          %v1927 = vld [vmem:[%s1921 + $0x28] sm:$0xff]
          %v1928 = vld [vmem:[%s1921 + $0x30] sm:$0xff]
          %v1929 = vld [vmem:[%s1921 + $0x38] sm:$0xff]
          %v1930 = vld [vmem:[%s1921 + $0x40] sm:$0xff]
          %v1931 = vld [vmem:[%s1921 + $0x48] sm:$0xff]
          %v1932 = vld [vmem:[%s1921 + $0x50] sm:$0xff]
          %v1933 = vld [vmem:[%s1921 + $0x58] sm:$0xff]
          %v1934 = vld [vmem:[%s1921 + $0x60] sm:$0xff]
          %v1935 = vld [vmem:[%s1921 + $0x68] sm:$0xff]
          %v1936 = vld [vmem:[%s1921 + $0x70] sm:$0xff]
          %v1937 = vld [vmem:[%s1921 + $0x78] sm:$0xff]
          %v1938 = vsub.f32 %v1922, %v1747
          %v1939 = vsub.f32 %v1923, %v1752
          %v1940 = vsub.f32 %v1924, %v1757
          %v1941 = vsub.f32 %v1925, %v1762
          %v1942 = vsub.f32 %v1926, %v1767
          %v1943 = vsub.f32 %v1927, %v1772
          %v1944 = vsub.f32 %v1928, %v1777
          %v1945 = vsub.f32 %v1929, %v1782
          %v1946 = vsub.f32 %v1930, %v1787
          %v1947 = vsub.f32 %v1931, %v1792
          %v1948 = vsub.f32 %v1932, %v1797
          %v1949 = vsub.f32 %v1933, %v1802
          %v1950 = vsub.f32 %v1934, %v1807
          %v1951 = vsub.f32 %v1935, %v1812
          %v1952 = vsub.f32 %v1936, %v1817
          %v1953 = vsub.f32 %v1937, %v1822
          %v1954 = vmul.f32 %v1938, %v1938
          %v1955 = vmul.f32 %v1939, %v1939
          %v1956 = vmul.f32 %v1940, %v1940
          %v1957 = vmul.f32 %v1941, %v1941
          %v1958 = vmul.f32 %v1942, %v1942
          %v1959 = vmul.f32 %v1943, %v1943
          %v1960 = vmul.f32 %v1944, %v1944
          %v1961 = vmul.f32 %v1945, %v1945
          %v1962 = vmul.f32 %v1946, %v1946
          %v1963 = vmul.f32 %v1947, %v1947
          %v1964 = vmul.f32 %v1948, %v1948
          %v1965 = vmul.f32 %v1949, %v1949
          %v1966 = vmul.f32 %v1950, %v1950
          %v1967 = vmul.f32 %v1951, %v1951
          %v1968 = vmul.f32 %v1952, %v1952
          %v1969 = vmul.f32 %v1953, %v1953
          %v1970 = vsel %vm1856, %v1954, 0.0
          %1971 = vadd.xlane.f32.xlu0 %v1970
          %v1972 = vpop.xlane.xlu0 %1971
          %v1973 = vsel %vm1856, %v1955, 0.0
          %1974 = vadd.xlane.f32.xlu0 %v1973
          %v1975 = vpop.xlane.xlu0 %1974
          %v1976 = vsel %vm1856, %v1956, 0.0
          %1977 = vadd.xlane.f32.xlu0 %v1976
          %v1978 = vpop.xlane.xlu0 %1977
          %v1979 = vsel %vm1856, %v1957, 0.0
          %1980 = vadd.xlane.f32.xlu0 %v1979
          %v1981 = vpop.xlane.xlu0 %1980
          %v1982 = vsel %vm1856, %v1958, 0.0
          %1983 = vadd.xlane.f32.xlu0 %v1982
          %v1984 = vpop.xlane.xlu0 %1983
          %v1985 = vsel %vm1856, %v1959, 0.0
          %1986 = vadd.xlane.f32.xlu0 %v1985
          %v1987 = vpop.xlane.xlu0 %1986
          %v1988 = vsel %vm1856, %v1960, 0.0
          %1989 = vadd.xlane.f32.xlu0 %v1988
          %v1990 = vpop.xlane.xlu0 %1989
          %v1991 = vsel %vm1856, %v1961, 0.0
          %1992 = vadd.xlane.f32.xlu0 %v1991
          %v1993 = vpop.xlane.xlu0 %1992
          %v1994 = vsel %vm1856, %v1962, 0.0
          %1995 = vadd.xlane.f32.xlu0 %v1994
          %v1996 = vpop.xlane.xlu0 %1995
          %v1997 = vsel %vm1856, %v1963, 0.0
          %1998 = vadd.xlane.f32.xlu0 %v1997
          %v1999 = vpop.xlane.xlu0 %1998
          %v2000 = vsel %vm1856, %v1964, 0.0
          %2001 = vadd.xlane.f32.xlu0 %v2000
          %v2002 = vpop.xlane.xlu0 %2001
          %v2003 = vsel %vm1856, %v1965, 0.0
          %2004 = vadd.xlane.f32.xlu0 %v2003
          %v2005 = vpop.xlane.xlu0 %2004
          %v2006 = vsel %vm1856, %v1966, 0.0
          %2007 = vadd.xlane.f32.xlu0 %v2006
          %v2008 = vpop.xlane.xlu0 %2007
          %v2009 = vsel %vm1856, %v1967, 0.0
          %2010 = vadd.xlane.f32.xlu0 %v2009
          %v2011 = vpop.xlane.xlu0 %2010
          %v2012 = vsel %vm1856, %v1968, 0.0
          %2013 = vadd.xlane.f32.xlu0 %v2012
          %v2014 = vpop.xlane.xlu0 %2013
          %v2015 = vsel %vm1856, %v1969, 0.0
          %2016 = vadd.xlane.f32.xlu0 %v2015
          %v2017 = vpop.xlane.xlu0 %2016
          %v2018 = vadd.f32 %v1905, %v1972
          %v2019 = vadd.f32 %v1906, %v1975
          %v2020 = vadd.f32 %v1907, %v1978
          %v2021 = vadd.f32 %v1908, %v1981
          %v2022 = vadd.f32 %v1909, %v1984
          %v2023 = vadd.f32 %v1910, %v1987
          %v2024 = vadd.f32 %v1911, %v1990
          %v2025 = vadd.f32 %v1912, %v1993
          %v2026 = vadd.f32 %v1913, %v1996
          %v2027 = vadd.f32 %v1914, %v1999
          %v2028 = vadd.f32 %v1915, %v2002
          %v2029 = vadd.f32 %v1916, %v2005
          %v2030 = vadd.f32 %v1917, %v2008
          %v2031 = vadd.f32 %v1918, %v2011
          %v2032 = vadd.f32 %v1919, %v2014
          %v2033 = vadd.f32 %v1920, %v2017
          %v2034 = vmul.f32 %v2018, 0.03125
          %v2035 = vmul.f32 %v2019, 0.03125
          %v2036 = vmul.f32 %v2020, 0.03125
          %v2037 = vmul.f32 %v2021, 0.03125
          %v2038 = vmul.f32 %v2022, 0.03125
          %v2039 = vmul.f32 %v2023, 0.03125
          %v2040 = vmul.f32 %v2024, 0.03125
          %v2041 = vmul.f32 %v2025, 0.03125
          %v2042 = vmul.f32 %v2026, 0.03125
          %v2043 = vmul.f32 %v2027, 0.03125
          %v2044 = vmul.f32 %v2028, 0.03125
          %v2045 = vmul.f32 %v2029, 0.03125
          %v2046 = vmul.f32 %v2030, 0.03125
          %v2047 = vmul.f32 %v2031, 0.03125
          %v2048 = vmul.f32 %v2032, 0.03125
          %v2049 = vmul.f32 %v2033, 0.03125
          %vm2050 = vcmask 7168
          %2051 = vst.msk [vmem:[#allocation4] sm:$0xff] %vm2050, %v2034
          %2052 = vst.msk [vmem:[#allocation4 + $0x8] sm:$0xff] %vm2050, %v2035
          %2053 = vst.msk [vmem:[#allocation4 + $0x10] sm:$0xff] %vm2050, %v2036
          %2054 = vst.msk [vmem:[#allocation4 + $0x18] sm:$0xff] %vm2050, %v2037
          %2055 = vst.msk [vmem:[#allocation4 + $0x20] sm:$0xff] %vm2050, %v2038
          %2056 = vst.msk [vmem:[#allocation4 + $0x28] sm:$0xff] %vm2050, %v2039
          %2057 = vst.msk [vmem:[#allocation4 + $0x30] sm:$0xff] %vm2050, %v2040
          %2058 = vst.msk [vmem:[#allocation4 + $0x38] sm:$0xff] %vm2050, %v2041
          %2059 = vst.msk [vmem:[#allocation4 + $0x40] sm:$0xff] %vm2050, %v2042
          %2060 = vst.msk [vmem:[#allocation4 + $0x48] sm:$0xff] %vm2050, %v2043
          %2061 = vst.msk [vmem:[#allocation4 + $0x50] sm:$0xff] %vm2050, %v2044
          %2062 = vst.msk [vmem:[#allocation4 + $0x58] sm:$0xff] %vm2050, %v2045
          %2063 = vst.msk [vmem:[#allocation4 + $0x60] sm:$0xff] %vm2050, %v2046
          %2064 = vst.msk [vmem:[#allocation4 + $0x68] sm:$0xff] %vm2050, %v2047
          %2065 = vst.msk [vmem:[#allocation4 + $0x70] sm:$0xff] %vm2050, %v2048
          %2066 = vst.msk [vmem:[#allocation4 + $0x78] sm:$0xff] %vm2050, %v2049
        $region56: #{discriminator_forward.7} parent=51 // pred_fallthru
          _
        %v2067 = vld [vmem:[%s2] sm:$0xff]
        %v2068 = vld [vmem:[%s2 + $0x8] sm:$0xff]
        %v2069 = vld [vmem:[%s2 + $0x10] sm:$0xff]
        %v2070 = vld [vmem:[%s2 + $0x18] sm:$0xff]
        %v2071 = vld [vmem:[%s2 + $0x20] sm:$0xff]
        %v2072 = vld [vmem:[%s2 + $0x28] sm:$0xff]
        %v2073 = vld [vmem:[%s2 + $0x30] sm:$0xff]
        %v2074 = vld [vmem:[%s2 + $0x38] sm:$0xff]
        %v2075 = vld [vmem:[%s2 + $0x40] sm:$0xff]
        %v2076 = vld [vmem:[%s2 + $0x48] sm:$0xff]
        %v2077 = vld [vmem:[%s2 + $0x50] sm:$0xff]
        %v2078 = vld [vmem:[%s2 + $0x58] sm:$0xff]
        %v2079 = vld [vmem:[%s2 + $0x60] sm:$0xff]
        %v2080 = vld [vmem:[%s2 + $0x68] sm:$0xff]
        %v2081 = vld [vmem:[%s2 + $0x70] sm:$0xff]
        %v2082 = vld [vmem:[%s2 + $0x78] sm:$0xff]
        %v2083 = vld [vmem:[#allocation4] sm:$0xff]
        %v2084 = vld [vmem:[#allocation4 + $0x8] sm:$0xff]
        %v2085 = vld [vmem:[#allocation4 + $0x10] sm:$0xff]
        %v2086 = vld [vmem:[#allocation4 + $0x18] sm:$0xff]
        %v2087 = vld [vmem:[#allocation4 + $0x20] sm:$0xff]
        %v2088 = vld [vmem:[#allocation4 + $0x28] sm:$0xff]
        %v2089 = vld [vmem:[#allocation4 + $0x30] sm:$0xff]
        %v2090 = vld [vmem:[#allocation4 + $0x38] sm:$0xff]
        %v2091 = vld [vmem:[#allocation4 + $0x40] sm:$0xff]
        %v2092 = vld [vmem:[#allocation4 + $0x48] sm:$0xff]
        %v2093 = vld [vmem:[#allocation4 + $0x50] sm:$0xff]
        %v2094 = vld [vmem:[#allocation4 + $0x58] sm:$0xff]
        %v2095 = vld [vmem:[#allocation4 + $0x60] sm:$0xff]
        %v2096 = vld [vmem:[#allocation4 + $0x68] sm:$0xff]
        %v2097 = vld [vmem:[#allocation4 + $0x70] sm:$0xff]
        %v2098 = vld [vmem:[#allocation4 + $0x78] sm:$0xff]
        %v2099 = vadd.f32 %v2083, 1e-05
        %v2100 = vadd.f32 %v2084, 1e-05
        %v2101 = vadd.f32 %v2085, 1e-05
        %v2102 = vadd.f32 %v2086, 1e-05
        %v2103 = vadd.f32 %v2087, 1e-05
        %v2104 = vadd.f32 %v2088, 1e-05
        %v2105 = vadd.f32 %v2089, 1e-05
        %v2106 = vadd.f32 %v2090, 1e-05
        %v2107 = vadd.f32 %v2091, 1e-05
        %v2108 = vadd.f32 %v2092, 1e-05
        %v2109 = vadd.f32 %v2093, 1e-05
        %v2110 = vadd.f32 %v2094, 1e-05
        %v2111 = vadd.f32 %v2095, 1e-05
        %v2112 = vadd.f32 %v2096, 1e-05
        %v2113 = vadd.f32 %v2097, 1e-05
        %v2114 = vadd.f32 %v2098, 1e-05
        %v2115 = vrsqrt.pop %v2099
        %v2116 = vmul.f32 %v2115, %v2099
        %v2117 = vmul.f32 %v2116, %v2115
        %v2118 = vmul.f32 0.5, %v2117
        %v2119 = vsub.f32 1.5, %v2118
        %v2120 = vmul.f32 %v2115, %v2119
        %vm2121 = vweird.f32 %v2099
        %vm2122 = vweird.f32 %v2115
        %vm2123 = vmor %vm2121, %vm2122
        %v2124 = vsel %vm2123, %v2115, %v2120
        %v2125 = vrsqrt.pop %v2100
        %v2126 = vmul.f32 %v2125, %v2100
        %v2127 = vmul.f32 %v2126, %v2125
        %v2128 = vmul.f32 0.5, %v2127
        %v2129 = vsub.f32 1.5, %v2128
        %v2130 = vmul.f32 %v2125, %v2129
        %vm2131 = vweird.f32 %v2100
        %vm2132 = vweird.f32 %v2125
        %vm2133 = vmor %vm2131, %vm2132
        %v2134 = vsel %vm2133, %v2125, %v2130
        %v2135 = vrsqrt.pop %v2101
        %v2136 = vmul.f32 %v2135, %v2101
        %v2137 = vmul.f32 %v2136, %v2135
        %v2138 = vmul.f32 0.5, %v2137
        %v2139 = vsub.f32 1.5, %v2138
        %v2140 = vmul.f32 %v2135, %v2139
        %vm2141 = vweird.f32 %v2101
        %vm2142 = vweird.f32 %v2135
        %vm2143 = vmor %vm2141, %vm2142
        %v2144 = vsel %vm2143, %v2135, %v2140
        %v2145 = vrsqrt.pop %v2102
        %v2146 = vmul.f32 %v2145, %v2102
        %v2147 = vmul.f32 %v2146, %v2145
        %v2148 = vmul.f32 0.5, %v2147
        %v2149 = vsub.f32 1.5, %v2148
        %v2150 = vmul.f32 %v2145, %v2149
        %vm2151 = vweird.f32 %v2102
        %vm2152 = vweird.f32 %v2145
        %vm2153 = vmor %vm2151, %vm2152
        %v2154 = vsel %vm2153, %v2145, %v2150
        %v2155 = vrsqrt.pop %v2103
        %v2156 = vmul.f32 %v2155, %v2103
        %v2157 = vmul.f32 %v2156, %v2155
        %v2158 = vmul.f32 0.5, %v2157
        %v2159 = vsub.f32 1.5, %v2158
        %v2160 = vmul.f32 %v2155, %v2159
        %vm2161 = vweird.f32 %v2103
        %vm2162 = vweird.f32 %v2155
        %vm2163 = vmor %vm2161, %vm2162
        %v2164 = vsel %vm2163, %v2155, %v2160
        %v2165 = vrsqrt.pop %v2104
        %v2166 = vmul.f32 %v2165, %v2104
        %v2167 = vmul.f32 %v2166, %v2165
        %v2168 = vmul.f32 0.5, %v2167
        %v2169 = vsub.f32 1.5, %v2168
        %v2170 = vmul.f32 %v2165, %v2169
        %vm2171 = vweird.f32 %v2104
        %vm2172 = vweird.f32 %v2165
        %vm2173 = vmor %vm2171, %vm2172
        %v2174 = vsel %vm2173, %v2165, %v2170
        %v2175 = vrsqrt.pop %v2105
        %v2176 = vmul.f32 %v2175, %v2105
        %v2177 = vmul.f32 %v2176, %v2175
        %v2178 = vmul.f32 0.5, %v2177
        %v2179 = vsub.f32 1.5, %v2178
        %v2180 = vmul.f32 %v2175, %v2179
        %vm2181 = vweird.f32 %v2105
        %vm2182 = vweird.f32 %v2175
        %vm2183 = vmor %vm2181, %vm2182
        %v2184 = vsel %vm2183, %v2175, %v2180
        %v2185 = vrsqrt.pop %v2106
        %v2186 = vmul.f32 %v2185, %v2106
        %v2187 = vmul.f32 %v2186, %v2185
        %v2188 = vmul.f32 0.5, %v2187
        %v2189 = vsub.f32 1.5, %v2188
        %v2190 = vmul.f32 %v2185, %v2189
        %vm2191 = vweird.f32 %v2106
        %vm2192 = vweird.f32 %v2185
        %vm2193 = vmor %vm2191, %vm2192
        %v2194 = vsel %vm2193, %v2185, %v2190
        %v2195 = vrsqrt.pop %v2107
        %v2196 = vmul.f32 %v2195, %v2107
        %v2197 = vmul.f32 %v2196, %v2195
        %v2198 = vmul.f32 0.5, %v2197
        %v2199 = vsub.f32 1.5, %v2198
        %v2200 = vmul.f32 %v2195, %v2199
        %vm2201 = vweird.f32 %v2107
        %vm2202 = vweird.f32 %v2195
        %vm2203 = vmor %vm2201, %vm2202
        %v2204 = vsel %vm2203, %v2195, %v2200
        %v2205 = vrsqrt.pop %v2108
        %v2206 = vmul.f32 %v2205, %v2108
        %v2207 = vmul.f32 %v2206, %v2205
        %v2208 = vmul.f32 0.5, %v2207
        %v2209 = vsub.f32 1.5, %v2208
        %v2210 = vmul.f32 %v2205, %v2209
        %vm2211 = vweird.f32 %v2108
        %vm2212 = vweird.f32 %v2205
        %vm2213 = vmor %vm2211, %vm2212
        %v2214 = vsel %vm2213, %v2205, %v2210
        %v2215 = vrsqrt.pop %v2109
        %v2216 = vmul.f32 %v2215, %v2109
        %v2217 = vmul.f32 %v2216, %v2215
        %v2218 = vmul.f32 0.5, %v2217
        %v2219 = vsub.f32 1.5, %v2218
        %v2220 = vmul.f32 %v2215, %v2219
        %vm2221 = vweird.f32 %v2109
        %vm2222 = vweird.f32 %v2215
        %vm2223 = vmor %vm2221, %vm2222
        %v2224 = vsel %vm2223, %v2215, %v2220
        %v2225 = vrsqrt.pop %v2110
        %v2226 = vmul.f32 %v2225, %v2110
        %v2227 = vmul.f32 %v2226, %v2225
        %v2228 = vmul.f32 0.5, %v2227
        %v2229 = vsub.f32 1.5, %v2228
        %v2230 = vmul.f32 %v2225, %v2229
        %vm2231 = vweird.f32 %v2110
        %vm2232 = vweird.f32 %v2225
        %vm2233 = vmor %vm2231, %vm2232
        %v2234 = vsel %vm2233, %v2225, %v2230
        %v2235 = vrsqrt.pop %v2111
        %v2236 = vmul.f32 %v2235, %v2111
        %v2237 = vmul.f32 %v2236, %v2235
        %v2238 = vmul.f32 0.5, %v2237
        %v2239 = vsub.f32 1.5, %v2238
        %v2240 = vmul.f32 %v2235, %v2239
        %vm2241 = vweird.f32 %v2111
        %vm2242 = vweird.f32 %v2235
        %vm2243 = vmor %vm2241, %vm2242
        %v2244 = vsel %vm2243, %v2235, %v2240
        %v2245 = vrsqrt.pop %v2112
        %v2246 = vmul.f32 %v2245, %v2112
        %v2247 = vmul.f32 %v2246, %v2245
        %v2248 = vmul.f32 0.5, %v2247
        %v2249 = vsub.f32 1.5, %v2248
        %v2250 = vmul.f32 %v2245, %v2249
        %vm2251 = vweird.f32 %v2112
        %vm2252 = vweird.f32 %v2245
        %vm2253 = vmor %vm2251, %vm2252
        %v2254 = vsel %vm2253, %v2245, %v2250
        %v2255 = vrsqrt.pop %v2113
        %v2256 = vmul.f32 %v2255, %v2113
        %v2257 = vmul.f32 %v2256, %v2255
        %v2258 = vmul.f32 0.5, %v2257
        %v2259 = vsub.f32 1.5, %v2258
        %v2260 = vmul.f32 %v2255, %v2259
        %vm2261 = vweird.f32 %v2113
        %vm2262 = vweird.f32 %v2255
        %vm2263 = vmor %vm2261, %vm2262
        %v2264 = vsel %vm2263, %v2255, %v2260
        %v2265 = vrsqrt.pop %v2114
        %v2266 = vmul.f32 %v2265, %v2114
        %v2267 = vmul.f32 %v2266, %v2265
        %v2268 = vmul.f32 0.5, %v2267
        %v2269 = vsub.f32 1.5, %v2268
        %v2270 = vmul.f32 %v2265, %v2269
        %vm2271 = vweird.f32 %v2114
        %vm2272 = vweird.f32 %v2265
        %vm2273 = vmor %vm2271, %vm2272
        %v2274 = vsel %vm2273, %v2265, %v2270
        %v2275 = vmul.f32 %v2067, %v2124
        %v2276 = vmul.f32 %v2068, %v2134
        %v2277 = vmul.f32 %v2069, %v2144
        %v2278 = vmul.f32 %v2070, %v2154
        %v2279 = vmul.f32 %v2071, %v2164
        %v2280 = vmul.f32 %v2072, %v2174
        %v2281 = vmul.f32 %v2073, %v2184
        %v2282 = vmul.f32 %v2074, %v2194
        %v2283 = vmul.f32 %v2075, %v2204
        %v2284 = vmul.f32 %v2076, %v2214
        %v2285 = vmul.f32 %v2077, %v2224
        %v2286 = vmul.f32 %v2078, %v2234
        %v2287 = vmul.f32 %v2079, %v2244
        %v2288 = vmul.f32 %v2080, %v2254
        %v2289 = vmul.f32 %v2081, %v2264
        %v2290 = vmul.f32 %v2082, %v2274
        %v2291 = vld [vmem:[%s3] sm:$0xff]
        %v2292 = vld [vmem:[%s3 + $0x8] sm:$0xff]
        %v2293 = vld [vmem:[%s3 + $0x10] sm:$0xff]
        %v2294 = vld [vmem:[%s3 + $0x18] sm:$0xff]
        %v2295 = vld [vmem:[%s3 + $0x20] sm:$0xff]
        %v2296 = vld [vmem:[%s3 + $0x28] sm:$0xff]
        %v2297 = vld [vmem:[%s3 + $0x30] sm:$0xff]
        %v2298 = vld [vmem:[%s3 + $0x38] sm:$0xff]
        %v2299 = vld [vmem:[%s3 + $0x40] sm:$0xff]
        %v2300 = vld [vmem:[%s3 + $0x48] sm:$0xff]
        %v2301 = vld [vmem:[%s3 + $0x50] sm:$0xff]
        %v2302 = vld [vmem:[%s3 + $0x58] sm:$0xff]
        %v2303 = vld [vmem:[%s3 + $0x60] sm:$0xff]
        %v2304 = vld [vmem:[%s3 + $0x68] sm:$0xff]
        %v2305 = vld [vmem:[%s3 + $0x70] sm:$0xff]
        %v2306 = vld [vmem:[%s3 + $0x78] sm:$0xff]
        %v2307 = vmul.f32 %v1708, %v2275
        %v2308 = vmul.f32 %v1709, %v2276
        %v2309 = vmul.f32 %v1710, %v2277
        %v2310 = vmul.f32 %v1711, %v2278
        %v2311 = vmul.f32 %v1712, %v2279
        %v2312 = vmul.f32 %v1713, %v2280
        %v2313 = vmul.f32 %v1714, %v2281
        %v2314 = vmul.f32 %v1715, %v2282
        %v2315 = vmul.f32 %v1716, %v2283
        %v2316 = vmul.f32 %v1717, %v2284
        %v2317 = vmul.f32 %v1718, %v2285
        %v2318 = vmul.f32 %v1719, %v2286
        %v2319 = vmul.f32 %v1720, %v2287
        %v2320 = vmul.f32 %v1721, %v2288
        %v2321 = vmul.f32 %v1722, %v2289
        %v2322 = vmul.f32 %v1723, %v2290
        %v2323 = vsub.f32 %v2291, %v2307
        %v2324 = vsub.f32 %v2292, %v2308
        %v2325 = vsub.f32 %v2293, %v2309
        %v2326 = vsub.f32 %v2294, %v2310
        %v2327 = vsub.f32 %v2295, %v2311
        %v2328 = vsub.f32 %v2296, %v2312
        %v2329 = vsub.f32 %v2297, %v2313
        %v2330 = vsub.f32 %v2298, %v2314
        %v2331 = vsub.f32 %v2299, %v2315
        %v2332 = vsub.f32 %v2300, %v2316
        %v2333 = vsub.f32 %v2301, %v2317
        %v2334 = vsub.f32 %v2302, %v2318
        %v2335 = vsub.f32 %v2303, %v2319
        %v2336 = vsub.f32 %v2304, %v2320
        %v2337 = vsub.f32 %v2305, %v2321
        %v2338 = vsub.f32 %v2306, %v2322
        %s2339 = smul.u32 %s21, 128
        %s2340 = scalar_lea.vmem [#allocation2], %s2339
        %v2341 = vld [vmem:[%s2340] sm:$0xff]
        %v2342 = vld [vmem:[%s2340 + $0x8] sm:$0xff]
        %v2343 = vld [vmem:[%s2340 + $0x10] sm:$0xff]
        %v2344 = vld [vmem:[%s2340 + $0x18] sm:$0xff]
        %v2345 = vld [vmem:[%s2340 + $0x20] sm:$0xff]
        %v2346 = vld [vmem:[%s2340 + $0x28] sm:$0xff]
        %v2347 = vld [vmem:[%s2340 + $0x30] sm:$0xff]
        %v2348 = vld [vmem:[%s2340 + $0x38] sm:$0xff]
        %v2349 = vld [vmem:[%s2340 + $0x40] sm:$0xff]
        %v2350 = vld [vmem:[%s2340 + $0x48] sm:$0xff]
        %v2351 = vld [vmem:[%s2340 + $0x50] sm:$0xff]
        %v2352 = vld [vmem:[%s2340 + $0x58] sm:$0xff]
        %v2353 = vld [vmem:[%s2340 + $0x60] sm:$0xff]
        %v2354 = vld [vmem:[%s2340 + $0x68] sm:$0xff]
        %v2355 = vld [vmem:[%s2340 + $0x70] sm:$0xff]
        %v2356 = vld [vmem:[%s2340 + $0x78] sm:$0xff]
        %2358 = vset.pattern.permute.xlu0 0
        %2359 = vperm.xlu0 %2358, %v2275
        %v2360 = vpop.permute.xlu0 %2359
        %2363 = vset.pattern.permute.xlu0 0
        %2364 = vperm.xlu0 %2363, %v2276
        %v2365 = vpop.permute.xlu0 %2364
        %2368 = vset.pattern.permute.xlu0 0
        %2369 = vperm.xlu0 %2368, %v2277
        %v2370 = vpop.permute.xlu0 %2369
        %2373 = vset.pattern.permute.xlu0 0
        %2374 = vperm.xlu0 %2373, %v2278
        %v2375 = vpop.permute.xlu0 %2374
        %2378 = vset.pattern.permute.xlu0 0
        %2379 = vperm.xlu0 %2378, %v2279
        %v2380 = vpop.permute.xlu0 %2379
        %2383 = vset.pattern.permute.xlu0 0
        %2384 = vperm.xlu0 %2383, %v2280
        %v2385 = vpop.permute.xlu0 %2384
        %2388 = vset.pattern.permute.xlu0 0
        %2389 = vperm.xlu0 %2388, %v2281
        %v2390 = vpop.permute.xlu0 %2389
        %2393 = vset.pattern.permute.xlu0 0
        %2394 = vperm.xlu0 %2393, %v2282
        %v2395 = vpop.permute.xlu0 %2394
        %2398 = vset.pattern.permute.xlu0 0
        %2399 = vperm.xlu0 %2398, %v2283
        %v2400 = vpop.permute.xlu0 %2399
        %2403 = vset.pattern.permute.xlu0 0
        %2404 = vperm.xlu0 %2403, %v2284
        %v2405 = vpop.permute.xlu0 %2404
        %2408 = vset.pattern.permute.xlu0 0
        %2409 = vperm.xlu0 %2408, %v2285
        %v2410 = vpop.permute.xlu0 %2409
        %2413 = vset.pattern.permute.xlu0 0
        %2414 = vperm.xlu0 %2413, %v2286
        %v2415 = vpop.permute.xlu0 %2414
        %2418 = vset.pattern.permute.xlu0 0
        %2419 = vperm.xlu0 %2418, %v2287
        %v2420 = vpop.permute.xlu0 %2419
        %2423 = vset.pattern.permute.xlu0 0
        %2424 = vperm.xlu0 %2423, %v2288
        %v2425 = vpop.permute.xlu0 %2424
        %2428 = vset.pattern.permute.xlu0 0
        %2429 = vperm.xlu0 %2428, %v2289
        %v2430 = vpop.permute.xlu0 %2429
        %2433 = vset.pattern.permute.xlu0 0
        %2434 = vperm.xlu0 %2433, %v2290
        %v2435 = vpop.permute.xlu0 %2434
        %v2437 = vmul.f32 %v2341, %v2360
        %v2438 = vmul.f32 %v2342, %v2365
        %v2439 = vmul.f32 %v2343, %v2370
        %v2440 = vmul.f32 %v2344, %v2375
        %v2441 = vmul.f32 %v2345, %v2380
        %v2442 = vmul.f32 %v2346, %v2385
        %v2443 = vmul.f32 %v2347, %v2390
        %v2444 = vmul.f32 %v2348, %v2395
        %v2445 = vmul.f32 %v2349, %v2400
        %v2446 = vmul.f32 %v2350, %v2405
        %v2447 = vmul.f32 %v2351, %v2410
        %v2448 = vmul.f32 %v2352, %v2415
        %v2449 = vmul.f32 %v2353, %v2420
        %v2450 = vmul.f32 %v2354, %v2425
        %v2451 = vmul.f32 %v2355, %v2430
        %v2452 = vmul.f32 %v2356, %v2435
        %2454 = vset.pattern.permute.xlu0 0
        %2455 = vperm.xlu0 %2454, %v2323
        %v2456 = vpop.permute.xlu0 %2455
        %2459 = vset.pattern.permute.xlu0 0
        %2460 = vperm.xlu0 %2459, %v2324
        %v2461 = vpop.permute.xlu0 %2460
        %2464 = vset.pattern.permute.xlu0 0
        %2465 = vperm.xlu0 %2464, %v2325
        %v2466 = vpop.permute.xlu0 %2465
        %2469 = vset.pattern.permute.xlu0 0
        %2470 = vperm.xlu0 %2469, %v2326
        %v2471 = vpop.permute.xlu0 %2470
        %2474 = vset.pattern.permute.xlu0 0
        %2475 = vperm.xlu0 %2474, %v2327
        %v2476 = vpop.permute.xlu0 %2475
        %2479 = vset.pattern.permute.xlu0 0
        %2480 = vperm.xlu0 %2479, %v2328
        %v2481 = vpop.permute.xlu0 %2480
        %2484 = vset.pattern.permute.xlu0 0
        %2485 = vperm.xlu0 %2484, %v2329
        %v2486 = vpop.permute.xlu0 %2485
        %2489 = vset.pattern.permute.xlu0 0
        %2490 = vperm.xlu0 %2489, %v2330
        %v2491 = vpop.permute.xlu0 %2490
        %2494 = vset.pattern.permute.xlu0 0
        %2495 = vperm.xlu0 %2494, %v2331
        %v2496 = vpop.permute.xlu0 %2495
        %2499 = vset.pattern.permute.xlu0 0
        %2500 = vperm.xlu0 %2499, %v2332
        %v2501 = vpop.permute.xlu0 %2500
        %2504 = vset.pattern.permute.xlu0 0
        %2505 = vperm.xlu0 %2504, %v2333
        %v2506 = vpop.permute.xlu0 %2505
        %2509 = vset.pattern.permute.xlu0 0
        %2510 = vperm.xlu0 %2509, %v2334
        %v2511 = vpop.permute.xlu0 %2510
        %2514 = vset.pattern.permute.xlu0 0
        %2515 = vperm.xlu0 %2514, %v2335
        %v2516 = vpop.permute.xlu0 %2515
        %2519 = vset.pattern.permute.xlu0 0
        %2520 = vperm.xlu0 %2519, %v2336
        %v2521 = vpop.permute.xlu0 %2520
        %2524 = vset.pattern.permute.xlu0 0
        %2525 = vperm.xlu0 %2524, %v2337
        %v2526 = vpop.permute.xlu0 %2525
        %2529 = vset.pattern.permute.xlu0 0
        %2530 = vperm.xlu0 %2529, %v2338
        %v2531 = vpop.permute.xlu0 %2530
        %v2533 = vadd.f32 %v2437, %v2456
        %v2534 = vadd.f32 %v2438, %v2461
        %v2535 = vadd.f32 %v2439, %v2466
        %v2536 = vadd.f32 %v2440, %v2471
        %v2537 = vadd.f32 %v2441, %v2476
        %v2538 = vadd.f32 %v2442, %v2481
        %v2539 = vadd.f32 %v2443, %v2486
        %v2540 = vadd.f32 %v2444, %v2491
        %v2541 = vadd.f32 %v2445, %v2496
        %v2542 = vadd.f32 %v2446, %v2501
        %v2543 = vadd.f32 %v2447, %v2506
        %v2544 = vadd.f32 %v2448, %v2511
        %v2545 = vadd.f32 %v2449, %v2516
        %v2546 = vadd.f32 %v2450, %v2521
        %v2547 = vadd.f32 %v2451, %v2526
        %v2548 = vadd.f32 %v2452, %v2531
        %vm2549 = vcmp.ge.f32.partialorder %v2533, 0.0
        %vm2550 = vcmp.ge.f32.partialorder %v2534, 0.0
        %vm2551 = vcmp.ge.f32.partialorder %v2535, 0.0
        %vm2552 = vcmp.ge.f32.partialorder %v2536, 0.0
        %vm2553 = vcmp.ge.f32.partialorder %v2537, 0.0
        %vm2554 = vcmp.ge.f32.partialorder %v2538, 0.0
        %vm2555 = vcmp.ge.f32.partialorder %v2539, 0.0
        %vm2556 = vcmp.ge.f32.partialorder %v2540, 0.0
        %vm2557 = vcmp.ge.f32.partialorder %v2541, 0.0
        %vm2558 = vcmp.ge.f32.partialorder %v2542, 0.0
        %vm2559 = vcmp.ge.f32.partialorder %v2543, 0.0
        %vm2560 = vcmp.ge.f32.partialorder %v2544, 0.0
        %vm2561 = vcmp.ge.f32.partialorder %v2545, 0.0
        %vm2562 = vcmp.ge.f32.partialorder %v2546, 0.0
        %vm2563 = vcmp.ge.f32.partialorder %v2547, 0.0
        %vm2564 = vcmp.ge.f32.partialorder %v2548, 0.0
        %v2565 = vmul.f32 %v2533, 0.2
        %v2566 = vmul.f32 %v2534, 0.2
        %v2567 = vmul.f32 %v2535, 0.2
        %v2568 = vmul.f32 %v2536, 0.2
        %v2569 = vmul.f32 %v2537, 0.2
        %v2570 = vmul.f32 %v2538, 0.2
        %v2571 = vmul.f32 %v2539, 0.2
        %v2572 = vmul.f32 %v2540, 0.2
        %v2573 = vmul.f32 %v2541, 0.2
        %v2574 = vmul.f32 %v2542, 0.2
        %v2575 = vmul.f32 %v2543, 0.2
        %v2576 = vmul.f32 %v2544, 0.2
        %v2577 = vmul.f32 %v2545, 0.2
        %v2578 = vmul.f32 %v2546, 0.2
        %v2579 = vmul.f32 %v2547, 0.2
        %v2580 = vmul.f32 %v2548, 0.2
        %v2581 = vsel %vm2549, %v2533, %v2565
        %v2582 = vsel %vm2550, %v2534, %v2566
        %v2583 = vsel %vm2551, %v2535, %v2567
        %v2584 = vsel %vm2552, %v2536, %v2568
        %v2585 = vsel %vm2553, %v2537, %v2569
        %v2586 = vsel %vm2554, %v2538, %v2570
        %v2587 = vsel %vm2555, %v2539, %v2571
        %v2588 = vsel %vm2556, %v2540, %v2572
        %v2589 = vsel %vm2557, %v2541, %v2573
        %v2590 = vsel %vm2558, %v2542, %v2574
        %v2591 = vsel %vm2559, %v2543, %v2575
        %v2592 = vsel %vm2560, %v2544, %v2576
        %v2593 = vsel %vm2561, %v2545, %v2577
        %v2594 = vsel %vm2562, %v2546, %v2578
        %v2595 = vsel %vm2563, %v2547, %v2579
        %v2596 = vsel %vm2564, %v2548, %v2580
        %v2597 = vld [vmem:[%s4] sm:$0xff]
        %v2598 = vld [vmem:[%s4 + $0x8] sm:$0xff]
        %v2599 = vld [vmem:[%s4 + $0x10] sm:$0xff]
        %v2600 = vld [vmem:[%s4 + $0x18] sm:$0xff]
        %v2601 = vld [vmem:[%s4 + $0x20] sm:$0xff]
        %v2602 = vld [vmem:[%s4 + $0x28] sm:$0xff]
        %v2603 = vld [vmem:[%s4 + $0x30] sm:$0xff]
        %v2604 = vld [vmem:[%s4 + $0x38] sm:$0xff]
        %v2605 = vld [vmem:[%s4 + $0x40] sm:$0xff]
        %v2606 = vld [vmem:[%s4 + $0x48] sm:$0xff]
        %v2607 = vld [vmem:[%s4 + $0x50] sm:$0xff]
        %v2608 = vld [vmem:[%s4 + $0x58] sm:$0xff]
        %v2609 = vld [vmem:[%s4 + $0x60] sm:$0xff]
        %v2610 = vld [vmem:[%s4 + $0x68] sm:$0xff]
        %v2611 = vld [vmem:[%s4 + $0x70] sm:$0xff]
        %v2612 = vld [vmem:[%s4 + $0x78] sm:$0xff]
        %v2613 = vmul.f32 %v2597, %v2581
        %v2614 = vmul.f32 %v2598, %v2582
        %v2615 = vmul.f32 %v2599, %v2583
        %v2616 = vmul.f32 %v2600, %v2584
        %v2617 = vmul.f32 %v2601, %v2585
        %v2618 = vmul.f32 %v2602, %v2586
        %v2619 = vmul.f32 %v2603, %v2587
        %v2620 = vmul.f32 %v2604, %v2588
        %v2621 = vmul.f32 %v2605, %v2589
        %v2622 = vmul.f32 %v2606, %v2590
        %v2623 = vmul.f32 %v2607, %v2591
        %v2624 = vmul.f32 %v2608, %v2592
        %v2625 = vmul.f32 %v2609, %v2593
        %v2626 = vmul.f32 %v2610, %v2594
        %v2627 = vmul.f32 %v2611, %v2595
        %v2628 = vmul.f32 %v2612, %v2596
        %vm2629 = vcmask 130048
        %v2630 = vsel %vm2629, %v2613, 0.0
        %v2631 = vsel %vm2629, %v2614, 0.0
        %v2632 = vadd.f32 %v2630, %v2631
        %v2633 = vsel %vm2629, %v2615, 0.0
        %v2634 = vadd.f32 %v2632, %v2633
        %v2635 = vsel %vm2629, %v2616, 0.0
        %v2636 = vadd.f32 %v2634, %v2635
        %v2637 = vsel %vm2629, %v2617, 0.0
        %v2638 = vadd.f32 %v2636, %v2637
        %v2639 = vsel %vm2629, %v2618, 0.0
        %v2640 = vadd.f32 %v2638, %v2639
        %v2641 = vsel %vm2629, %v2619, 0.0
        %v2642 = vadd.f32 %v2640, %v2641
        %v2643 = vsel %vm2629, %v2620, 0.0
        %v2644 = vadd.f32 %v2642, %v2643
        %v2645 = vsel %vm2629, %v2621, 0.0
        %v2646 = vadd.f32 %v2644, %v2645
        %v2647 = vsel %vm2629, %v2622, 0.0
        %v2648 = vadd.f32 %v2646, %v2647
        %v2649 = vsel %vm2629, %v2623, 0.0
        %v2650 = vadd.f32 %v2648, %v2649
        %v2651 = vsel %vm2629, %v2624, 0.0
        %v2652 = vadd.f32 %v2650, %v2651
        %v2653 = vsel %vm2629, %v2625, 0.0
        %v2654 = vadd.f32 %v2652, %v2653
        %v2655 = vsel %vm2629, %v2626, 0.0
        %v2656 = vadd.f32 %v2654, %v2655
        %v2657 = vsel %vm2629, %v2627, 0.0
        %v2658 = vadd.f32 %v2656, %v2657
        %v2659 = vsel %vm2629, %v2628, 0.0
        %v2660 = vadd.f32 %v2658, %v2659
        %v2661 = vrot.slane %v2660, 4
        %v2662 = vadd.f32 %v2660, %v2661
        %v2663 = vrot.slane %v2662, 2
        %v2664 = vadd.f32 %v2662, %v2663
        %v2665 = vrot.slane %v2664, 1
        %v2666 = vadd.f32 %v2664, %v2665
        %v2667 = vsel %vm2629, %v2666, 0.0
        %2668 = vadd.xlane.f32.xlu0 %v2667
        %v2669 = vpop.xlane.xlu0 %2668
        %s2670 = scalar_lea.vmem %s4, 128
        %v2671 = vld [vmem:[%s2670] sm:$0xff]
        %v2672 = vld [vmem:[%s2670 + $0x8] sm:$0xff]
        %v2673 = vld [vmem:[%s2670 + $0x10] sm:$0xff]
        %v2674 = vld [vmem:[%s2670 + $0x18] sm:$0xff]
        %v2675 = vld [vmem:[%s2670 + $0x20] sm:$0xff]
        %v2676 = vld [vmem:[%s2670 + $0x28] sm:$0xff]
        %v2677 = vld [vmem:[%s2670 + $0x30] sm:$0xff]
        %v2678 = vld [vmem:[%s2670 + $0x38] sm:$0xff]
        %v2679 = vld [vmem:[%s2670 + $0x40] sm:$0xff]
        %v2680 = vld [vmem:[%s2670 + $0x48] sm:$0xff]
        %v2681 = vld [vmem:[%s2670 + $0x50] sm:$0xff]
        %v2682 = vld [vmem:[%s2670 + $0x58] sm:$0xff]
        %v2683 = vld [vmem:[%s2670 + $0x60] sm:$0xff]
        %v2684 = vld [vmem:[%s2670 + $0x68] sm:$0xff]
        %v2685 = vld [vmem:[%s2670 + $0x70] sm:$0xff]
        %v2686 = vld [vmem:[%s2670 + $0x78] sm:$0xff]
        %v2687 = vmul.f32 %v2671, %v2581
        %v2688 = vmul.f32 %v2672, %v2582
        %v2689 = vmul.f32 %v2673, %v2583
        %v2690 = vmul.f32 %v2674, %v2584
        %v2691 = vmul.f32 %v2675, %v2585
        %v2692 = vmul.f32 %v2676, %v2586
        %v2693 = vmul.f32 %v2677, %v2587
        %v2694 = vmul.f32 %v2678, %v2588
        %v2695 = vmul.f32 %v2679, %v2589
        %v2696 = vmul.f32 %v2680, %v2590
        %v2697 = vmul.f32 %v2681, %v2591
        %v2698 = vmul.f32 %v2682, %v2592
        %v2699 = vmul.f32 %v2683, %v2593
        %v2700 = vmul.f32 %v2684, %v2594
        %v2701 = vmul.f32 %v2685, %v2595
        %v2702 = vmul.f32 %v2686, %v2596
        %v2703 = vsel %vm2629, %v2687, 0.0
        %v2704 = vsel %vm2629, %v2688, 0.0
        %v2705 = vadd.f32 %v2703, %v2704
        %v2706 = vsel %vm2629, %v2689, 0.0
        %v2707 = vadd.f32 %v2705, %v2706
        %v2708 = vsel %vm2629, %v2690, 0.0
        %v2709 = vadd.f32 %v2707, %v2708
        %v2710 = vsel %vm2629, %v2691, 0.0
        %v2711 = vadd.f32 %v2709, %v2710
        %v2712 = vsel %vm2629, %v2692, 0.0
        %v2713 = vadd.f32 %v2711, %v2712
        %v2714 = vsel %vm2629, %v2693, 0.0
        %v2715 = vadd.f32 %v2713, %v2714
        %v2716 = vsel %vm2629, %v2694, 0.0
        %v2717 = vadd.f32 %v2715, %v2716
        %v2718 = vsel %vm2629, %v2695, 0.0
        %v2719 = vadd.f32 %v2717, %v2718
        %v2720 = vsel %vm2629, %v2696, 0.0
        %v2721 = vadd.f32 %v2719, %v2720
        %v2722 = vsel %vm2629, %v2697, 0.0
        %v2723 = vadd.f32 %v2721, %v2722
        %v2724 = vsel %vm2629, %v2698, 0.0
        %v2725 = vadd.f32 %v2723, %v2724
        %v2726 = vsel %vm2629, %v2699, 0.0
        %v2727 = vadd.f32 %v2725, %v2726
        %v2728 = vsel %vm2629, %v2700, 0.0
        %v2729 = vadd.f32 %v2727, %v2728
        %v2730 = vsel %vm2629, %v2701, 0.0
        %v2731 = vadd.f32 %v2729, %v2730
        %v2732 = vsel %vm2629, %v2702, 0.0
        %v2733 = vadd.f32 %v2731, %v2732
        %v2734 = vrot.slane %v2733, 4
        %v2735 = vadd.f32 %v2733, %v2734
        %v2736 = vrot.slane %v2735, 2
        %v2737 = vadd.f32 %v2735, %v2736
        %v2738 = vrot.slane %v2737, 1
        %v2739 = vadd.f32 %v2737, %v2738
        %v2740 = vsel %vm2629, %v2739, 0.0
        %2741 = vadd.xlane.f32.xlu0 %v2740
        %v2742 = vpop.xlane.xlu0 %2741
        %v2743 = vlaneseq
        %v2744 = vand.u32 %v2743, 127
        %vm2745 = vcmp.eq.s32.totalorder %v2744, 0
        %v2746 = vand.u32 2147483647, %v2669
        %v2747 = vsub.f32 0.0, %v2746
        %v2748 = vmul.f32 %v2747, 1.442695
        %v2749 = vpow.pop %v2748
        %vm2750 = vcmp.ge.f32.partialorder %v2669, 0.0
        %v2751 = vadd.f32 %v2749, 1.0
        %v2752 = vrcp.pop %v2751
        %v2753 = vmul.f32 %v2751, %v2752
        %v2754 = vsub.f32 1.0, %v2753
        %v2755 = vmul.f32 %v2752, %v2754
        %v2756 = vadd.f32 %v2752, %v2755
        %vm2757 = vweird.f32 %v2751
        %vm2758 = vweird.f32 %v2752
        %vm2759 = vmor %vm2757, %vm2758
        %v2760 = vsel %vm2759, %v2752, %v2756
        %v2761 = vand.u32 2147483647, %v2751
        %vm2762 = vcmp.eq.f32.partialorder %v2761, 8.507059e+37
        %v2763 = vand.u32 %v2751, 2147483648
        %v2764 = vor.u32 1.1754944e-38, %v2763
        %v2765 = vsel %vm2762, %v2764, %v2760
        %v2766 = vmul.f32 1.0, %v2765
        %v2767 = vmul.f32 %v2749, %v2765
        %v2768 = vsel %vm2750, %v2766, %v2767
        %vm2769 = vcmp.eq.s32.totalorder %v2744, 1
        %v2770 = vand.u32 2147483647, %v2742
        %v2771 = vsub.f32 0.0, %v2770
        %v2772 = vmul.f32 %v2771, 1.442695
        %v2773 = vpow.pop %v2772
        %vm2774 = vcmp.ge.f32.partialorder %v2742, 0.0
        %v2775 = vadd.f32 %v2773, 1.0
        %v2776 = vrcp.pop %v2775
        %v2777 = vmul.f32 %v2775, %v2776
        %v2778 = vsub.f32 1.0, %v2777
        %v2779 = vmul.f32 %v2776, %v2778
        %v2780 = vadd.f32 %v2776, %v2779
        %vm2781 = vweird.f32 %v2775
        %vm2782 = vweird.f32 %v2776
        %vm2783 = vmor %vm2781, %vm2782
        %v2784 = vsel %vm2783, %v2776, %v2780
        %v2785 = vand.u32 2147483647, %v2775
        %vm2786 = vcmp.eq.f32.partialorder %v2785, 8.507059e+37
        %v2787 = vand.u32 %v2775, 2147483648
        %v2788 = vor.u32 1.1754944e-38, %v2787
        %v2789 = vsel %vm2786, %v2788, %v2784
        %v2790 = vmul.f32 1.0, %v2789
        %v2791 = vmul.f32 %v2773, %v2789
        %v2792 = vsel %vm2774, %v2790, %v2791
        %v2793 = vsel %vm2769, %v2792, 0.0
        %v2794 = vsel %vm2745, %v2768, %v2793
        %2795 = vst [vmem:[%s257] sm:$0x1] %v2794
      $region52: #{discriminator_forward.7} parent=39 // pred_fallthru
        _
      %s2796 = smul.u32 %s21, %s20
      %p2797 = scmp.lt.s32.totalorder %s2796, 1
      %s2798 = scalar_select %p2797, %s2796, 1
      %s2799 = scalar_lea.vmem %s5, %s2798
      // Predicated region
      $region57: #{discriminator_forward.7} parent=39 // pred_check
        %p2800 = pneg %p164
      $region58: #{discriminator_forward.7} parent=39 // pred_check_branch
        %2802 = sbr.rel (%p2800) target = $region60
      $region59: #{discriminator_forward.7} parent=39 // pred_region
        %s2803 = smul.u32 %s21, %s20
      $region60: #{discriminator_forward.7} parent=39 // pred_fallthru
        _
    $region40: #{discriminator_forward.7} parent=5 // pred_fallthru
      _
    %p2804 = scmp.le.s32.totalorder 2, %s11
    // Predicated region
    $region61: #{discriminator_forward.7} parent=5 // pred_check
      %p2805 = pneg %p2804
    $region62: #{discriminator_forward.7} parent=5 // pred_check_branch
      %2807 = sbr.rel (%p2805) target = $region64
    $region63: #{discriminator_forward.7} parent=5 // pred_region
      %s2808 = ssub.s32 %s11, 2
      // Predicated region
      $region65: #{discriminator_forward.7} parent=63 // pred_check
        %p2809 = pneg %p170
      $region66: #{discriminator_forward.7} parent=63 // pred_check_branch
        %2811 = sbr.rel (%p2809) target = $region68
      $region67: #{discriminator_forward.7} parent=63 // pred_region
        %s2812 = smul.u32 %s23, %s22
        %p2813 = scmp.lt.s32.totalorder %s2812, 1
        %s2814 = scalar_select %p2813, %s2812, 1
        %s2815 = scalar_lea.vmem %s5, %s2814
      $region68: #{discriminator_forward.7} parent=63 // pred_fallthru
        _
    $region64: #{discriminator_forward.7} parent=5 // pred_fallthru
      _
  $region6: #{discriminator_forward.7} parent=0 // loop_footer
    %s15 = sadd.s32 1, %s11
  $region7: #{discriminator_forward.7} parent=0 // loop_footer_branch
    %10 = sbr.rel target = $region3
  $region8: #{discriminator_forward.7} parent=0 // loop_exit
    _

</llo_original>
